<compile_context>
chip_gen: v6e
topology: v6e:2x2x1
jax: 0.10.0
libtpu: 0.0.40
codegen_flags: <defaults>
</compile_context>

<pallas_src>
import jax
import jax.numpy as jnp
import numpy as np
from jax.experimental import pallas as pl
from jax.experimental.pallas import tpu as pltpu

BN_EPS = 1e-5


# ----------------------------------------------------------------------------
# Fused Pallas kernel: conv1/2/3 (+ReLU+BN) + AvgPool + Linear
# ----------------------------------------------------------------------------
def _menet5_fused_kernel(
    # BlockSpec-managed inputs (already in VMEM when the body starts):
    x_ref,
    r1_ref, h1_ref, cb1_ref, p1_ref, g1_ref, be1_ref,
    r2_ref, cb2_ref, g2_ref, be2_ref,
    r3_ref, cb3_ref, g3_ref, be3_ref,
    e_ref, fcb_ref,
    # Raw HBM refs (memory_space=pl.ANY), prefetched manually:
    h2_hbm, p2_hbm, h3_hbm, p3_hbm, f_hbm,
    # Output:
    o_ref,
    # Scratch (VMEM destinations for the manual prefetch + DMA semaphores):
    h2_v, p2_v, h3_v, p3_v, f_v, dma_sems,
):
    # --- kick off weight prefetch for layers 2/3 and the FC stage ------------
    copies = [
        pltpu.make_async_copy(h2_hbm, h2_v, dma_sems.at[0]),
        pltpu.make_async_copy(p2_hbm, p2_v, dma_sems.at[1]),
        pltpu.make_async_copy(h3_hbm, h3_v, dma_sems.at[2]),
        pltpu.make_async_copy(p3_hbm, p3_v, dma_sems.at[3]),
        pltpu.make_async_copy(f_hbm, f_v, dma_sems.at[4]),
    ]
    for cp in copies:
        cp.start()

    def conv_relu_bn(x, r_ref, h_cat, cbias, p_avg, gamma, beta):
        """y = BN(ReLU(sum_i R_i @ (x @ H_i) + bias)), training-mode stats.

        h_cat is the KH per-tap matrices concatenated along N; the single
        wide bf16 matmul replaces KH small dependent ones.
        """
        ntaps = r_ref.shape[0]
        owc = cbias.shape[-1]
        # One wide bf16 x bf16 matmul, f32 accumulation.
        z = jnp.dot(x.astype(jnp.bfloat16), h_cat,
                    preferred_element_type=jnp.float32)      # (M, ntaps*owc)
        # KH independent row-selection dots (0/1 matrices), summed.
        acc = jnp.dot(r_ref[0], z[:, :owc],
                      preferred_element_type=jnp.float32)
        for i in range(1, ntaps):
            acc = acc + jnp.dot(
                r_ref[i], z[:, i * owc:(i + 1) * owc],
                preferred_element_type=jnp.float32)
        y = jnp.maximum(acc + cbias, 0.0)                    # bias + ReLU (f32)
        # Single-pass BN batch statistics, merged into ONE (2, owc) matmul:
        col_m = jnp.mean(y, axis=0, keepdims=True)           # (1, owc)
        col_m2 = jnp.mean(y * y, axis=0, keepdims=True)      # (1, owc)
        stats = jnp.dot(jnp.concatenate([col_m, col_m2], axis=0), p_avg,
                        preferred_element_type=jnp.float32)  # (2, owc)
        mean = stats[0:1, :]
        ex2 = stats[1:2, :]
        var = ex2 - mean * mean                              # biased variance
        inv = jax.lax.rsqrt(var + BN_EPS)
        return (y - mean) * (inv * gamma) + beta

    # Layer 1: operands already resident (DMA of later layers overlaps this).
    y = conv_relu_bn(x_ref[...], r1_ref, h1_ref[...], cb1_ref[...],
                     p1_ref[...], g1_ref[...], be1_ref[...])

    # Layer 2: wait only on its own prefetched weights.
    copies[0].wait()
    copies[1].wait()
    y = conv_relu_bn(y, r2_ref, h2_v[...], cb2_ref[...],
                     p2_v[...], g2_ref[...], be2_ref[...])

    # Layer 3.
    copies[2].wait()
    copies[3].wait()
    y = conv_relu_bn(y, r3_ref, h3_v[...], cb3_ref[...],
                     p3_v[...], g3_ref[...], be3_ref[...])

    # AvgPool(2,2) + NCHW flatten + Linear:
    #   logits = b_fc + sum_h E_h @ (y3 @ F_h), with F concatenated along N.
    copies[4].wait()
    out_dim = fcb_ref.shape[-1]
    zf = jnp.dot(y.astype(jnp.bfloat16), f_v[...],
                 preferred_element_type=jnp.float32)          # (rows, hp*out)
    out = jnp.dot(e_ref[0], zf[:, :out_dim],
                  preferred_element_type=jnp.float32)
    for hh in range(1, e_ref.shape[0]):
        out = out + jnp.dot(
            e_ref[hh], zf[:, hh * out_dim:(hh + 1) * out_dim],
            preferred_element_type=jnp.float32)
    o_ref[...] = out + fcb_ref[...]


def _full_spec(shape):
    nd = len(shape)
    return pl.BlockSpec(shape, lambda *_: (0,) * nd)


# ----------------------------------------------------------------------------
# One-time preparation of all weight-derived kernel operands
# ----------------------------------------------------------------------------
def _conv_layer_matrices(w_oihw, bias, h_in, w_in, stride, pad, batch):
    """Build R (stacked taps, bf16), H_cat (taps concatenated along N, bf16)
    and the tiled bias row for  Y = sum_i R_i @ (X @ H_i) + bias_row,
    with X = (B*H_in, W_in*Cin) and Y = (B*OH, OW*Cout)."""
    cout, cin, kh, kw = (int(s) for s in w_oihw.shape)
    oh = (h_in + 2 * pad - kh) // stride + 1
    ow = (w_in + 2 * pad - kw) // stride + 1

    # Row selection (vertical tap + stride + zero padding), block-diag over B.
    r = np.zeros((kh, batch * oh, batch * h_in), np.float32)
    for i in range(kh):
        for b in range(batch):
            for o in range(oh):
                h = stride * o + i - pad
                if 0 <= h < h_in:
                    r[i, b * oh + o, b * h_in + h] = 1.0

    # Horizontal tap selection (stride + zero padding).
    a = np.zeros((kw, w_in, ow), np.float32)
    for j in range(kw):
        for o in range(ow):
            w = stride * o + j - pad
            if 0 <= w < w_in:
                a[j, w, o] = 1.0

    # H_i[w*Cin+ci, ow*Cout+co] = sum_j A_j[w,ow] * W[co,ci,i,j]
    wt = jnp.transpose(w_oihw, (2, 3, 1, 0))        # (KH, KW, Cin, Cout)
    a_j = jnp.asarray(a)
    h_list = []
    for i in range(kh):
        hi = jnp.einsum("jwo,jcd->wcod", a_j, wt[i])
        h_list.append(hi.reshape(w_in * cin, ow * cout))
    # Concatenate taps along N -> one wide MXU matmul per layer; store bf16.
    h_cat = jnp.concatenate(h_list, axis=1).astype(jnp.bfloat16)

    bias_row = jnp.tile(bias, ow).reshape(1, ow * cout)       # f32
    r_bf16 = jnp.asarray(r, dtype=jnp.bfloat16)               # 0/1 exact in bf16
    return r_bf16, h_cat, bias_row, oh, ow


def _chan_avg_matrix(ow, c):
    """(OW*C, OW*C) f32 matrix: column means -> per-channel means (tiled back).
    Kept f32: it feeds the cancellation-prone var = E[y^2] - mean^2 path."""
    return jnp.asarray(np.kron(np.ones((ow, ow), np.float32) / ow,
                               np.eye(c, dtype=np.float32)))


def prepare_menet5(params, batch, height, width):
    """Precompute every weight-derived matrix used by the fused kernel."""
    c1 = int(params["w1"].shape[0])
    c2 = int(params["w2"].shape[0])
    c3 = int(params["w3"].shape[0])

    r1, h1, cb1, oh1, ow1 = _conv_layer_matrices(
        params["w1"], params["b1"], height, width, 2, 2, batch)
    r2, h2, cb2, oh2, ow2 = _conv_layer_matrices(
        params["w2"], params["b2"], oh1, ow1, 2, 2, batch)
    r3, h3, cb3, oh3, ow3 = _conv_layer_matrices(
        params["w3"], params["b3"], oh2, ow2, 1, 1, batch)

    p1 = _chan_avg_matrix(ow1, c1)
    p2 = _chan_avg_matrix(ow2, c2)
    p3 = _chan_avg_matrix(ow3, c3)

    def bn_rows(g, be, ow):
        return (jnp.tile(g, ow).reshape(1, -1), jnp.tile(be, ow).reshape(1, -1))

    g1, be1 = bn_rows(params["g1"], params["be1"], ow1)
    g2, be2 = bn_rows(params["g2"], params["be2"], ow2)
    g3, be3 = bn_rows(params["g3"], params["be3"], ow3)

    # AvgPool(2,2) + PyTorch NCHW flatten + fc folded into E_h / F_h matmuls;
    # F taps concatenated along N, stored bf16.
    hp, wp = oh3 // 2, ow3 // 2
    out_dim = int(params["w_fc"].shape[0])
    e = np.zeros((hp, batch, batch * oh3), np.float32)
    for hh in range(hp):
        for b in range(batch):
            e[hh, b, b * oh3 + 2 * hh] = 1.0
            e[hh, b, b * oh3 + 2 * hh + 1] = 1.0
    m = np.zeros((ow3, wp), np.float32)
    for w in range(ow3):
        m[w, w // 2] = 1.0
    wfc = params["w_fc"].reshape(out_dim, c3, hp, wp)          # (o, c, ph, pw)
    m_j = jnp.asarray(m)
    f_list = []
    for hh in range(hp):
        fh = 0.25 * jnp.einsum("wp,ocp->wco", m_j, wfc[:, :, hh, :])
        f_list.append(fh.reshape(ow3 * c3, out_dim))
    f = jnp.concatenate(f_list, axis=1).astype(jnp.bfloat16)

    return dict(
        r1=r1, h1=h1, cb1=cb1, p1=p1, g1=g1, be1=be1,
        r2=r2, h2=h2, cb2=cb2, p2=p2, g2=g2, be2=be2,
        r3=r3, h3=h3, cb3=cb3, p3=p3, g3=g3, be3=be3,
        e=jnp.asarray(e, dtype=jnp.bfloat16), f=f,
        fcb=params["b_fc"].reshape(1, out_dim),
    )


# ----------------------------------------------------------------------------
# Forward: one fused pallas_call
# ----------------------------------------------------------------------------
@jax.jit
def menet5_forward(prep, x_nchw):
    b, cin, h, w = x_nchw.shape
    # NCHW -> (B*H, W*Cin) lane-major layout.  For Cin==1 this is a pure
    # reshape (no transpose / extra XLA kernels in front of the fused call).
    if cin == 1:
        x2d = x_nchw.reshape(b * h, w)
    else:
        x2d = jnp.transpose(x_nchw, (0, 2, 3, 1)).reshape(b * h, w * cin)
    if x2d.dtype != jnp.float32:
        x2d = x2d.astype(jnp.float32)

    out_dim = prep["fcb"].shape[1]

    # Operands whose DMA must finish before the body starts (layer-1 + tiny).
    vmem_ops = [
        x2d,
        prep["r1"], prep["h1"], prep["cb1"], prep["p1"], prep["g1"], prep["be1"],
        prep["r2"], prep["cb2"], prep["g2"], prep["be2"],
        prep["r3"], prep["cb3"], prep["g3"], prep["be3"],
        prep["e"], prep["fcb"],
    ]
    # Big later-layer operands: stay in HBM, prefetched inside the kernel so
    # their DMA overlaps layer-1 compute.
    hbm_ops = [prep["h2"], prep["p2"], prep["h3"], prep["p3"], prep["f"]]
    operands = vmem_ops + hbm_ops

    in_specs = ([_full_spec(tuple(op.shape)) for op in vmem_ops]
                + [pl.BlockSpec(memory_space=pl.ANY)] * len(hbm_ops))

    scratch_shapes = [pltpu.VMEM(tuple(op.shape), op.dtype) for op in hbm_ops]
    scratch_shapes.append(pltpu.SemaphoreType.DMA((len(hbm_ops),)))

    return pl.pallas_call(
        _menet5_fused_kernel,
        grid=(1,),
        in_specs=in_specs,
        out_specs=_full_spec((b, out_dim)),
        out_shape=jax.ShapeDtypeStruct((b, out_dim), jnp.float32),
        scratch_shapes=scratch_shapes,
        compiler_params=pltpu.CompilerParams(
            dimension_semantics=("arbitrary",),
            vmem_limit_bytes=32 * 1024 * 1024),
    )(*operands)


# ----------------------------------------------------------------------------
# Deterministic parameter init (shapes from MeNet5.__init__)
# ----------------------------------------------------------------------------
def init_params(key, input_channels=1, width_factor=1, output_dim=64):
    c1, c2, c3 = 16 * width_factor, 32 * width_factor, 32 * width_factor
    keys = jax.random.split(key, 4)

    def conv_init(k, cout, cin, kh, kw):
        fan_in = cin * kh * kw
        bound = 1.0 / (fan_in ** 0.5)
        kw_, kb_ = jax.random.split(k)
        w = jax.random.uniform(kw_, (cout, cin, kh, kw), jnp.float32, -bound, bound)
        b = jax.random.uniform(kb_, (cout,), jnp.float32, -bound, bound)
        return w, b

    w1, b1 = conv_init(keys[0], c1, input_channels, 5, 5)
    w2, b2 = conv_init(keys[1], c2, c1, 5, 5)
    w3, b3 = conv_init(keys[2], c3, c2, 3, 3)

    fc_in = 9 * 32 * width_factor
    fb = 1.0 / (fc_in ** 0.5)
    kfw, kfb = jax.random.split(keys[3])
    w_fc = jax.random.uniform(kfw, (output_dim, fc_in), jnp.float32, -fb, fb)
    b_fc = jax.random.uniform(kfb, (output_dim,), jnp.float32, -fb, fb)

    return dict(
        w1=w1, b1=b1, g1=jnp.ones((c1,), jnp.float32), be1=jnp.zeros((c1,), jnp.float32),
        w2=w2, b2=b2, g2=jnp.ones((c2,), jnp.float32), be2=jnp.zeros((c2,), jnp.float32),
        w3=w3, b3=b3, g3=jnp.ones((c3,), jnp.float32), be3=jnp.zeros((c3,), jnp.float32),
        w_fc=w_fc, b_fc=b_fc,
    )


# ----------------------------------------------------------------------------
# Pure-JAX reference (matches PyTorch semantics) for a sanity check
# ----------------------------------------------------------------------------
def reference_forward(params, x):
    def conv(x, w, b, stride, pad):
        y = jax.lax.conv_general_dilated(
            x, w, (stride, stride), [(pad, pad), (pad, pad)],
            dimension_numbers=("NCHW", "OIHW", "NCHW"))
        return y + b[None, :, None, None]

    def relu_bn(y, g, be):
        y = jnp.maximum(y, 0.0)
        mean = jnp.mean(y, axis=(0, 2, 3), keepdims=True)
        var = jnp.mean(jnp.square(y - mean), axis=(0, 2, 3), keepdims=True)
        y = (y - mean) * jax.lax.rsqrt(var + BN_EPS)
        return y * g[None, :, None, None] + be[None, :, None, None]

    y = relu_bn(conv(x, params["w1"], params["b1"], 2, 2), params["g1"], params["be1"])
    y = relu_bn(conv(y, params["w2"], params["b2"], 2, 2), params["g2"], params["be2"])
    y = relu_bn(conv(y, params["w3"], params["b3"], 1, 1), params["g3"], params["be3"])
    B, C, H, W = y.shape
    y = y.reshape(B, C, H // 2, 2, W // 2, 2).mean(axis=(3, 5))
    feat = y.reshape(B, -1)
    return feat @ params["w_fc"].T + params["b_fc"]


if __name__ == "__main__":
    key = jax.random.PRNGKey(0)
    kx, kp = jax.random.split(key)

    # fc expects 9*32 features => conv stack output 3x3x32 => input 24x24
    B, H, W = 2, 24, 24
    x = jax.random.normal(kx, (B, 1, H, W), dtype=jnp.float32)
    params = init_params(kp, input_channels=1, width_factor=1, output_dim=64)

    prep = prepare_menet5(params, B, H, W)      # one-time weight folding
    out = jax.block_until_ready(menet5_forward(prep, x))

    ref = reference_forward(params, x)
    assert out.shape == (B, 64), out.shape
    assert bool(jnp.all(jnp.isfinite(out)))
    # bf16 weights / bf16 MXU inputs => slightly looser tolerance than pure f32.
    assert bool(jnp.allclose(out, ref, atol=2e-2, rtol=2e-2)), (
        float(jnp.max(jnp.abs(out - ref))))

    print("KERNEL_OK")
</pallas_src>

<mosaic_0001>
module attributes {stable_mosaic.version = 11 : i64} {
  func.func @_menet5_fused_kernel(%arg0: i32, %arg1: memref<48x24xf32, #tpu.memory_space<vmem>>, %arg2: memref<5x24x48xbf16, #tpu.memory_space<vmem>>, %arg3: memref<24x960xbf16, #tpu.memory_space<vmem>>, %arg4: memref<1x192xf32, #tpu.memory_space<vmem>>, %arg5: memref<192x192xf32, #tpu.memory_space<vmem>>, %arg6: memref<1x192xf32, #tpu.memory_space<vmem>>, %arg7: memref<1x192xf32, #tpu.memory_space<vmem>>, %arg8: memref<5x12x24xbf16, #tpu.memory_space<vmem>>, %arg9: memref<1x192xf32, #tpu.memory_space<vmem>>, %arg10: memref<1x192xf32, #tpu.memory_space<vmem>>, %arg11: memref<1x192xf32, #tpu.memory_space<vmem>>, %arg12: memref<3x12x12xbf16, #tpu.memory_space<vmem>>, %arg13: memref<1x192xf32, #tpu.memory_space<vmem>>, %arg14: memref<1x192xf32, #tpu.memory_space<vmem>>, %arg15: memref<1x192xf32, #tpu.memory_space<vmem>>, %arg16: memref<3x2x12xbf16, #tpu.memory_space<vmem>>, %arg17: memref<1x64xf32, #tpu.memory_space<vmem>>, %arg18: memref<192x960xbf16, #tpu.memory_space<any>>, %arg19: memref<192x192xf32, #tpu.memory_space<any>>, %arg20: memref<192x576xbf16, #tpu.memory_space<any>>, %arg21: memref<192x192xf32, #tpu.memory_space<any>>, %arg22: memref<192x192xbf16, #tpu.memory_space<any>>, %arg23: memref<2x64xf32, #tpu.memory_space<vmem>>, %arg24: memref<192x960xbf16, #tpu.memory_space<vmem>>, %arg25: memref<192x192xf32, #tpu.memory_space<vmem>>, %arg26: memref<192x576xbf16, #tpu.memory_space<vmem>>, %arg27: memref<192x192xf32, #tpu.memory_space<vmem>>, %arg28: memref<192x192xbf16, #tpu.memory_space<vmem>>, %arg29: memref<5x!tpu.dma_semaphore, #tpu.memory_space<semaphore_mem>>) attributes {dimension_semantics = [#tpu.dimension_semantics<arbitrary>], iteration_bounds = array<i64: 1>, scalar_prefetch = 0 : i64, scratch_operands = 6 : i64, tpu.core_type = #tpu.core_type<tc>, window_params = [{pipeline_mode = #tpu.pipeline_mode<synchronous>, transform_indices = @transform_0, window_bounds = array<i64: 48, 24>}, {pipeline_mode = #tpu.pipeline_mode<synchronous>, transform_indices = @transform_1, window_bounds = array<i64: 5, 24, 48>}, {pipeline_mode = #tpu.pipeline_mode<synchronous>, transform_indices = @transform_2, window_bounds = array<i64: 24, 960>}, {pipeline_mode = #tpu.pipeline_mode<synchronous>, transform_indices = @transform_3, window_bounds = array<i64: 1, 192>}, {pipeline_mode = #tpu.pipeline_mode<synchronous>, transform_indices = @transform_4, window_bounds = array<i64: 192, 192>}, {pipeline_mode = #tpu.pipeline_mode<synchronous>, transform_indices = @transform_5, window_bounds = array<i64: 1, 192>}, {pipeline_mode = #tpu.pipeline_mode<synchronous>, transform_indices = @transform_6, window_bounds = array<i64: 1, 192>}, {pipeline_mode = #tpu.pipeline_mode<synchronous>, transform_indices = @transform_7, window_bounds = array<i64: 5, 12, 24>}, {pipeline_mode = #tpu.pipeline_mode<synchronous>, transform_indices = @transform_8, window_bounds = array<i64: 1, 192>}, {pipeline_mode = #tpu.pipeline_mode<synchronous>, transform_indices = @transform_9, window_bounds = array<i64: 1, 192>}, {pipeline_mode = #tpu.pipeline_mode<synchronous>, transform_indices = @transform_10, window_bounds = array<i64: 1, 192>}, {pipeline_mode = #tpu.pipeline_mode<synchronous>, transform_indices = @transform_11, window_bounds = array<i64: 3, 12, 12>}, {pipeline_mode = #tpu.pipeline_mode<synchronous>, transform_indices = @transform_12, window_bounds = array<i64: 1, 192>}, {pipeline_mode = #tpu.pipeline_mode<synchronous>, transform_indices = @transform_13, window_bounds = array<i64: 1, 192>}, {pipeline_mode = #tpu.pipeline_mode<synchronous>, transform_indices = @transform_14, window_bounds = array<i64: 1, 192>}, {pipeline_mode = #tpu.pipeline_mode<synchronous>, transform_indices = @transform_15, window_bounds = array<i64: 3, 2, 12>}, {pipeline_mode = #tpu.pipeline_mode<synchronous>, transform_indices = @transform_16, window_bounds = array<i64: 1, 64>}, {}, {}, {}, {}, {}, {pipeline_mode = #tpu.pipeline_mode<synchronous>, transform_indices = @transform_22, window_bounds = array<i64: 2, 64>}]} {
    %c0_i32 = arith.constant 0 : i32
    %0 = tpu.memref_slice %arg29[%c0_i32] : memref<5x!tpu.dma_semaphore, #tpu.memory_space<semaphore_mem>> -> memref<1x!tpu.dma_semaphore, #tpu.memory_space<semaphore_mem>>
    %1 = tpu.memref_squeeze %0 : memref<1x!tpu.dma_semaphore, #tpu.memory_space<semaphore_mem>> -> memref<!tpu.dma_semaphore, #tpu.memory_space<semaphore_mem>>
    tpu.enqueue_dma source(%arg18 : memref<192x960xbf16, #tpu.memory_space<any>>) target(%arg24 : memref<192x960xbf16, #tpu.memory_space<vmem>>) target_semaphore(%1 : memref<!tpu.dma_semaphore, #tpu.memory_space<semaphore_mem>>)
    %c1_i32 = arith.constant 1 : i32
    %2 = tpu.memref_slice %arg29[%c1_i32] : memref<5x!tpu.dma_semaphore, #tpu.memory_space<semaphore_mem>> -> memref<1x!tpu.dma_semaphore, #tpu.memory_space<semaphore_mem>>
    %3 = tpu.memref_squeeze %2 : memref<1x!tpu.dma_semaphore, #tpu.memory_space<semaphore_mem>> -> memref<!tpu.dma_semaphore, #tpu.memory_space<semaphore_mem>>
    tpu.enqueue_dma source(%arg19 : memref<192x192xf32, #tpu.memory_space<any>>) target(%arg25 : memref<192x192xf32, #tpu.memory_space<vmem>>) target_semaphore(%3 : memref<!tpu.dma_semaphore, #tpu.memory_space<semaphore_mem>>)
    %c2_i32 = arith.constant 2 : i32
    %4 = tpu.memref_slice %arg29[%c2_i32] : memref<5x!tpu.dma_semaphore, #tpu.memory_space<semaphore_mem>> -> memref<1x!tpu.dma_semaphore, #tpu.memory_space<semaphore_mem>>
    %5 = tpu.memref_squeeze %4 : memref<1x!tpu.dma_semaphore, #tpu.memory_space<semaphore_mem>> -> memref<!tpu.dma_semaphore, #tpu.memory_space<semaphore_mem>>
    tpu.enqueue_dma source(%arg20 : memref<192x576xbf16, #tpu.memory_space<any>>) target(%arg26 : memref<192x576xbf16, #tpu.memory_space<vmem>>) target_semaphore(%5 : memref<!tpu.dma_semaphore, #tpu.memory_space<semaphore_mem>>)
    %c3_i32 = arith.constant 3 : i32
    %6 = tpu.memref_slice %arg29[%c3_i32] : memref<5x!tpu.dma_semaphore, #tpu.memory_space<semaphore_mem>> -> memref<1x!tpu.dma_semaphore, #tpu.memory_space<semaphore_mem>>
    %7 = tpu.memref_squeeze %6 : memref<1x!tpu.dma_semaphore, #tpu.memory_space<semaphore_mem>> -> memref<!tpu.dma_semaphore, #tpu.memory_space<semaphore_mem>>
    tpu.enqueue_dma source(%arg21 : memref<192x192xf32, #tpu.memory_space<any>>) target(%arg27 : memref<192x192xf32, #tpu.memory_space<vmem>>) target_semaphore(%7 : memref<!tpu.dma_semaphore, #tpu.memory_space<semaphore_mem>>)
    %c4_i32 = arith.constant 4 : i32
    %8 = tpu.memref_slice %arg29[%c4_i32] : memref<5x!tpu.dma_semaphore, #tpu.memory_space<semaphore_mem>> -> memref<1x!tpu.dma_semaphore, #tpu.memory_space<semaphore_mem>>
    %9 = tpu.memref_squeeze %8 : memref<1x!tpu.dma_semaphore, #tpu.memory_space<semaphore_mem>> -> memref<!tpu.dma_semaphore, #tpu.memory_space<semaphore_mem>>
    tpu.enqueue_dma source(%arg22 : memref<192x192xbf16, #tpu.memory_space<any>>) target(%arg28 : memref<192x192xbf16, #tpu.memory_space<vmem>>) target_semaphore(%9 : memref<!tpu.dma_semaphore, #tpu.memory_space<semaphore_mem>>)
    %c0 = arith.constant 0 : index
    %c0_0 = arith.constant 0 : index
    %10 = vector.load %arg1[%c0, %c0_0] : memref<48x24xf32, #tpu.memory_space<vmem>>, vector<48x24xf32>
    %c0_1 = arith.constant 0 : index
    %c0_2 = arith.constant 0 : index
    %11 = vector.load %arg3[%c0_1, %c0_2] : memref<24x960xbf16, #tpu.memory_space<vmem>>, vector<24x960xbf16>
    %c0_3 = arith.constant 0 : index
    %c0_4 = arith.constant 0 : index
    %12 = vector.load %arg4[%c0_3, %c0_4] : memref<1x192xf32, #tpu.memory_space<vmem>>, vector<1x192xf32>
    %c0_5 = arith.constant 0 : index
    %c0_6 = arith.constant 0 : index
    %13 = vector.load %arg5[%c0_5, %c0_6] : memref<192x192xf32, #tpu.memory_space<vmem>>, vector<192x192xf32>
    %c0_7 = arith.constant 0 : index
    %c0_8 = arith.constant 0 : index
    %14 = vector.load %arg6[%c0_7, %c0_8] : memref<1x192xf32, #tpu.memory_space<vmem>>, vector<1x192xf32>
    %c0_9 = arith.constant 0 : index
    %c0_10 = arith.constant 0 : index
    %15 = vector.load %arg7[%c0_9, %c0_10] : memref<1x192xf32, #tpu.memory_space<vmem>>, vector<1x192xf32>
    %16 = arith.truncf %10 : vector<48x24xf32> to vector<48x24xbf16>
    %cst = arith.constant dense<0.000000e+00> : vector<48x960xf32>
    %17 = tpu.matmul %16, %11, %cst {dimension_numbers = #tpu.dot_dimension_numbers<[1], [0], [0], [1], [0, 0, 1, 1], [], []>} : vector<48x24xbf16>, vector<24x960xbf16>, vector<48x960xf32> -> vector<48x960xf32>
    %c0_11 = arith.constant 0 : index
    %c0_12 = arith.constant 0 : index
    %c0_13 = arith.constant 0 : index
    %18 = vector.load %arg2[%c0_11, %c0_12, %c0_13] : memref<5x24x48xbf16, #tpu.memory_space<vmem>>, vector<1x24x48xbf16>
    %19 = vector.shape_cast %18 : vector<1x24x48xbf16> to vector<24x48xbf16>
    %20 = vector.extract_strided_slice %17 {offsets = [0, 0], sizes = [48, 192], strides = [1, 1]} : vector<48x960xf32> to vector<48x192xf32>
    %cst_14 = arith.constant dense<0.000000e+00> : vector<24x192xf32>
    %21 = tpu.matmul %19, %20, %cst_14 {dimension_numbers = #tpu.dot_dimension_numbers<[1], [0], [0], [1], [0, 0, 1, 1], [], []>} : vector<24x48xbf16>, vector<48x192xf32>, vector<24x192xf32> -> vector<24x192xf32>
    %c1 = arith.constant 1 : index
    %c0_15 = arith.constant 0 : index
    %c0_16 = arith.constant 0 : index
    %22 = vector.load %arg2[%c1, %c0_15, %c0_16] : memref<5x24x48xbf16, #tpu.memory_space<vmem>>, vector<1x24x48xbf16>
    %23 = vector.shape_cast %22 : vector<1x24x48xbf16> to vector<24x48xbf16>
    %24 = vector.extract_strided_slice %17 {offsets = [0, 192], sizes = [48, 192], strides = [1, 1]} : vector<48x960xf32> to vector<48x192xf32>
    %cst_17 = arith.constant dense<0.000000e+00> : vector<24x192xf32>
    %25 = tpu.matmul %23, %24, %cst_17 {dimension_numbers = #tpu.dot_dimension_numbers<[1], [0], [0], [1], [0, 0, 1, 1], [], []>} : vector<24x48xbf16>, vector<48x192xf32>, vector<24x192xf32> -> vector<24x192xf32>
    %26 = arith.addf %21, %25 : vector<24x192xf32>
    %c2 = arith.constant 2 : index
    %c0_18 = arith.constant 0 : index
    %c0_19 = arith.constant 0 : index
    %27 = vector.load %arg2[%c2, %c0_18, %c0_19] : memref<5x24x48xbf16, #tpu.memory_space<vmem>>, vector<1x24x48xbf16>
    %28 = vector.shape_cast %27 : vector<1x24x48xbf16> to vector<24x48xbf16>
    %29 = vector.extract_strided_slice %17 {offsets = [0, 384], sizes = [48, 192], strides = [1, 1]} : vector<48x960xf32> to vector<48x192xf32>
    %cst_20 = arith.constant dense<0.000000e+00> : vector<24x192xf32>
    %30 = tpu.matmul %28, %29, %cst_20 {dimension_numbers = #tpu.dot_dimension_numbers<[1], [0], [0], [1], [0, 0, 1, 1], [], []>} : vector<24x48xbf16>, vector<48x192xf32>, vector<24x192xf32> -> vector<24x192xf32>
    %31 = arith.addf %26, %30 : vector<24x192xf32>
    %c3 = arith.constant 3 : index
    %c0_21 = arith.constant 0 : index
    %c0_22 = arith.constant 0 : index
    %32 = vector.load %arg2[%c3, %c0_21, %c0_22] : memref<5x24x48xbf16, #tpu.memory_space<vmem>>, vector<1x24x48xbf16>
    %33 = vector.shape_cast %32 : vector<1x24x48xbf16> to vector<24x48xbf16>
    %34 = vector.extract_strided_slice %17 {offsets = [0, 576], sizes = [48, 192], strides = [1, 1]} : vector<48x960xf32> to vector<48x192xf32>
    %cst_23 = arith.constant dense<0.000000e+00> : vector<24x192xf32>
    %35 = tpu.matmul %33, %34, %cst_23 {dimension_numbers = #tpu.dot_dimension_numbers<[1], [0], [0], [1], [0, 0, 1, 1], [], []>} : vector<24x48xbf16>, vector<48x192xf32>, vector<24x192xf32> -> vector<24x192xf32>
    %36 = arith.addf %31, %35 : vector<24x192xf32>
    %c4 = arith.constant 4 : index
    %c0_24 = arith.constant 0 : index
    %c0_25 = arith.constant 0 : index
    %37 = vector.load %arg2[%c4, %c0_24, %c0_25] : memref<5x24x48xbf16, #tpu.memory_space<vmem>>, vector<1x24x48xbf16>
    %38 = vector.shape_cast %37 : vector<1x24x48xbf16> to vector<24x48xbf16>
    %39 = vector.extract_strided_slice %17 {offsets = [0, 768], sizes = [48, 192], strides = [1, 1]} : vector<48x960xf32> to vector<48x192xf32>
    %cst_26 = arith.constant dense<0.000000e+00> : vector<24x192xf32>
    %40 = tpu.matmul %38, %39, %cst_26 {dimension_numbers = #tpu.dot_dimension_numbers<[1], [0], [0], [1], [0, 0, 1, 1], [], []>} : vector<24x48xbf16>, vector<48x192xf32>, vector<24x192xf32> -> vector<24x192xf32>
    %41 = arith.addf %36, %40 : vector<24x192xf32>
    %42 = vector.broadcast %12 : vector<1x192xf32> to vector<24x192xf32>
    %43 = arith.addf %41, %42 : vector<24x192xf32>
    %cst_27 = arith.constant 0.000000e+00 : f32
    %44 = vector.broadcast %cst_27 : f32 to vector<24x192xf32>
    %45 = arith.maximumf %43, %44 : vector<24x192xf32>
    %cst_28 = arith.constant dense<0.000000e+00> : vector<192xf32>
    %46 = vector.multi_reduction <add>, %45, %cst_28 [0] : vector<24x192xf32> to vector<192xf32>
    %47 = vector.shape_cast %46 : vector<192xf32> to vector<1x192xf32>
    %cst_29 = arith.constant 2.400000e+01 : f32
    %48 = vector.broadcast %cst_29 : f32 to vector<1x192xf32>
    %49 = arith.divf %47, %48 : vector<1x192xf32>
    %50 = arith.mulf %45, %45 : vector<24x192xf32>
    %cst_30 = arith.constant dense<0.000000e+00> : vector<192xf32>
    %51 = vector.multi_reduction <add>, %50, %cst_30 [0] : vector<24x192xf32> to vector<192xf32>
    %52 = vector.shape_cast %51 : vector<192xf32> to vector<1x192xf32>
    %cst_31 = arith.constant 2.400000e+01 : f32
    %53 = vector.broadcast %cst_31 : f32 to vector<1x192xf32>
    %54 = arith.divf %52, %53 : vector<1x192xf32>
    %55 = tpu.concatenate %49, %54 in 0 : vector<1x192xf32>, vector<1x192xf32> -> vector<2x192xf32>
    %cst_32 = arith.constant dense<0.000000e+00> : vector<2x192xf32>
    %56 = tpu.matmul %55, %13, %cst_32 {dimension_numbers = #tpu.dot_dimension_numbers<[1], [0], [0], [1], [0, 0, 1, 1], [], []>} : vector<2x192xf32>, vector<192x192xf32>, vector<2x192xf32> -> vector<2x192xf32>
    %57 = vector.extract_strided_slice %56 {offsets = [0, 0], sizes = [1, 192], strides = [1, 1]} : vector<2x192xf32> to vector<1x192xf32>
    %58 = vector.extract_strided_slice %56 {offsets = [1, 0], sizes = [1, 192], strides = [1, 1]} : vector<2x192xf32> to vector<1x192xf32>
    %59 = arith.mulf %57, %57 : vector<1x192xf32>
    %60 = arith.subf %58, %59 : vector<1x192xf32>
    %cst_33 = arith.constant 9.99999974E-6 : f32
    %61 = vector.broadcast %cst_33 : f32 to vector<1x192xf32>
    %62 = arith.addf %60, %61 : vector<1x192xf32>
    %63 = math.rsqrt %62 : vector<1x192xf32>
    %64 = vector.broadcast %57 : vector<1x192xf32> to vector<24x192xf32>
    %65 = arith.subf %45, %64 : vector<24x192xf32>
    %66 = arith.mulf %63, %14 : vector<1x192xf32>
    %67 = vector.broadcast %66 : vector<1x192xf32> to vector<24x192xf32>
    %68 = arith.mulf %65, %67 : vector<24x192xf32>
    %69 = vector.broadcast %15 : vector<1x192xf32> to vector<24x192xf32>
    %70 = arith.addf %68, %69 : vector<24x192xf32>
    %c0_i32_34 = arith.constant 0 : i32
    %71 = tpu.memref_slice %arg29[%c0_i32_34] : memref<5x!tpu.dma_semaphore, #tpu.memory_space<semaphore_mem>> -> memref<1x!tpu.dma_semaphore, #tpu.memory_space<semaphore_mem>>
    %72 = tpu.memref_squeeze %71 : memref<1x!tpu.dma_semaphore, #tpu.memory_space<semaphore_mem>> -> memref<!tpu.dma_semaphore, #tpu.memory_space<semaphore_mem>>
    tpu.wait_dma2 semaphore(%72 : memref<!tpu.dma_semaphore, #tpu.memory_space<semaphore_mem>>) src(%arg18 : memref<192x960xbf16, #tpu.memory_space<any>>) dst(%arg24 : memref<192x960xbf16, #tpu.memory_space<vmem>>)
    %c1_i32_35 = arith.constant 1 : i32
    %73 = tpu.memref_slice %arg29[%c1_i32_35] : memref<5x!tpu.dma_semaphore, #tpu.memory_space<semaphore_mem>> -> memref<1x!tpu.dma_semaphore, #tpu.memory_space<semaphore_mem>>
    %74 = tpu.memref_squeeze %73 : memref<1x!tpu.dma_semaphore, #tpu.memory_space<semaphore_mem>> -> memref<!tpu.dma_semaphore, #tpu.memory_space<semaphore_mem>>
    tpu.wait_dma2 semaphore(%74 : memref<!tpu.dma_semaphore, #tpu.memory_space<semaphore_mem>>) src(%arg19 : memref<192x192xf32, #tpu.memory_space<any>>) dst(%arg25 : memref<192x192xf32, #tpu.memory_space<vmem>>)
    %c0_36 = arith.constant 0 : index
    %c0_37 = arith.constant 0 : index
    %75 = vector.load %arg24[%c0_36, %c0_37] : memref<192x960xbf16, #tpu.memory_space<vmem>>, vector<192x960xbf16>
    %c0_38 = arith.constant 0 : index
    %c0_39 = arith.constant 0 : index
    %76 = vector.load %arg9[%c0_38, %c0_39] : memref<1x192xf32, #tpu.memory_space<vmem>>, vector<1x192xf32>
    %c0_40 = arith.constant 0 : index
    %c0_41 = arith.constant 0 : index
    %77 = vector.load %arg25[%c0_40, %c0_41] : memref<192x192xf32, #tpu.memory_space<vmem>>, vector<192x192xf32>
    %c0_42 = arith.constant 0 : index
    %c0_43 = arith.constant 0 : index
    %78 = vector.load %arg10[%c0_42, %c0_43] : memref<1x192xf32, #tpu.memory_space<vmem>>, vector<1x192xf32>
    %c0_44 = arith.constant 0 : index
    %c0_45 = arith.constant 0 : index
    %79 = vector.load %arg11[%c0_44, %c0_45] : memref<1x192xf32, #tpu.memory_space<vmem>>, vector<1x192xf32>
    %80 = arith.truncf %70 : vector<24x192xf32> to vector<24x192xbf16>
    %cst_46 = arith.constant dense<0.000000e+00> : vector<24x960xf32>
    %81 = tpu.matmul %80, %75, %cst_46 {dimension_numbers = #tpu.dot_dimension_numbers<[1], [0], [0], [1], [0, 0, 1, 1], [], []>} : vector<24x192xbf16>, vector<192x960xbf16>, vector<24x960xf32> -> vector<24x960xf32>
    %c0_47 = arith.constant 0 : index
    %c0_48 = arith.constant 0 : index
    %c0_49 = arith.constant 0 : index
    %82 = vector.load %arg8[%c0_47, %c0_48, %c0_49] : memref<5x12x24xbf16, #tpu.memory_space<vmem>>, vector<1x12x24xbf16>
    %83 = vector.shape_cast %82 : vector<1x12x24xbf16> to vector<12x24xbf16>
    %84 = vector.extract_strided_slice %81 {offsets = [0, 0], sizes = [24, 192], strides = [1, 1]} : vector<24x960xf32> to vector<24x192xf32>
    %cst_50 = arith.constant dense<0.000000e+00> : vector<12x192xf32>
    %85 = tpu.matmul %83, %84, %cst_50 {dimension_numbers = #tpu.dot_dimension_numbers<[1], [0], [0], [1], [0, 0, 1, 1], [], []>} : vector<12x24xbf16>, vector<24x192xf32>, vector<12x192xf32> -> vector<12x192xf32>
    %c1_51 = arith.constant 1 : index
    %c0_52 = arith.constant 0 : index
    %c0_53 = arith.constant 0 : index
    %86 = vector.load %arg8[%c1_51, %c0_52, %c0_53] : memref<5x12x24xbf16, #tpu.memory_space<vmem>>, vector<1x12x24xbf16>
    %87 = vector.shape_cast %86 : vector<1x12x24xbf16> to vector<12x24xbf16>
    %88 = vector.extract_strided_slice %81 {offsets = [0, 192], sizes = [24, 192], strides = [1, 1]} : vector<24x960xf32> to vector<24x192xf32>
    %cst_54 = arith.constant dense<0.000000e+00> : vector<12x192xf32>
    %89 = tpu.matmul %87, %88, %cst_54 {dimension_numbers = #tpu.dot_dimension_numbers<[1], [0], [0], [1], [0, 0, 1, 1], [], []>} : vector<12x24xbf16>, vector<24x192xf32>, vector<12x192xf32> -> vector<12x192xf32>
    %90 = arith.addf %85, %89 : vector<12x192xf32>
    %c2_55 = arith.constant 2 : index
    %c0_56 = arith.constant 0 : index
    %c0_57 = arith.constant 0 : index
    %91 = vector.load %arg8[%c2_55, %c0_56, %c0_57] : memref<5x12x24xbf16, #tpu.memory_space<vmem>>, vector<1x12x24xbf16>
    %92 = vector.shape_cast %91 : vector<1x12x24xbf16> to vector<12x24xbf16>
    %93 = vector.extract_strided_slice %81 {offsets = [0, 384], sizes = [24, 192], strides = [1, 1]} : vector<24x960xf32> to vector<24x192xf32>
    %cst_58 = arith.constant dense<0.000000e+00> : vector<12x192xf32>
    %94 = tpu.matmul %92, %93, %cst_58 {dimension_numbers = #tpu.dot_dimension_numbers<[1], [0], [0], [1], [0, 0, 1, 1], [], []>} : vector<12x24xbf16>, vector<24x192xf32>, vector<12x192xf32> -> vector<12x192xf32>
    %95 = arith.addf %90, %94 : vector<12x192xf32>
    %c3_59 = arith.constant 3 : index
    %c0_60 = arith.constant 0 : index
    %c0_61 = arith.constant 0 : index
    %96 = vector.load %arg8[%c3_59, %c0_60, %c0_61] : memref<5x12x24xbf16, #tpu.memory_space<vmem>>, vector<1x12x24xbf16>
    %97 = vector.shape_cast %96 : vector<1x12x24xbf16> to vector<12x24xbf16>
    %98 = vector.extract_strided_slice %81 {offsets = [0, 576], sizes = [24, 192], strides = [1, 1]} : vector<24x960xf32> to vector<24x192xf32>
    %cst_62 = arith.constant dense<0.000000e+00> : vector<12x192xf32>
    %99 = tpu.matmul %97, %98, %cst_62 {dimension_numbers = #tpu.dot_dimension_numbers<[1], [0], [0], [1], [0, 0, 1, 1], [], []>} : vector<12x24xbf16>, vector<24x192xf32>, vector<12x192xf32> -> vector<12x192xf32>
    %100 = arith.addf %95, %99 : vector<12x192xf32>
    %c4_63 = arith.constant 4 : index
    %c0_64 = arith.constant 0 : index
    %c0_65 = arith.constant 0 : index
    %101 = vector.load %arg8[%c4_63, %c0_64, %c0_65] : memref<5x12x24xbf16, #tpu.memory_space<vmem>>, vector<1x12x24xbf16>
    %102 = vector.shape_cast %101 : vector<1x12x24xbf16> to vector<12x24xbf16>
    %103 = vector.extract_strided_slice %81 {offsets = [0, 768], sizes = [24, 192], strides = [1, 1]} : vector<24x960xf32> to vector<24x192xf32>
    %cst_66 = arith.constant dense<0.000000e+00> : vector<12x192xf32>
    %104 = tpu.matmul %102, %103, %cst_66 {dimension_numbers = #tpu.dot_dimension_numbers<[1], [0], [0], [1], [0, 0, 1, 1], [], []>} : vector<12x24xbf16>, vector<24x192xf32>, vector<12x192xf32> -> vector<12x192xf32>
    %105 = arith.addf %100, %104 : vector<12x192xf32>
    %106 = vector.broadcast %76 : vector<1x192xf32> to vector<12x192xf32>
    %107 = arith.addf %105, %106 : vector<12x192xf32>
    %cst_67 = arith.constant 0.000000e+00 : f32
    %108 = vector.broadcast %cst_67 : f32 to vector<12x192xf32>
    %109 = arith.maximumf %107, %108 : vector<12x192xf32>
    %cst_68 = arith.constant dense<0.000000e+00> : vector<192xf32>
    %110 = vector.multi_reduction <add>, %109, %cst_68 [0] : vector<12x192xf32> to vector<192xf32>
    %111 = vector.shape_cast %110 : vector<192xf32> to vector<1x192xf32>
    %cst_69 = arith.constant 1.200000e+01 : f32
    %112 = vector.broadcast %cst_69 : f32 to vector<1x192xf32>
    %113 = arith.divf %111, %112 : vector<1x192xf32>
    %114 = arith.mulf %109, %109 : vector<12x192xf32>
    %cst_70 = arith.constant dense<0.000000e+00> : vector<192xf32>
    %115 = vector.multi_reduction <add>, %114, %cst_70 [0] : vector<12x192xf32> to vector<192xf32>
    %116 = vector.shape_cast %115 : vector<192xf32> to vector<1x192xf32>
    %cst_71 = arith.constant 1.200000e+01 : f32
    %117 = vector.broadcast %cst_71 : f32 to vector<1x192xf32>
    %118 = arith.divf %116, %117 : vector<1x192xf32>
    %119 = tpu.concatenate %113, %118 in 0 : vector<1x192xf32>, vector<1x192xf32> -> vector<2x192xf32>
    %cst_72 = arith.constant dense<0.000000e+00> : vector<2x192xf32>
    %120 = tpu.matmul %119, %77, %cst_72 {dimension_numbers = #tpu.dot_dimension_numbers<[1], [0], [0], [1], [0, 0, 1, 1], [], []>} : vector<2x192xf32>, vector<192x192xf32>, vector<2x192xf32> -> vector<2x192xf32>
    %121 = vector.extract_strided_slice %120 {offsets = [0, 0], sizes = [1, 192], strides = [1, 1]} : vector<2x192xf32> to vector<1x192xf32>
    %122 = vector.extract_strided_slice %120 {offsets = [1, 0], sizes = [1, 192], strides = [1, 1]} : vector<2x192xf32> to vector<1x192xf32>
    %123 = arith.mulf %121, %121 : vector<1x192xf32>
    %124 = arith.subf %122, %123 : vector<1x192xf32>
    %cst_73 = arith.constant 9.99999974E-6 : f32
    %125 = vector.broadcast %cst_73 : f32 to vector<1x192xf32>
    %126 = arith.addf %124, %125 : vector<1x192xf32>
    %127 = math.rsqrt %126 : vector<1x192xf32>
    %128 = vector.broadcast %121 : vector<1x192xf32> to vector<12x192xf32>
    %129 = arith.subf %109, %128 : vector<12x192xf32>
    %130 = arith.mulf %127, %78 : vector<1x192xf32>
    %131 = vector.broadcast %130 : vector<1x192xf32> to vector<12x192xf32>
    %132 = arith.mulf %129, %131 : vector<12x192xf32>
    %133 = vector.broadcast %79 : vector<1x192xf32> to vector<12x192xf32>
    %134 = arith.addf %132, %133 : vector<12x192xf32>
    %c2_i32_74 = arith.constant 2 : i32
    %135 = tpu.memref_slice %arg29[%c2_i32_74] : memref<5x!tpu.dma_semaphore, #tpu.memory_space<semaphore_mem>> -> memref<1x!tpu.dma_semaphore, #tpu.memory_space<semaphore_mem>>
    %136 = tpu.memref_squeeze %135 : memref<1x!tpu.dma_semaphore, #tpu.memory_space<semaphore_mem>> -> memref<!tpu.dma_semaphore, #tpu.memory_space<semaphore_mem>>
    tpu.wait_dma2 semaphore(%136 : memref<!tpu.dma_semaphore, #tpu.memory_space<semaphore_mem>>) src(%arg20 : memref<192x576xbf16, #tpu.memory_space<any>>) dst(%arg26 : memref<192x576xbf16, #tpu.memory_space<vmem>>)
    %c3_i32_75 = arith.constant 3 : i32
    %137 = tpu.memref_slice %arg29[%c3_i32_75] : memref<5x!tpu.dma_semaphore, #tpu.memory_space<semaphore_mem>> -> memref<1x!tpu.dma_semaphore, #tpu.memory_space<semaphore_mem>>
    %138 = tpu.memref_squeeze %137 : memref<1x!tpu.dma_semaphore, #tpu.memory_space<semaphore_mem>> -> memref<!tpu.dma_semaphore, #tpu.memory_space<semaphore_mem>>
    tpu.wait_dma2 semaphore(%138 : memref<!tpu.dma_semaphore, #tpu.memory_space<semaphore_mem>>) src(%arg21 : memref<192x192xf32, #tpu.memory_space<any>>) dst(%arg27 : memref<192x192xf32, #tpu.memory_space<vmem>>)
    %c0_76 = arith.constant 0 : index
    %c0_77 = arith.constant 0 : index
    %139 = vector.load %arg26[%c0_76, %c0_77] : memref<192x576xbf16, #tpu.memory_space<vmem>>, vector<192x576xbf16>
    %c0_78 = arith.constant 0 : index
    %c0_79 = arith.constant 0 : index
    %140 = vector.load %arg13[%c0_78, %c0_79] : memref<1x192xf32, #tpu.memory_space<vmem>>, vector<1x192xf32>
    %c0_80 = arith.constant 0 : index
    %c0_81 = arith.constant 0 : index
    %141 = vector.load %arg27[%c0_80, %c0_81] : memref<192x192xf32, #tpu.memory_space<vmem>>, vector<192x192xf32>
    %c0_82 = arith.constant 0 : index
    %c0_83 = arith.constant 0 : index
    %142 = vector.load %arg14[%c0_82, %c0_83] : memref<1x192xf32, #tpu.memory_space<vmem>>, vector<1x192xf32>
    %c0_84 = arith.constant 0 : index
    %c0_85 = arith.constant 0 : index
    %143 = vector.load %arg15[%c0_84, %c0_85] : memref<1x192xf32, #tpu.memory_space<vmem>>, vector<1x192xf32>
    %144 = arith.truncf %134 : vector<12x192xf32> to vector<12x192xbf16>
    %cst_86 = arith.constant dense<0.000000e+00> : vector<12x576xf32>
    %145 = tpu.matmul %144, %139, %cst_86 {dimension_numbers = #tpu.dot_dimension_numbers<[1], [0], [0], [1], [0, 0, 1, 1], [], []>} : vector<12x192xbf16>, vector<192x576xbf16>, vector<12x576xf32> -> vector<12x576xf32>
    %c0_87 = arith.constant 0 : index
    %c0_88 = arith.constant 0 : index
    %c0_89 = arith.constant 0 : index
    %146 = vector.load %arg12[%c0_87, %c0_88, %c0_89] : memref<3x12x12xbf16, #tpu.memory_space<vmem>>, vector<1x12x12xbf16>
    %147 = vector.shape_cast %146 : vector<1x12x12xbf16> to vector<12x12xbf16>
    %148 = vector.extract_strided_slice %145 {offsets = [0, 0], sizes = [12, 192], strides = [1, 1]} : vector<12x576xf32> to vector<12x192xf32>
    %cst_90 = arith.constant dense<0.000000e+00> : vector<12x192xf32>
    %149 = tpu.matmul %147, %148, %cst_90 {dimension_numbers = #tpu.dot_dimension_numbers<[1], [0], [0], [1], [0, 0, 1, 1], [], []>} : vector<12x12xbf16>, vector<12x192xf32>, vector<12x192xf32> -> vector<12x192xf32>
    %c1_91 = arith.constant 1 : index
    %c0_92 = arith.constant 0 : index
    %c0_93 = arith.constant 0 : index
    %150 = vector.load %arg12[%c1_91, %c0_92, %c0_93] : memref<3x12x12xbf16, #tpu.memory_space<vmem>>, vector<1x12x12xbf16>
    %151 = vector.shape_cast %150 : vector<1x12x12xbf16> to vector<12x12xbf16>
    %152 = vector.extract_strided_slice %145 {offsets = [0, 192], sizes = [12, 192], strides = [1, 1]} : vector<12x576xf32> to vector<12x192xf32>
    %cst_94 = arith.constant dense<0.000000e+00> : vector<12x192xf32>
    %153 = tpu.matmul %151, %152, %cst_94 {dimension_numbers = #tpu.dot_dimension_numbers<[1], [0], [0], [1], [0, 0, 1, 1], [], []>} : vector<12x12xbf16>, vector<12x192xf32>, vector<12x192xf32> -> vector<12x192xf32>
    %154 = arith.addf %149, %153 : vector<12x192xf32>
    %c2_95 = arith.constant 2 : index
    %c0_96 = arith.constant 0 : index
    %c0_97 = arith.constant 0 : index
    %155 = vector.load %arg12[%c2_95, %c0_96, %c0_97] : memref<3x12x12xbf16, #tpu.memory_space<vmem>>, vector<1x12x12xbf16>
    %156 = vector.shape_cast %155 : vector<1x12x12xbf16> to vector<12x12xbf16>
    %157 = vector.extract_strided_slice %145 {offsets = [0, 384], sizes = [12, 192], strides = [1, 1]} : vector<12x576xf32> to vector<12x192xf32>
    %cst_98 = arith.constant dense<0.000000e+00> : vector<12x192xf32>
    %158 = tpu.matmul %156, %157, %cst_98 {dimension_numbers = #tpu.dot_dimension_numbers<[1], [0], [0], [1], [0, 0, 1, 1], [], []>} : vector<12x12xbf16>, vector<12x192xf32>, vector<12x192xf32> -> vector<12x192xf32>
    %159 = arith.addf %154, %158 : vector<12x192xf32>
    %160 = vector.broadcast %140 : vector<1x192xf32> to vector<12x192xf32>
    %161 = arith.addf %159, %160 : vector<12x192xf32>
    %cst_99 = arith.constant 0.000000e+00 : f32
    %162 = vector.broadcast %cst_99 : f32 to vector<12x192xf32>
    %163 = arith.maximumf %161, %162 : vector<12x192xf32>
    %cst_100 = arith.constant dense<0.000000e+00> : vector<192xf32>
    %164 = vector.multi_reduction <add>, %163, %cst_100 [0] : vector<12x192xf32> to vector<192xf32>
    %165 = vector.shape_cast %164 : vector<192xf32> to vector<1x192xf32>
    %cst_101 = arith.constant 1.200000e+01 : f32
    %166 = vector.broadcast %cst_101 : f32 to vector<1x192xf32>
    %167 = arith.divf %165, %166 : vector<1x192xf32>
    %168 = arith.mulf %163, %163 : vector<12x192xf32>
    %cst_102 = arith.constant dense<0.000000e+00> : vector<192xf32>
    %169 = vector.multi_reduction <add>, %168, %cst_102 [0] : vector<12x192xf32> to vector<192xf32>
    %170 = vector.shape_cast %169 : vector<192xf32> to vector<1x192xf32>
    %cst_103 = arith.constant 1.200000e+01 : f32
    %171 = vector.broadcast %cst_103 : f32 to vector<1x192xf32>
    %172 = arith.divf %170, %171 : vector<1x192xf32>
    %173 = tpu.concatenate %167, %172 in 0 : vector<1x192xf32>, vector<1x192xf32> -> vector<2x192xf32>
    %cst_104 = arith.constant dense<0.000000e+00> : vector<2x192xf32>
    %174 = tpu.matmul %173, %141, %cst_104 {dimension_numbers = #tpu.dot_dimension_numbers<[1], [0], [0], [1], [0, 0, 1, 1], [], []>} : vector<2x192xf32>, vector<192x192xf32>, vector<2x192xf32> -> vector<2x192xf32>
    %175 = vector.extract_strided_slice %174 {offsets = [0, 0], sizes = [1, 192], strides = [1, 1]} : vector<2x192xf32> to vector<1x192xf32>
    %176 = vector.extract_strided_slice %174 {offsets = [1, 0], sizes = [1, 192], strides = [1, 1]} : vector<2x192xf32> to vector<1x192xf32>
    %177 = arith.mulf %175, %175 : vector<1x192xf32>
    %178 = arith.subf %176, %177 : vector<1x192xf32>
    %cst_105 = arith.constant 9.99999974E-6 : f32
    %179 = vector.broadcast %cst_105 : f32 to vector<1x192xf32>
    %180 = arith.addf %178, %179 : vector<1x192xf32>
    %181 = math.rsqrt %180 : vector<1x192xf32>
    %182 = vector.broadcast %175 : vector<1x192xf32> to vector<12x192xf32>
    %183 = arith.subf %163, %182 : vector<12x192xf32>
    %184 = arith.mulf %181, %142 : vector<1x192xf32>
    %185 = vector.broadcast %184 : vector<1x192xf32> to vector<12x192xf32>
    %186 = arith.mulf %183, %185 : vector<12x192xf32>
    %187 = vector.broadcast %143 : vector<1x192xf32> to vector<12x192xf32>
    %188 = arith.addf %186, %187 : vector<12x192xf32>
    %c4_i32_106 = arith.constant 4 : i32
    %189 = tpu.memref_slice %arg29[%c4_i32_106] : memref<5x!tpu.dma_semaphore, #tpu.memory_space<semaphore_mem>> -> memref<1x!tpu.dma_semaphore, #tpu.memory_space<semaphore_mem>>
    %190 = tpu.memref_squeeze %189 : memref<1x!tpu.dma_semaphore, #tpu.memory_space<semaphore_mem>> -> memref<!tpu.dma_semaphore, #tpu.memory_space<semaphore_mem>>
    tpu.wait_dma2 semaphore(%190 : memref<!tpu.dma_semaphore, #tpu.memory_space<semaphore_mem>>) src(%arg22 : memref<192x192xbf16, #tpu.memory_space<any>>) dst(%arg28 : memref<192x192xbf16, #tpu.memory_space<vmem>>)
    %191 = arith.truncf %188 : vector<12x192xf32> to vector<12x192xbf16>
    %c0_107 = arith.constant 0 : index
    %c0_108 = arith.constant 0 : index
    %192 = vector.load %arg28[%c0_107, %c0_108] : memref<192x192xbf16, #tpu.memory_space<vmem>>, vector<192x192xbf16>
    %cst_109 = arith.constant dense<0.000000e+00> : vector<12x192xf32>
    %193 = tpu.matmul %191, %192, %cst_109 {dimension_numbers = #tpu.dot_dimension_numbers<[1], [0], [0], [1], [0, 0, 1, 1], [], []>} : vector<12x192xbf16>, vector<192x192xbf16>, vector<12x192xf32> -> vector<12x192xf32>
    %c0_110 = arith.constant 0 : index
    %c0_111 = arith.constant 0 : index
    %c0_112 = arith.constant 0 : index
    %194 = vector.load %arg16[%c0_110, %c0_111, %c0_112] : memref<3x2x12xbf16, #tpu.memory_space<vmem>>, vector<1x2x12xbf16>
    %195 = vector.shape_cast %194 : vector<1x2x12xbf16> to vector<2x12xbf16>
    %196 = vector.extract_strided_slice %193 {offsets = [0, 0], sizes = [12, 64], strides = [1, 1]} : vector<12x192xf32> to vector<12x64xf32>
    %cst_113 = arith.constant dense<0.000000e+00> : vector<2x64xf32>
    %197 = tpu.matmul %195, %196, %cst_113 {dimension_numbers = #tpu.dot_dimension_numbers<[1], [0], [0], [1], [0, 0, 1, 1], [], []>} : vector<2x12xbf16>, vector<12x64xf32>, vector<2x64xf32> -> vector<2x64xf32>
    %c1_114 = arith.constant 1 : index
    %c0_115 = arith.constant 0 : index
    %c0_116 = arith.constant 0 : index
    %198 = vector.load %arg16[%c1_114, %c0_115, %c0_116] : memref<3x2x12xbf16, #tpu.memory_space<vmem>>, vector<1x2x12xbf16>
    %199 = vector.shape_cast %198 : vector<1x2x12xbf16> to vector<2x12xbf16>
    %200 = vector.extract_strided_slice %193 {offsets = [0, 64], sizes = [12, 64], strides = [1, 1]} : vector<12x192xf32> to vector<12x64xf32>
    %cst_117 = arith.constant dense<0.000000e+00> : vector<2x64xf32>
    %201 = tpu.matmul %199, %200, %cst_117 {dimension_numbers = #tpu.dot_dimension_numbers<[1], [0], [0], [1], [0, 0, 1, 1], [], []>} : vector<2x12xbf16>, vector<12x64xf32>, vector<2x64xf32> -> vector<2x64xf32>
    %202 = arith.addf %197, %201 : vector<2x64xf32>
    %c2_118 = arith.constant 2 : index
    %c0_119 = arith.constant 0 : index
    %c0_120 = arith.constant 0 : index
    %203 = vector.load %arg16[%c2_118, %c0_119, %c0_120] : memref<3x2x12xbf16, #tpu.memory_space<vmem>>, vector<1x2x12xbf16>
    %204 = vector.shape_cast %203 : vector<1x2x12xbf16> to vector<2x12xbf16>
    %205 = vector.extract_strided_slice %193 {offsets = [0, 128], sizes = [12, 64], strides = [1, 1]} : vector<12x192xf32> to vector<12x64xf32>
    %cst_121 = arith.constant dense<0.000000e+00> : vector<2x64xf32>
    %206 = tpu.matmul %204, %205, %cst_121 {dimension_numbers = #tpu.dot_dimension_numbers<[1], [0], [0], [1], [0, 0, 1, 1], [], []>} : vector<2x12xbf16>, vector<12x64xf32>, vector<2x64xf32> -> vector<2x64xf32>
    %207 = arith.addf %202, %206 : vector<2x64xf32>
    %c0_122 = arith.constant 0 : index
    %c0_123 = arith.constant 0 : index
    %208 = vector.load %arg17[%c0_122, %c0_123] : memref<1x64xf32, #tpu.memory_space<vmem>>, vector<1x64xf32>
    %209 = vector.broadcast %208 : vector<1x64xf32> to vector<2x64xf32>
    %210 = arith.addf %207, %209 : vector<2x64xf32>
    %c0_124 = arith.constant 0 : index
    %c0_125 = arith.constant 0 : index
    %211 = vector.load %arg23[%c0_124, %c0_125] : memref<2x64xf32, #tpu.memory_space<vmem>>, vector<2x64xf32>
    tpu.vector_store %arg23[%c0_124, %c0_125], %210 {strides = array<i32>} : memref<2x64xf32, #tpu.memory_space<vmem>>, vector<2x64xf32>,
    return
  }
  func.func @transform_0(%arg0: i32) -> (i32, i32) {
    %c0_i32 = arith.constant 0 : i32
    %c0_i32_0 = arith.constant 0 : i32
    %c0_i32_1 = arith.constant 0 : i32
    return %c0_i32, %c0_i32_0 : i32, i32
  }
  func.func @transform_1(%arg0: i32) -> (i32, i32, i32) {
    %c0_i32 = arith.constant 0 : i32
    %c0_i32_0 = arith.constant 0 : i32
    %c0_i32_1 = arith.constant 0 : i32
    %c0_i32_2 = arith.constant 0 : i32
    return %c0_i32, %c0_i32_0, %c0_i32_1 : i32, i32, i32
  }
  func.func @transform_2(%arg0: i32) -> (i32, i32) {
    %c0_i32 = arith.constant 0 : i32
    %c0_i32_0 = arith.constant 0 : i32
    %c0_i32_1 = arith.constant 0 : i32
    return %c0_i32, %c0_i32_0 : i32, i32
  }
  func.func @transform_3(%arg0: i32) -> (i32, i32) {
    %c0_i32 = arith.constant 0 : i32
    %c0_i32_0 = arith.constant 0 : i32
    %c0_i32_1 = arith.constant 0 : i32
    return %c0_i32, %c0_i32_0 : i32, i32
  }
  func.func @transform_4(%arg0: i32) -> (i32, i32) {
    %c0_i32 = arith.constant 0 : i32
    %c0_i32_0 = arith.constant 0 : i32
    %c0_i32_1 = arith.constant 0 : i32
    return %c0_i32, %c0_i32_0 : i32, i32
  }
  func.func @transform_5(%arg0: i32) -> (i32, i32) {
    %c0_i32 = arith.constant 0 : i32
    %c0_i32_0 = arith.constant 0 : i32
    %c0_i32_1 = arith.constant 0 : i32
    return %c0_i32, %c0_i32_0 : i32, i32
  }
  func.func @transform_6(%arg0: i32) -> (i32, i32) {
    %c0_i32 = arith.constant 0 : i32
    %c0_i32_0 = arith.constant 0 : i32
    %c0_i32_1 = arith.constant 0 : i32
    return %c0_i32, %c0_i32_0 : i32, i32
  }
  func.func @transform_7(%arg0: i32) -> (i32, i32, i32) {
    %c0_i32 = arith.constant 0 : i32
    %c0_i32_0 = arith.constant 0 : i32
    %c0_i32_1 = arith.constant 0 : i32
    %c0_i32_2 = arith.constant 0 : i32
    return %c0_i32, %c0_i32_0, %c0_i32_1 : i32, i32, i32
  }
  func.func @transform_8(%arg0: i32) -> (i32, i32) {
    %c0_i32 = arith.constant 0 : i32
    %c0_i32_0 = arith.constant 0 : i32
    %c0_i32_1 = arith.constant 0 : i32
    return %c0_i32, %c0_i32_0 : i32, i32
  }
  func.func @transform_9(%arg0: i32) -> (i32, i32) {
    %c0_i32 = arith.constant 0 : i32
    %c0_i32_0 = arith.constant 0 : i32
    %c0_i32_1 = arith.constant 0 : i32
    return %c0_i32, %c0_i32_0 : i32, i32
  }
  func.func @transform_10(%arg0: i32) -> (i32, i32) {
    %c0_i32 = arith.constant 0 : i32
    %c0_i32_0 = arith.constant 0 : i32
    %c0_i32_1 = arith.constant 0 : i32
    return %c0_i32, %c0_i32_0 : i32, i32
  }
  func.func @transform_11(%arg0: i32) -> (i32, i32, i32) {
    %c0_i32 = arith.constant 0 : i32
    %c0_i32_0 = arith.constant 0 : i32
    %c0_i32_1 = arith.constant 0 : i32
    %c0_i32_2 = arith.constant 0 : i32
    return %c0_i32, %c0_i32_0, %c0_i32_1 : i32, i32, i32
  }
  func.func @transform_12(%arg0: i32) -> (i32, i32) {
    %c0_i32 = arith.constant 0 : i32
    %c0_i32_0 = arith.constant 0 : i32
    %c0_i32_1 = arith.constant 0 : i32
    return %c0_i32, %c0_i32_0 : i32, i32
  }
  func.func @transform_13(%arg0: i32) -> (i32, i32) {
    %c0_i32 = arith.constant 0 : i32
    %c0_i32_0 = arith.constant 0 : i32
    %c0_i32_1 = arith.constant 0 : i32
    return %c0_i32, %c0_i32_0 : i32, i32
  }
  func.func @transform_14(%arg0: i32) -> (i32, i32) {
    %c0_i32 = arith.constant 0 : i32
    %c0_i32_0 = arith.constant 0 : i32
    %c0_i32_1 = arith.constant 0 : i32
    return %c0_i32, %c0_i32_0 : i32, i32
  }
  func.func @transform_15(%arg0: i32) -> (i32, i32, i32) {
    %c0_i32 = arith.constant 0 : i32
    %c0_i32_0 = arith.constant 0 : i32
    %c0_i32_1 = arith.constant 0 : i32
    %c0_i32_2 = arith.constant 0 : i32
    return %c0_i32, %c0_i32_0, %c0_i32_1 : i32, i32, i32
  }
  func.func @transform_16(%arg0: i32) -> (i32, i32) {
    %c0_i32 = arith.constant 0 : i32
    %c0_i32_0 = arith.constant 0 : i32
    %c0_i32_1 = arith.constant 0 : i32
    return %c0_i32, %c0_i32_0 : i32, i32
  }
  func.func @transform_22(%arg0: i32) -> (i32, i32) {
    %c0_i32 = arith.constant 0 : i32
    %c0_i32_0 = arith.constant 0 : i32
    %c0_i32_1 = arith.constant 0 : i32
    return %c0_i32, %c0_i32_0 : i32, i32
  }
}

</mosaic_0001>

<llo_original>
// kernel: menet5_forward.1
$region0: #{menet5_forward.1}
  #allocation0 [shape = 'u32[]', space=smem, size = 0x4, offset = 0x4, fixed_abs, tag = 'smem constant byte address 0x4 - core index']
  #allocation1 [shape = 'u32[144,128]{1,0:T(1,128)}', space=vmem, size = 0x12000, scoped, tag = 'internal scratch']
  #allocation2 [shape = 'bf16[192,960]{1,0:T(8,128)(2,1)}', space=vmem, size = 0x60000, scoped, tag = 'scratch operand']
  #allocation3 [shape = 'f32[192,192]{1,0:T(8,128)}', space=vmem, size = 0x30000, scoped, tag = 'scratch operand']
  #allocation4 [shape = 'bf16[192,576]{1,0:T(8,128)(2,1)}', space=vmem, size = 0x3c000, scoped, tag = 'scratch operand']
  #allocation5 [shape = 'f32[192,192]{1,0:T(8,128)}', space=vmem, size = 0x30000, scoped, tag = 'scratch operand']
  #allocation6 [shape = 'bf16[192,192]{1,0:T(8,128)(2,1)}', space=vmem, size = 0x18000, scoped, tag = 'scratch operand']
  #allocation7 [shape = 's32[5]{0}', space=sflag, size = 0x14, scoped, tag = 'scratch operand']
  #allocation24 [shape = 's32[]', space=sflag, size = 0x4, offset = 0, fixed_abs, tag = 'sflag constant byte address 0x0 - dummy sync flag']
  #allocation25 [shape = 's32[]', space=sflag, size = 0x4, offset = 0, fixed_abs, tag = 'sflag constant byte address 0x0 - dummy sync flag']
  #allocation26 [shape = 'u32[]', space=smem, size = 0x4, offset = 0x44, fixed_abs, tag = 'smem constant byte address 0x44 - assertion arg 0']
  #allocation27 [shape = 'u32[]', space=smem, size = 0x4, offset = 0x48, fixed_abs, tag = 'smem constant byte address 0x48 - assertion arg 1']
  #allocation28 [shape = 's32[]', space=sflag, size = 0x4, offset = 0, fixed_abs, tag = 'sflag constant byte address 0x0 - dummy sync flag']
  #allocation29 [shape = 's32[]', space=sflag, size = 0x4, offset = 0, fixed_abs, tag = 'sflag constant byte address 0x0 - dummy sync flag']
  #allocation30 [shape = 's32[]', space=sflag, size = 0x4, offset = 0, fixed_abs, tag = 'sflag constant byte address 0x0 - dummy sync flag']
  #allocation31 [shape = 's32[]', space=sflag, size = 0x4, offset = 0, fixed_abs, tag = 'sflag constant byte address 0x0 - dummy sync flag']
  #allocation32 [shape = 's32[]', space=sflag, size = 0x4, offset = 0, fixed_abs, tag = 'sflag constant byte address 0x0 - dummy sync flag']
  #allocation33 [shape = 's32[]', space=sflag, size = 0x4, offset = 0, fixed_abs, tag = 'sflag constant byte address 0x0 - dummy sync flag']
  #allocation34 [shape = 's32[]', space=sflag, size = 0x4, offset = 0, fixed_abs, tag = 'sflag constant byte address 0x0 - dummy sync flag']
  #allocation35 [shape = 's32[]', space=sflag, size = 0x4, offset = 0, fixed_abs, tag = 'sflag constant byte address 0x0 - dummy sync flag']
  %s0 = inlined_call_operand.hbm [shape: f32[48,24], index: 0, kind: input, shape index: {}]
  %s1 = inlined_call_operand.hbm [shape: bf16[5,24,48], index: 1, kind: input, shape index: {}]
  %s2 = inlined_call_operand.hbm [shape: bf16[24,960], index: 2, kind: input, shape index: {}]
  %s3 = inlined_call_operand.vmem [shape: f32[1,192], index: 3, kind: input, shape index: {}]
  %s4 = inlined_call_operand.hbm [shape: f32[192,192], index: 4, kind: input, shape index: {}]
  %s5 = inlined_call_operand.vmem [shape: f32[1,192], index: 5, kind: input, shape index: {}]
  %s6 = inlined_call_operand.hbm [shape: f32[1,192], index: 6, kind: input, shape index: {}]
  %s7 = inlined_call_operand.hbm [shape: bf16[5,12,24], index: 7, kind: input, shape index: {}]
  %s8 = inlined_call_operand.vmem [shape: f32[1,192], index: 8, kind: input, shape index: {}]
  %s9 = inlined_call_operand.vmem [shape: f32[1,192], index: 9, kind: input, shape index: {}]
  %s10 = inlined_call_operand.hbm [shape: f32[1,192], index: 10, kind: input, shape index: {}]
  %s11 = inlined_call_operand.vmem [shape: bf16[3,12,12], index: 11, kind: input, shape index: {}]
  %s12 = inlined_call_operand.hbm [shape: f32[1,192], index: 12, kind: input, shape index: {}]
  %s13 = inlined_call_operand.vmem [shape: f32[1,192], index: 13, kind: input, shape index: {}]
  %s14 = inlined_call_operand.hbm [shape: f32[1,192], index: 14, kind: input, shape index: {}]
  %s15 = inlined_call_operand.vmem [shape: bf16[3,2,12], index: 15, kind: input, shape index: {}]
  %s16 = inlined_call_operand.vmem [shape: f32[1,64], index: 16, kind: input, shape index: {}]
  %s17 = inlined_call_operand.hbm [shape: bf16[192,960], index: 17, kind: input, shape index: {}]
  %s18 = inlined_call_operand.hbm [shape: f32[192,192], index: 18, kind: input, shape index: {}]
  %s19 = inlined_call_operand.hbm [shape: bf16[192,576], index: 19, kind: input, shape index: {}]
  %s20 = inlined_call_operand.hbm [shape: f32[192,192], index: 20, kind: input, shape index: {}]
  %s21 = inlined_call_operand.hbm [shape: bf16[192,192], index: 21, kind: input, shape index: {}]
  %s22 = inlined_call_operand.hbm [shape: f32[2,64], index: 22, kind: output, shape index: {}]
  %s23 = sld [smem:[#allocation0]]
  $region134: #{menet5_forward.1} parent=0
    _
  %s25 = ssub.s32 1, %s23
  %s26 = scalar_select 0, %s25, %s23
  $region1: #{menet5_forward.1} parent=0
    #allocation8 [shape = 'u8[24576]{0}', space=vmem, size = 0x6000, scoped, tag = 'input window, operand 0, single buffered']
    #allocation9 [shape = 's32[1]{0}', space=sflag, size = 0x4, scoped, tag = 'scoped memory for menet5_forward.1']
    #allocation10 [shape = 's32[1]{0}', space=sflag, size = 0x4, scoped, tag = 'scoped memory for menet5_forward.1']
    #allocation11 [shape = 'u8[30720]{0}', space=vmem, size = 0x7800, scoped, tag = 'input window, operand 1, single buffered']
    #allocation12 [shape = 's32[1]{0}', space=sflag, size = 0x4, scoped, tag = 'scoped memory for menet5_forward.1']
    #allocation13 [shape = 'u8[49152]{0}', space=vmem, size = 0xc000, scoped, tag = 'input window, operand 2, single buffered']
    #allocation14 [shape = 'u8[196608]{0}', space=vmem, size = 0x30000, scoped, tag = 'input window, operand 4, single buffered']
    #allocation15 [shape = 's32[1]{0}', space=sflag, size = 0x4, scoped, tag = 'scoped memory for menet5_forward.1']
    #allocation16 [shape = 'u8[1024]{0}', space=vmem, size = 0x400, scoped, tag = 'input window, operand 6, single buffered']
    #allocation17 [shape = 'u8[20480]{0}', space=vmem, size = 0x5000, scoped, tag = 'input window, operand 7, single buffered']
    #allocation18 [shape = 's32[1]{0}', space=sflag, size = 0x4, scoped, tag = 'scoped memory for menet5_forward.1']
    #allocation19 [shape = 'u8[1024]{0}', space=vmem, size = 0x400, scoped, tag = 'input window, operand 10, single buffered']
    #allocation20 [shape = 'u8[1024]{0}', space=vmem, size = 0x400, scoped, tag = 'input window, operand 12, single buffered']
    #allocation21 [shape = 's32[1]{0}', space=sflag, size = 0x4, scoped, tag = 'scoped memory for menet5_forward.1']
    #allocation22 [shape = 'u8[1024]{0}', space=vmem, size = 0x400, scoped, tag = 'input window, operand 14, single buffered']
    #allocation23 [shape = 'u8[1024]{0}', space=vmem, size = 0x400, scoped, tag = 'output window, operand 0, single buffered']
    %27 = vsyncpa [#allocation9], 0
    %28 = vsyncpa [#allocation12], 0
    %29 = vsyncpa [#allocation15], 0
    %30 = vsyncpa [#allocation18], 0
    %31 = vsyncpa [#allocation21], 0
    %32 = vsyncpa [#allocation10], 0
    // Predicated region
    $region2: #{menet5_forward.1} parent=1 // pred_check
      _
    $region3: #{menet5_forward.1} parent=1 // pred_check_branch
      %34 = sbr.rel (0) target = $region5
    $region4: #{menet5_forward.1} parent=1 // pred_region
      %s36 = ssub.s32 768, 768
      %37 = vsyncadd [#allocation9], %s36
      %s38 = sshll.u32 [#allocation8], 4
      %s39 = int_to_ptr.vmem [resolvable:$true] %s38
      %44 = dma.hbm_to_vmem [thread:$0]  %s0, 768, %s39, [#allocation9], 128, 128, 8
    $region5: #{menet5_forward.1} parent=1 // pred_fallthru
      _
    // Predicated region
    $region6: #{menet5_forward.1} parent=1 // pred_check
      _
    $region7: #{menet5_forward.1} parent=1 // pred_check_branch
      %46 = sbr.rel (0) target = $region9
    $region8: #{menet5_forward.1} parent=1 // pred_region
      %s48 = ssub.s32 960, 960
      %49 = vsyncadd [#allocation12], %s48
      %s50 = sshll.u32 [#allocation11], 4
      %s51 = int_to_ptr.vmem [resolvable:$true] %s50
      %56 = dma.hbm_to_vmem [thread:$0]  %s1, 960, %s51, [#allocation12], 64, 64, 4
    $region9: #{menet5_forward.1} parent=1 // pred_fallthru
      _
    // Predicated region
    $region10: #{menet5_forward.1} parent=1 // pred_check
      _
    $region11: #{menet5_forward.1} parent=1 // pred_check_branch
      %58 = sbr.rel (0) target = $region13
    $region12: #{menet5_forward.1} parent=1 // pred_region
      %s60 = ssub.s32 1536, 1536
      %61 = vsyncadd [#allocation12], %s60
      %s62 = sshll.u32 [#allocation13], 4
      %s63 = int_to_ptr.vmem [resolvable:$true] %s62
      %68 = dma.hbm_to_vmem [thread:$0]  %s2, 1536, %s63, [#allocation12], 512, 512, 32
    $region13: #{menet5_forward.1} parent=1 // pred_fallthru
      _
    // Predicated region
    $region14: #{menet5_forward.1} parent=1 // pred_check
      _
    $region15: #{menet5_forward.1} parent=1 // pred_check_branch
      %70 = sbr.rel (0) target = $region17
    $region16: #{menet5_forward.1} parent=1 // pred_region
      _
    $region17: #{menet5_forward.1} parent=1 // pred_fallthru
      _
    // Predicated region
    $region18: #{menet5_forward.1} parent=1 // pred_check
      _
    $region19: #{menet5_forward.1} parent=1 // pred_check_branch
      %72 = sbr.rel (0) target = $region21
    $region20: #{menet5_forward.1} parent=1 // pred_region
      %s74 = ssub.s32 6144, 6144
      %75 = vsyncadd [#allocation15], %s74
      %s76 = sshll.u32 [#allocation14], 4
      %s77 = int_to_ptr.vmem [resolvable:$true] %s76
      %82 = dma.hbm_to_vmem [thread:$0]  %s4, 6144, %s77, [#allocation15], 256, 256, 16
    $region21: #{menet5_forward.1} parent=1 // pred_fallthru
      _
    // Predicated region
    $region22: #{menet5_forward.1} parent=1 // pred_check
      _
    $region23: #{menet5_forward.1} parent=1 // pred_check_branch
      %84 = sbr.rel (0) target = $region25
    $region24: #{menet5_forward.1} parent=1 // pred_region
      _
    $region25: #{menet5_forward.1} parent=1 // pred_fallthru
      _
    // Predicated region
    $region26: #{menet5_forward.1} parent=1 // pred_check
      _
    $region27: #{menet5_forward.1} parent=1 // pred_check_branch
      %86 = sbr.rel (0) target = $region29
    $region28: #{menet5_forward.1} parent=1 // pred_region
      %s88 = ssub.s32 32, 32
      %89 = vsyncadd [#allocation15], %s88
      %s91 = sshll.u32 [#allocation16], 4
      %s92 = int_to_ptr.vmem [resolvable:$true] %s91
      %94 = dma.hbm_to_vmem [thread:$0]  %s6, 32, %s92, [#allocation15]
    $region29: #{menet5_forward.1} parent=1 // pred_fallthru
      _
    // Predicated region
    $region30: #{menet5_forward.1} parent=1 // pred_check
      _
    $region31: #{menet5_forward.1} parent=1 // pred_check_branch
      %96 = sbr.rel (0) target = $region33
    $region32: #{menet5_forward.1} parent=1 // pred_region
      %s98 = ssub.s32 640, 640
      %99 = vsyncadd [#allocation18], %s98
      %s100 = sshll.u32 [#allocation17], 4
      %s101 = int_to_ptr.vmem [resolvable:$true] %s100
      %106 = dma.hbm_to_vmem [thread:$0]  %s7, 640, %s101, [#allocation18], 64, 64, 4
    $region33: #{menet5_forward.1} parent=1 // pred_fallthru
      _
    // Predicated region
    $region34: #{menet5_forward.1} parent=1 // pred_check
      _
    $region35: #{menet5_forward.1} parent=1 // pred_check_branch
      %108 = sbr.rel (0) target = $region37
    $region36: #{menet5_forward.1} parent=1 // pred_region
      _
    $region37: #{menet5_forward.1} parent=1 // pred_fallthru
      _
    // Predicated region
    $region38: #{menet5_forward.1} parent=1 // pred_check
      _
    $region39: #{menet5_forward.1} parent=1 // pred_check_branch
      %110 = sbr.rel (0) target = $region41
    $region40: #{menet5_forward.1} parent=1 // pred_region
      _
    $region41: #{menet5_forward.1} parent=1 // pred_fallthru
      _
    // Predicated region
    $region42: #{menet5_forward.1} parent=1 // pred_check
      _
    $region43: #{menet5_forward.1} parent=1 // pred_check_branch
      %112 = sbr.rel (0) target = $region45
    $region44: #{menet5_forward.1} parent=1 // pred_region
      %s114 = ssub.s32 32, 32
      %115 = vsyncadd [#allocation18], %s114
      %s117 = sshll.u32 [#allocation19], 4
      %s118 = int_to_ptr.vmem [resolvable:$true] %s117
      %120 = dma.hbm_to_vmem [thread:$0]  %s10, 32, %s118, [#allocation18]
    $region45: #{menet5_forward.1} parent=1 // pred_fallthru
      _
    // Predicated region
    $region46: #{menet5_forward.1} parent=1 // pred_check
      _
    $region47: #{menet5_forward.1} parent=1 // pred_check_branch
      %122 = sbr.rel (0) target = $region49
    $region48: #{menet5_forward.1} parent=1 // pred_region
      _
    $region49: #{menet5_forward.1} parent=1 // pred_fallthru
      _
    // Predicated region
    $region50: #{menet5_forward.1} parent=1 // pred_check
      _
    $region51: #{menet5_forward.1} parent=1 // pred_check_branch
      %124 = sbr.rel (0) target = $region53
    $region52: #{menet5_forward.1} parent=1 // pred_region
      %s126 = ssub.s32 32, 32
      %127 = vsyncadd [#allocation21], %s126
      %s129 = sshll.u32 [#allocation20], 4
      %s130 = int_to_ptr.vmem [resolvable:$true] %s129
      %132 = dma.hbm_to_vmem [thread:$0]  %s12, 32, %s130, [#allocation21]
    $region53: #{menet5_forward.1} parent=1 // pred_fallthru
      _
    // Predicated region
    $region54: #{menet5_forward.1} parent=1 // pred_check
      _
    $region55: #{menet5_forward.1} parent=1 // pred_check_branch
      %134 = sbr.rel (0) target = $region57
    $region56: #{menet5_forward.1} parent=1 // pred_region
      _
    $region57: #{menet5_forward.1} parent=1 // pred_fallthru
      _
    // Predicated region
    $region58: #{menet5_forward.1} parent=1 // pred_check
      _
    $region59: #{menet5_forward.1} parent=1 // pred_check_branch
      %136 = sbr.rel (0) target = $region61
    $region60: #{menet5_forward.1} parent=1 // pred_region
      %s138 = ssub.s32 32, 32
      %139 = vsyncadd [#allocation21], %s138
      %s141 = sshll.u32 [#allocation22], 4
      %s142 = int_to_ptr.vmem [resolvable:$true] %s141
      %144 = dma.hbm_to_vmem [thread:$0]  %s14, 32, %s142, [#allocation21]
    $region61: #{menet5_forward.1} parent=1 // pred_fallthru
      _
    // Predicated region
    $region62: #{menet5_forward.1} parent=1 // pred_check
      _
    $region63: #{menet5_forward.1} parent=1 // pred_check_branch
      %146 = sbr.rel (0) target = $region65
    $region64: #{menet5_forward.1} parent=1 // pred_region
      _
    $region65: #{menet5_forward.1} parent=1 // pred_fallthru
      _
    // Predicated region
    $region66: #{menet5_forward.1} parent=1 // pred_check
      _
    $region67: #{menet5_forward.1} parent=1 // pred_check_branch
      %148 = sbr.rel (0) target = $region69
    $region68: #{menet5_forward.1} parent=1 // pred_region
      _
    $region69: #{menet5_forward.1} parent=1 // pred_fallthru
      _
    // Predicated region
    $region70: #{menet5_forward.1} parent=1 // pred_check
      _
    $region71: #{menet5_forward.1} parent=1 // pred_check_branch
      %150 = sbr.rel (0) target = $region73
    $region72: #{menet5_forward.1} parent=1 // pred_region
      %151 = dma.done [#allocation9], 768
    $region73: #{menet5_forward.1} parent=1 // pred_fallthru
      _
    // Predicated region
    $region74: #{menet5_forward.1} parent=1 // pred_check
      _
    $region75: #{menet5_forward.1} parent=1 // pred_check_branch
      %153 = sbr.rel (0) target = $region77
    $region76: #{menet5_forward.1} parent=1 // pred_region
      %154 = dma.done [#allocation12], 960
    $region77: #{menet5_forward.1} parent=1 // pred_fallthru
      _
    // Predicated region
    $region78: #{menet5_forward.1} parent=1 // pred_check
      _
    $region79: #{menet5_forward.1} parent=1 // pred_check_branch
      %156 = sbr.rel (0) target = $region81
    $region80: #{menet5_forward.1} parent=1 // pred_region
      %157 = dma.done [#allocation12], 1536
    $region81: #{menet5_forward.1} parent=1 // pred_fallthru
      _
    // Predicated region
    $region82: #{menet5_forward.1} parent=1 // pred_check
      _
    $region83: #{menet5_forward.1} parent=1 // pred_check_branch
      %159 = sbr.rel (0) target = $region85
    $region84: #{menet5_forward.1} parent=1 // pred_region
      %160 = dma.done [#allocation15], 6144
    $region85: #{menet5_forward.1} parent=1 // pred_fallthru
      _
    // Predicated region
    $region86: #{menet5_forward.1} parent=1 // pred_check
      _
    $region87: #{menet5_forward.1} parent=1 // pred_check_branch
      %162 = sbr.rel (0) target = $region89
    $region88: #{menet5_forward.1} parent=1 // pred_region
      %163 = dma.done [#allocation15], 32
    $region89: #{menet5_forward.1} parent=1 // pred_fallthru
      _
    // Predicated region
    $region90: #{menet5_forward.1} parent=1 // pred_check
      _
    $region91: #{menet5_forward.1} parent=1 // pred_check_branch
      %165 = sbr.rel (0) target = $region93
    $region92: #{menet5_forward.1} parent=1 // pred_region
      %166 = dma.done [#allocation18], 640
    $region93: #{menet5_forward.1} parent=1 // pred_fallthru
      _
    // Predicated region
    $region94: #{menet5_forward.1} parent=1 // pred_check
      _
    $region95: #{menet5_forward.1} parent=1 // pred_check_branch
      %168 = sbr.rel (0) target = $region97
    $region96: #{menet5_forward.1} parent=1 // pred_region
      %169 = dma.done [#allocation18], 32
    $region97: #{menet5_forward.1} parent=1 // pred_fallthru
      _
    // Predicated region
    $region98: #{menet5_forward.1} parent=1 // pred_check
      _
    $region99: #{menet5_forward.1} parent=1 // pred_check_branch
      %171 = sbr.rel (0) target = $region101
    $region100: #{menet5_forward.1} parent=1 // pred_region
      %172 = dma.done [#allocation21], 32
    $region101: #{menet5_forward.1} parent=1 // pred_fallthru
      _
    // Predicated region
    $region102: #{menet5_forward.1} parent=1 // pred_check
      _
    $region103: #{menet5_forward.1} parent=1 // pred_check_branch
      %174 = sbr.rel (0) target = $region105
    $region104: #{menet5_forward.1} parent=1 // pred_region
      %175 = dma.done [#allocation21], 32
    $region105: #{menet5_forward.1} parent=1 // pred_fallthru
      _
    // Predicated region
    $region106: #{menet5_forward.1} parent=1 // pred_check
      _
    $region107: #{menet5_forward.1} parent=1 // pred_check_branch
      %178 = sbr.rel target = $region109
    $region108: #{menet5_forward.1} parent=1 // pred_region
      %179 = sst [smem:[#allocation26]] [#allocation25]
      %180 = sst [smem:[#allocation27]] [#allocation24]
    $region109: #{menet5_forward.1} parent=1 // pred_fallthru
      _
    %182 = shalt.err (0)
    %s184 = sshll.u32 [#allocation2], 4
    %s185 = int_to_ptr.vmem [resolvable:$true] %s184
    %187 = dma.hbm_to_vmem [thread:$0]  %s17, 12288, %s185, [#allocation7]
    %s188 = scalar_lea.sflag [#allocation7], 1
    // Predicated region
    $region110: #{menet5_forward.1} parent=1 // pred_check
      _
    $region111: #{menet5_forward.1} parent=1 // pred_check_branch
      %190 = sbr.rel target = $region113
    $region112: #{menet5_forward.1} parent=1 // pred_region
      %191 = sst [smem:[#allocation26]] [#allocation29]
      %192 = sst [smem:[#allocation27]] [#allocation28]
    $region113: #{menet5_forward.1} parent=1 // pred_fallthru
      _
    %194 = shalt.err (0)
    %s196 = sshll.u32 [#allocation3], 4
    %s197 = int_to_ptr.vmem [resolvable:$true] %s196
    %199 = dma.hbm_to_vmem [thread:$0]  %s18, 6144, %s197, %s188
    %s200 = scalar_lea.sflag [#allocation7], 2
    // Predicated region
    $region114: #{menet5_forward.1} parent=1 // pred_check
      _
    $region115: #{menet5_forward.1} parent=1 // pred_check_branch
      %202 = sbr.rel target = $region117
    $region116: #{menet5_forward.1} parent=1 // pred_region
      %203 = sst [smem:[#allocation26]] [#allocation31]
      %204 = sst [smem:[#allocation27]] [#allocation30]
    $region117: #{menet5_forward.1} parent=1 // pred_fallthru
      _
    %206 = shalt.err (0)
    %s208 = sshll.u32 [#allocation4], 4
    %s209 = int_to_ptr.vmem [resolvable:$true] %s208
    %211 = dma.hbm_to_vmem [thread:$0]  %s19, 7680, %s209, %s200
    %s212 = scalar_lea.sflag [#allocation7], 3
    // Predicated region
    $region118: #{menet5_forward.1} parent=1 // pred_check
      _
    $region119: #{menet5_forward.1} parent=1 // pred_check_branch
      %214 = sbr.rel target = $region121
    $region120: #{menet5_forward.1} parent=1 // pred_region
      %215 = sst [smem:[#allocation26]] [#allocation33]
      %216 = sst [smem:[#allocation27]] [#allocation32]
    $region121: #{menet5_forward.1} parent=1 // pred_fallthru
      _
    %218 = shalt.err (0)
    %s220 = sshll.u32 [#allocation5], 4
    %s221 = int_to_ptr.vmem [resolvable:$true] %s220
    %223 = dma.hbm_to_vmem [thread:$0]  %s20, 6144, %s221, %s212
    %s224 = scalar_lea.sflag [#allocation7], 4
    // Predicated region
    $region122: #{menet5_forward.1} parent=1 // pred_check
      _
    $region123: #{menet5_forward.1} parent=1 // pred_check_branch
      %226 = sbr.rel target = $region125
    $region124: #{menet5_forward.1} parent=1 // pred_region
      %227 = sst [smem:[#allocation26]] [#allocation35]
      %228 = sst [smem:[#allocation27]] [#allocation34]
    $region125: #{menet5_forward.1} parent=1 // pred_fallthru
      _
    %230 = shalt.err (0)
    %s232 = sshll.u32 [#allocation6], 4
    %s233 = int_to_ptr.vmem [resolvable:$true] %s232
    %235 = dma.hbm_to_vmem [thread:$0]  %s21, 3072, %s233, %s224
    %v236 = vld [vmem:[#allocation8] sm:$0xff]
    %v237 = vld [vmem:[#allocation8 + $0x8] sm:$0xff]
    %v238 = vld [vmem:[#allocation8 + $0x10] sm:$0xff]
    %v239 = vld [vmem:[#allocation8 + $0x18] sm:$0xff]
    %v240 = vld [vmem:[#allocation8 + $0x20] sm:$0xff]
    %v241 = vld [vmem:[#allocation8 + $0x28] sm:$0xff]
    %v242 = vld [vmem:[#allocation13] sm:$0xff]
    %v243 = vld [vmem:[#allocation13 + $0x8] sm:$0xff]
    %v244 = vld [vmem:[#allocation13 + $0x10] sm:$0xff]
    %v245 = vld [vmem:[#allocation13 + $0x18] sm:$0xff]
    %v246 = vld [vmem:[#allocation13 + $0x20] sm:$0xff]
    %v247 = vld [vmem:[#allocation13 + $0x28] sm:$0xff]
    %v248 = vld [vmem:[#allocation13 + $0x30] sm:$0xff]
    %v249 = vld [vmem:[#allocation13 + $0x38] sm:$0xff]
    %v250 = vld [vmem:[#allocation13 + $0x40] sm:$0xff]
    %v251 = vld [vmem:[#allocation13 + $0x48] sm:$0xff]
    %v252 = vld [vmem:[#allocation13 + $0x50] sm:$0xff]
    %v253 = vld [vmem:[#allocation13 + $0x58] sm:$0xff]
    %v254 = vld [vmem:[%s3] sm:$0x3]
    %v255 = vld [vmem:[#allocation14] sm:$0xff]
    %v256 = vld [vmem:[#allocation14 + $0x8] sm:$0xff]
    %v257 = vld [vmem:[#allocation14 + $0x10] sm:$0xff]
    %v258 = vld [vmem:[#allocation14 + $0x18] sm:$0xff]
    %v259 = vld [vmem:[#allocation14 + $0x20] sm:$0xff]
    %v260 = vld [vmem:[#allocation14 + $0x28] sm:$0xff]
    %v261 = vld [vmem:[#allocation14 + $0x30] sm:$0xff]
    %v262 = vld [vmem:[#allocation14 + $0x38] sm:$0xff]
    %v263 = vld [vmem:[#allocation14 + $0x40] sm:$0xff]
    %v264 = vld [vmem:[#allocation14 + $0x48] sm:$0xff]
    %v265 = vld [vmem:[#allocation14 + $0x50] sm:$0xff]
    %v266 = vld [vmem:[#allocation14 + $0x58] sm:$0xff]
    %v267 = vld [vmem:[#allocation14 + $0x60] sm:$0xff]
    %v268 = vld [vmem:[#allocation14 + $0x68] sm:$0xff]
    %v269 = vld [vmem:[#allocation14 + $0x70] sm:$0xff]
    %v270 = vld [vmem:[#allocation14 + $0x78] sm:$0xff]
    %v271 = vld [vmem:[#allocation14 + $0x80] sm:$0xff]
    %v272 = vld [vmem:[#allocation14 + $0x88] sm:$0xff]
    %v273 = vld [vmem:[#allocation14 + $0x90] sm:$0xff]
    %v274 = vld [vmem:[#allocation14 + $0x98] sm:$0xff]
    %v275 = vld [vmem:[#allocation14 + $0xa0] sm:$0xff]
    %v276 = vld [vmem:[#allocation14 + $0xa8] sm:$0xff]
    %v277 = vld [vmem:[#allocation14 + $0xb0] sm:$0xff]
    %v278 = vld [vmem:[#allocation14 + $0xb8] sm:$0xff]
    %v279 = vld [vmem:[#allocation14 + $0xc0] sm:$0xff]
    %v280 = vld [vmem:[#allocation14 + $0xc8] sm:$0xff]
    %v281 = vld [vmem:[#allocation14 + $0xd0] sm:$0xff]
    %v282 = vld [vmem:[#allocation14 + $0xd8] sm:$0xff]
    %v283 = vld [vmem:[#allocation14 + $0xe0] sm:$0xff]
    %v284 = vld [vmem:[#allocation14 + $0xe8] sm:$0xff]
    %v285 = vld [vmem:[#allocation14 + $0xf0] sm:$0xff]
    %v286 = vld [vmem:[#allocation14 + $0xf8] sm:$0xff]
    %v287 = vld [vmem:[#allocation14 + $0x100] sm:$0xff]
    %v288 = vld [vmem:[#allocation14 + $0x108] sm:$0xff]
    %v289 = vld [vmem:[#allocation14 + $0x110] sm:$0xff]
    %v290 = vld [vmem:[#allocation14 + $0x118] sm:$0xff]
    %v291 = vld [vmem:[#allocation14 + $0x120] sm:$0xff]
    %v292 = vld [vmem:[#allocation14 + $0x128] sm:$0xff]
    %v293 = vld [vmem:[#allocation14 + $0x130] sm:$0xff]
    %v294 = vld [vmem:[#allocation14 + $0x138] sm:$0xff]
    %v295 = vld [vmem:[#allocation14 + $0x140] sm:$0xff]
    %v296 = vld [vmem:[#allocation14 + $0x148] sm:$0xff]
    %v297 = vld [vmem:[#allocation14 + $0x150] sm:$0xff]
    %v298 = vld [vmem:[#allocation14 + $0x158] sm:$0xff]
    %v299 = vld [vmem:[#allocation14 + $0x160] sm:$0xff]
    %v300 = vld [vmem:[#allocation14 + $0x168] sm:$0xff]
    %v301 = vld [vmem:[#allocation14 + $0x170] sm:$0xff]
    %v302 = vld [vmem:[#allocation14 + $0x178] sm:$0xff]
    %v303 = vld [vmem:[%s5] sm:$0x3]
    %v304 = vld [vmem:[#allocation16] sm:$0x3]
    %v305 = vpack.c.bf16 %v237, %v236
    %v306 = vpack.c.bf16 %v239, %v238
    %v307 = vpack.c.bf16 %v241, %v240
    %v320 = vunpack.c.l.b16 %v242
    %v321 = vunpack.c.h.b16 %v242
    %v322 = vunpack.c.l.b16 %v243
    %v323 = vunpack.c.h.b16 %v243
    %v324 = vunpack.c.l.b16 %v244
    %v325 = vunpack.c.h.b16 %v244
    %v326 = vunpack.c.l.b16 %v245
    %v327 = vunpack.c.h.b16 %v245
    %v328 = vunpack.c.l.b16 %v246
    %v329 = vunpack.c.h.b16 %v246
    %v330 = vunpack.c.l.b16 %v247
    %v331 = vunpack.c.h.b16 %v247
    %v332 = vunpack.c.l.b16 %v248
    %v333 = vunpack.c.h.b16 %v248
    %v334 = vunpack.c.l.b16 %v249
    %v335 = vunpack.c.h.b16 %v249
    %v336 = vunpack.c.l.b16 %v250
    %v337 = vunpack.c.h.b16 %v250
    %v338 = vunpack.c.l.b16 %v251
    %v339 = vunpack.c.h.b16 %v251
    %v340 = vunpack.c.l.b16 %v252
    %v341 = vunpack.c.h.b16 %v252
    %v342 = vunpack.c.l.b16 %v253
    %v343 = vunpack.c.h.b16 %v253
    %v344 = vpack.c.b16 %v328, %v320
    %v345 = vpack.c.b16 %v329, %v321
    %v346 = vpack.c.b16 %v330, %v322
    %v347 = vpack.c.b16 %v331, %v323
    %v348 = vpack.c.b16 %v332, %v324
    %v349 = vpack.c.b16 %v333, %v325
    %v350 = vpack.c.b16 %v334, %v326
    %v351 = vpack.c.b16 %v335, %v327
    %v352 = vpack.c.b16 %v336, %v336
    %v353 = vpack.c.b16 %v337, %v337
    %v354 = vpack.c.b16 %v338, %v338
    %v355 = vpack.c.b16 %v339, %v339
    %v356 = vpack.c.b16 %v340, %v340
    %v357 = vpack.c.b16 %v341, %v341
    %v358 = vpack.c.b16 %v342, %v342
    %v359 = vpack.c.b16 %v343, %v343
    %vm368 = vcmask 195584
    %v370 = vsel %vm368, %v305, 0
    %v373 = vsel %vm368, %v306, 0
    %v376 = vsel %vm368, %v307, 0
    %vm378 = vcmask 1043456
    %v380 = vsel %vm378, %v352, 0
    %v383 = vsel %vm378, %v353, 0
    %v386 = vsel %vm378, %v354, 0
    %v389 = vsel %vm378, %v355, 0
    %v392 = vsel %vm378, %v356, 0
    %v395 = vsel %vm378, %v357, 0
    %v398 = vsel %vm378, %v358, 0
    %v401 = vsel %vm378, %v359, 0
    %403 = vmatprep.subr.bf16.mxu0 0
    %404 = vmatpush1.bf16.msra.mxu0 0
    %405 = vmatprep.subr.bf16.mxu0 0
    %406 = vmatpush1.bf16.msra.mxu0 0
    %407 = vmatprep.subr.bf16.mxu0 0
    %408 = vmatpush1.bf16.msra.mxu0 0
    %409 = vmatprep.subr.bf16.mxu0 0
    %410 = vmatpush1.bf16.msra.mxu0 0
    %411 = vmatprep.subr.bf16.mxu0 0
    %412 = vmatpush1.bf16.msra.mxu0 0
    %413 = vmatprep.subr.bf16.mxu0 0
    %414 = vmatpush1.bf16.msra.mxu0 0
    %415 = vmatprep.subr.bf16.mxu0 %v383
    %416 = vmatpush1.bf16.msra.mxu0 %v380
    %417 = vmatprep.subr.bf16.mxu0 %v345
    %418 = vmatpush1.bf16.msra.mxu0 %v344
    %419 = vmatprep.subr.bf16.mxu0 0
    %420 = vmatpush2.bf16.msra.mxu0 0
    %421 = vmatprep.subr.bf16.mxu0 0
    %422 = vmatpush2.bf16.msra.mxu0 0
    %423 = vmatprep.subr.bf16.mxu0 0
    %424 = vmatpush2.bf16.msra.mxu0 0
    %425 = vmatprep.subr.bf16.mxu0 0
    %426 = vmatpush2.bf16.msra.mxu0 0
    %427 = vmatprep.subr.bf16.mxu0 0
    %428 = vmatpush2.bf16.msra.mxu0 0
    %429 = vmatprep.subr.bf16.mxu0 0
    %430 = vmatpush2.bf16.msra.mxu0 0
    %431 = vmatprep.subr.bf16.mxu0 0
    %432 = vmatpush2.bf16.msra.mxu0 0
    %433 = vmatprep.subr.bf16.mxu0 0
    %434 = vmatpush2.bf16.msra.mxu0 0
    %435 = vmatprep.mubr.bf16.mxu0 0
    %436 = vmatmul.mubr.bf16.gmra.mxu0 %v370
    %v437 = vpop.f32.mrf.mxu0
    %v438 = vadd.f32 0.0, %v437
    %v439 = vpop.f32.mrf.mxu0
    %v440 = vadd.f32 0.0, %v439
    %v441 = vpop.f32.mrf.mxu0
    %v442 = vadd.f32 0.0, %v441
    %v443 = vpop.f32.mrf.mxu0
    %v444 = vadd.f32 0.0, %v443
    %445 = vmatprep.mubr.bf16.mxu0 0
    %446 = vmatmul.mubr.bf16.gmra.mxu0 %v373
    %v447 = vpop.f32.mrf.mxu0
    %v448 = vadd.f32 0.0, %v447
    %v449 = vpop.f32.mrf.mxu0
    %v450 = vadd.f32 0.0, %v449
    %v451 = vpop.f32.mrf.mxu0
    %v452 = vadd.f32 0.0, %v451
    %v453 = vpop.f32.mrf.mxu0
    %v454 = vadd.f32 0.0, %v453
    %455 = vmatprep.mubr.bf16.mxu0 0
    %456 = vmatmul.mubr.bf16.gmra.mxu0 %v376
    %v457 = vpop.f32.mrf.mxu0
    %v458 = vadd.f32 0.0, %v457
    %v459 = vpop.f32.mrf.mxu0
    %v460 = vadd.f32 0.0, %v459
    %v461 = vpop.f32.mrf.mxu0
    %v462 = vadd.f32 0.0, %v461
    %v463 = vpop.f32.mrf.mxu0
    %v464 = vadd.f32 0.0, %v463
    %465 = vdwg.mxu0
    %466 = vmatprep.subr.bf16.mxu0 0
    %467 = vmatpush1.bf16.msra.mxu0 0
    %468 = vmatprep.subr.bf16.mxu0 0
    %469 = vmatpush1.bf16.msra.mxu0 0
    %470 = vmatprep.subr.bf16.mxu0 0
    %471 = vmatpush1.bf16.msra.mxu0 0
    %472 = vmatprep.subr.bf16.mxu0 0
    %473 = vmatpush1.bf16.msra.mxu0 0
    %474 = vmatprep.subr.bf16.mxu0 0
    %475 = vmatpush1.bf16.msra.mxu0 0
    %476 = vmatprep.subr.bf16.mxu0 0
    %477 = vmatpush1.bf16.msra.mxu0 0
    %478 = vmatprep.subr.bf16.mxu0 %v389
    %479 = vmatpush1.bf16.msra.mxu0 %v386
    %480 = vmatprep.subr.bf16.mxu0 %v347
    %481 = vmatpush1.bf16.msra.mxu0 %v346
    %482 = vmatprep.subr.bf16.mxu0 0
    %483 = vmatpush2.bf16.msra.mxu0 0
    %484 = vmatprep.subr.bf16.mxu0 0
    %485 = vmatpush2.bf16.msra.mxu0 0
    %486 = vmatprep.subr.bf16.mxu0 0
    %487 = vmatpush2.bf16.msra.mxu0 0
    %488 = vmatprep.subr.bf16.mxu0 0
    %489 = vmatpush2.bf16.msra.mxu0 0
    %490 = vmatprep.subr.bf16.mxu0 0
    %491 = vmatpush2.bf16.msra.mxu0 0
    %492 = vmatprep.subr.bf16.mxu0 0
    %493 = vmatpush2.bf16.msra.mxu0 0
    %494 = vmatprep.subr.bf16.mxu0 0
    %495 = vmatpush2.bf16.msra.mxu0 0
    %496 = vmatprep.subr.bf16.mxu0 0
    %497 = vmatpush2.bf16.msra.mxu0 0
    %498 = vmatprep.mubr.bf16.mxu0 0
    %499 = vmatmul.mubr.bf16.gmra.mxu0 %v370
    %v500 = vpop.f32.mrf.mxu0
    %v501 = vadd.f32 0.0, %v500
    %v502 = vpop.f32.mrf.mxu0
    %v503 = vadd.f32 0.0, %v502
    %v504 = vpop.f32.mrf.mxu0
    %v505 = vadd.f32 0.0, %v504
    %v506 = vpop.f32.mrf.mxu0
    %v507 = vadd.f32 0.0, %v506
    %508 = vmatprep.mubr.bf16.mxu0 0
    %509 = vmatmul.mubr.bf16.gmra.mxu0 %v373
    %v510 = vpop.f32.mrf.mxu0
    %v511 = vadd.f32 0.0, %v510
    %v512 = vpop.f32.mrf.mxu0
    %v513 = vadd.f32 0.0, %v512
    %v514 = vpop.f32.mrf.mxu0
    %v515 = vadd.f32 0.0, %v514
    %v516 = vpop.f32.mrf.mxu0
    %v517 = vadd.f32 0.0, %v516
    %518 = vmatprep.mubr.bf16.mxu0 0
    %519 = vmatmul.mubr.bf16.gmra.mxu0 %v376
    %v520 = vpop.f32.mrf.mxu0
    %v521 = vadd.f32 0.0, %v520
    %v522 = vpop.f32.mrf.mxu0
    %v523 = vadd.f32 0.0, %v522
    %v524 = vpop.f32.mrf.mxu0
    %v525 = vadd.f32 0.0, %v524
    %v526 = vpop.f32.mrf.mxu0
    %v527 = vadd.f32 0.0, %v526
    %528 = vdwg.mxu0
    %529 = vmatprep.subr.bf16.mxu0 0
    %530 = vmatpush1.bf16.msra.mxu0 0
    %531 = vmatprep.subr.bf16.mxu0 0
    %532 = vmatpush1.bf16.msra.mxu0 0
    %533 = vmatprep.subr.bf16.mxu0 0
    %534 = vmatpush1.bf16.msra.mxu0 0
    %535 = vmatprep.subr.bf16.mxu0 0
    %536 = vmatpush1.bf16.msra.mxu0 0
    %537 = vmatprep.subr.bf16.mxu0 0
    %538 = vmatpush1.bf16.msra.mxu0 0
    %539 = vmatprep.subr.bf16.mxu0 0
    %540 = vmatpush1.bf16.msra.mxu0 0
    %541 = vmatprep.subr.bf16.mxu0 %v395
    %542 = vmatpush1.bf16.msra.mxu0 %v392
    %543 = vmatprep.subr.bf16.mxu0 %v349
    %544 = vmatpush1.bf16.msra.mxu0 %v348
    %545 = vmatprep.subr.bf16.mxu0 0
    %546 = vmatpush2.bf16.msra.mxu0 0
    %547 = vmatprep.subr.bf16.mxu0 0
    %548 = vmatpush2.bf16.msra.mxu0 0
    %549 = vmatprep.subr.bf16.mxu0 0
    %550 = vmatpush2.bf16.msra.mxu0 0
    %551 = vmatprep.subr.bf16.mxu0 0
    %552 = vmatpush2.bf16.msra.mxu0 0
    %553 = vmatprep.subr.bf16.mxu0 0
    %554 = vmatpush2.bf16.msra.mxu0 0
    %555 = vmatprep.subr.bf16.mxu0 0
    %556 = vmatpush2.bf16.msra.mxu0 0
    %557 = vmatprep.subr.bf16.mxu0 0
    %558 = vmatpush2.bf16.msra.mxu0 0
    %559 = vmatprep.subr.bf16.mxu0 0
    %560 = vmatpush2.bf16.msra.mxu0 0
    %561 = vmatprep.mubr.bf16.mxu0 0
    %562 = vmatmul.mubr.bf16.gmra.mxu0 %v370
    %v563 = vpop.f32.mrf.mxu0
    %v564 = vadd.f32 0.0, %v563
    %v565 = vpop.f32.mrf.mxu0
    %v566 = vadd.f32 0.0, %v565
    %v567 = vpop.f32.mrf.mxu0
    %v568 = vadd.f32 0.0, %v567
    %v569 = vpop.f32.mrf.mxu0
    %v570 = vadd.f32 0.0, %v569
    %571 = vmatprep.mubr.bf16.mxu0 0
    %572 = vmatmul.mubr.bf16.gmra.mxu0 %v373
    %v573 = vpop.f32.mrf.mxu0
    %v574 = vadd.f32 0.0, %v573
    %v575 = vpop.f32.mrf.mxu0
    %v576 = vadd.f32 0.0, %v575
    %v577 = vpop.f32.mrf.mxu0
    %v578 = vadd.f32 0.0, %v577
    %v579 = vpop.f32.mrf.mxu0
    %v580 = vadd.f32 0.0, %v579
    %581 = vmatprep.mubr.bf16.mxu0 0
    %582 = vmatmul.mubr.bf16.gmra.mxu0 %v376
    %v583 = vpop.f32.mrf.mxu0
    %v584 = vadd.f32 0.0, %v583
    %v585 = vpop.f32.mrf.mxu0
    %v586 = vadd.f32 0.0, %v585
    %v587 = vpop.f32.mrf.mxu0
    %v588 = vadd.f32 0.0, %v587
    %v589 = vpop.f32.mrf.mxu0
    %v590 = vadd.f32 0.0, %v589
    %591 = vdwg.mxu0
    %592 = vmatprep.subr.bf16.mxu0 0
    %593 = vmatpush1.bf16.msra.mxu0 0
    %594 = vmatprep.subr.bf16.mxu0 0
    %595 = vmatpush1.bf16.msra.mxu0 0
    %596 = vmatprep.subr.bf16.mxu0 0
    %597 = vmatpush1.bf16.msra.mxu0 0
    %598 = vmatprep.subr.bf16.mxu0 0
    %599 = vmatpush1.bf16.msra.mxu0 0
    %600 = vmatprep.subr.bf16.mxu0 0
    %601 = vmatpush1.bf16.msra.mxu0 0
    %602 = vmatprep.subr.bf16.mxu0 0
    %603 = vmatpush1.bf16.msra.mxu0 0
    %604 = vmatprep.subr.bf16.mxu0 %v401
    %605 = vmatpush1.bf16.msra.mxu0 %v398
    %606 = vmatprep.subr.bf16.mxu0 %v351
    %607 = vmatpush1.bf16.msra.mxu0 %v350
    %608 = vmatprep.subr.bf16.mxu0 0
    %609 = vmatpush2.bf16.msra.mxu0 0
    %610 = vmatprep.subr.bf16.mxu0 0
    %611 = vmatpush2.bf16.msra.mxu0 0
    %612 = vmatprep.subr.bf16.mxu0 0
    %613 = vmatpush2.bf16.msra.mxu0 0
    %614 = vmatprep.subr.bf16.mxu0 0
    %615 = vmatpush2.bf16.msra.mxu0 0
    %616 = vmatprep.subr.bf16.mxu0 0
    %617 = vmatpush2.bf16.msra.mxu0 0
    %618 = vmatprep.subr.bf16.mxu0 0
    %619 = vmatpush2.bf16.msra.mxu0 0
    %620 = vmatprep.subr.bf16.mxu0 0
    %621 = vmatpush2.bf16.msra.mxu0 0
    %622 = vmatprep.subr.bf16.mxu0 0
    %623 = vmatpush2.bf16.msra.mxu0 0
    %624 = vmatprep.mubr.bf16.mxu0 0
    %625 = vmatmul.mubr.bf16.gmra.mxu0 %v370
    %v626 = vpop.f32.mrf.mxu0
    %v627 = vadd.f32 0.0, %v626
    %v628 = vpop.f32.mrf.mxu0
    %v629 = vadd.f32 0.0, %v628
    %v630 = vpop.f32.mrf.mxu0
    %v631 = vadd.f32 0.0, %v630
    %v632 = vpop.f32.mrf.mxu0
    %v633 = vadd.f32 0.0, %v632
    %634 = vmatprep.mubr.bf16.mxu0 0
    %635 = vmatmul.mubr.bf16.gmra.mxu0 %v373
    %v636 = vpop.f32.mrf.mxu0
    %v637 = vadd.f32 0.0, %v636
    %v638 = vpop.f32.mrf.mxu0
    %v639 = vadd.f32 0.0, %v638
    %v640 = vpop.f32.mrf.mxu0
    %v641 = vadd.f32 0.0, %v640
    %v642 = vpop.f32.mrf.mxu0
    %v643 = vadd.f32 0.0, %v642
    %644 = vmatprep.mubr.bf16.mxu0 0
    %645 = vmatmul.mubr.bf16.gmra.mxu0 %v376
    %v646 = vpop.f32.mrf.mxu0
    %v647 = vadd.f32 0.0, %v646
    %v648 = vpop.f32.mrf.mxu0
    %v649 = vadd.f32 0.0, %v648
    %v650 = vpop.f32.mrf.mxu0
    %v651 = vadd.f32 0.0, %v650
    %v652 = vpop.f32.mrf.mxu0
    %v653 = vadd.f32 0.0, %v652
    %654 = vdwg.mxu0
    %v655 = vld [vmem:[#allocation11] sm:$0xf]
    %v656 = vld [vmem:[#allocation11 + $0x4] sm:$0xf]
    %v657 = vld [vmem:[#allocation11 + $0x8] sm:$0xf]
    %s658 = scalar_lea.vmem [#allocation11], 12
    %v659 = vld [vmem:[%s658] sm:$0xf]
    %v660 = vld [vmem:[%s658 + $0x4] sm:$0xf]
    %v661 = vld [vmem:[%s658 + $0x8] sm:$0xf]
    %v665 = vunpack.c.l.b16 %v659
    %v666 = vunpack.c.l.b16 %v660
    %v667 = vunpack.c.l.b16 %v661
    %v668 = vpack.c.b16 %v666, %v665
    %v669 = vpack.c.b16 %v667, %v667
    %682 = vrot.lane.b32.xlu0 %v440, 64
    %v683 = vpop.permute.xlu0 %682
    %684 = vrot.lane.b32.xlu0 %v501, 64
    %v685 = vpop.permute.xlu0 %684
    %686 = vrot.lane.b32.xlu0 %v444, 64
    %v687 = vpop.permute.xlu0 %686
    %688 = vrot.lane.b32.xlu0 %v505, 64
    %v689 = vpop.permute.xlu0 %688
    %690 = vrot.lane.b32.xlu0 %v450, 64
    %v691 = vpop.permute.xlu0 %690
    %692 = vrot.lane.b32.xlu0 %v511, 64
    %v693 = vpop.permute.xlu0 %692
    %694 = vrot.lane.b32.xlu0 %v454, 64
    %v695 = vpop.permute.xlu0 %694
    %696 = vrot.lane.b32.xlu0 %v515, 64
    %v697 = vpop.permute.xlu0 %696
    %698 = vrot.lane.b32.xlu0 %v460, 64
    %v699 = vpop.permute.xlu0 %698
    %700 = vrot.lane.b32.xlu0 %v521, 64
    %v701 = vpop.permute.xlu0 %700
    %702 = vrot.lane.b32.xlu0 %v464, 64
    %v703 = vpop.permute.xlu0 %702
    %704 = vrot.lane.b32.xlu0 %v525, 64
    %v705 = vpop.permute.xlu0 %704
    %vm706 = vcmask 523264
    %v707 = vsel %vm706, %v683, %v685
    %v708 = vsel %vm706, %v687, %v689
    %v709 = vsel %vm706, %v691, %v693
    %v710 = vsel %vm706, %v695, %v697
    %v711 = vsel %vm706, %v699, %v701
    %v712 = vsel %vm706, %v703, %v705
    %vm725 = vcmask 392192
    %v727 = vsel %vm725, %v668, 0
    %v730 = vsel %vm725, %v669, 0
    %732 = vmatprep.subr.mxu0 0.0
    %733 = vmatpush1.msra.mxu0 0.0
    %734 = vmatprep.subr.mxu0 0.0
    %735 = vmatpush1.msra.mxu0 0.0
    %736 = vmatprep.subr.mxu0 0.0
    %737 = vmatpush1.msra.mxu0 0.0
    %738 = vmatprep.subr.mxu0 0.0
    %739 = vmatpush1.msra.mxu0 0.0
    %740 = vmatprep.subr.mxu0 0.0
    %741 = vmatpush1.msra.mxu0 0.0
    %742 = vmatprep.subr.mxu0 0.0
    %743 = vmatpush1.msra.mxu0 0.0
    %744 = vmatprep.subr.mxu0 0.0
    %745 = vmatpush1.msra.mxu0 0.0
    %746 = vmatprep.subr.mxu0 0.0
    %747 = vmatpush1.msra.mxu0 0.0
    %748 = vmatprep.subr.mxu0 0.0
    %749 = vmatpush1.msra.mxu0 0.0
    %750 = vmatprep.subr.mxu0 0.0
    %751 = vmatpush1.msra.mxu0 0.0
    %752 = vmatprep.subr.mxu0 %v705
    %753 = vmatpush1.msra.mxu0 %v712
    %754 = vmatprep.subr.mxu0 %v701
    %755 = vmatpush1.msra.mxu0 %v711
    %756 = vmatprep.subr.mxu0 %v697
    %757 = vmatpush1.msra.mxu0 %v710
    %758 = vmatprep.subr.mxu0 %v693
    %759 = vmatpush1.msra.mxu0 %v709
    %760 = vmatprep.subr.mxu0 %v689
    %761 = vmatpush1.msra.mxu0 %v708
    %762 = vmatprep.subr.mxu0 %v685
    %763 = vmatpush1.msra.mxu0 %v707
    %764 = vmatprep.subr.mxu0 0.0
    %765 = vmatpush2.msra.mxu0 0.0
    %766 = vmatprep.subr.mxu0 0.0
    %767 = vmatpush2.msra.mxu0 0.0
    %768 = vmatprep.subr.mxu0 0.0
    %769 = vmatpush2.msra.mxu0 0.0
    %770 = vmatprep.subr.mxu0 0.0
    %771 = vmatpush2.msra.mxu0 0.0
    %772 = vmatprep.subr.mxu0 0.0
    %773 = vmatpush2.msra.mxu0 0.0
    %774 = vmatprep.subr.mxu0 0.0
    %775 = vmatpush2.msra.mxu0 0.0
    %776 = vmatprep.subr.mxu0 0.0
    %777 = vmatpush2.msra.mxu0 0.0
    %778 = vmatprep.subr.mxu0 0.0
    %779 = vmatpush2.msra.mxu0 0.0
    %780 = vmatprep.subr.mxu0 0.0
    %781 = vmatpush2.msra.mxu0 0.0
    %782 = vmatprep.subr.mxu0 0.0
    %783 = vmatpush2.msra.mxu0 0.0
    %784 = vmatprep.subr.mxu0 0.0
    %785 = vmatpush2.msra.mxu0 0.0
    %786 = vmatprep.subr.mxu0 0.0
    %787 = vmatpush2.msra.mxu0 0.0
    %788 = vmatprep.subr.mxu0 0.0
    %789 = vmatpush2.msra.mxu0 0.0
    %790 = vmatprep.subr.mxu0 0.0
    %791 = vmatpush2.msra.mxu0 0.0
    %792 = vmatprep.subr.mxu0 0.0
    %793 = vmatpush2.msra.mxu0 0.0
    %794 = vmatprep.subr.mxu0 0.0
    %795 = vmatpush2.msra.mxu0 0.0
    %796 = vmatprep.mubr.bf16.mxu0 0
    %797 = vmatmul.mubr.bf16.gmra.mxu0 %v727
    %v798 = vpop.f32.mrf.mxu0
    %v799 = vadd.f32 0.0, %v798
    %v800 = vpop.f32.mrf.mxu0
    %v801 = vadd.f32 0.0, %v800
    %v802 = vpop.f32.mrf.mxu0
    %v803 = vadd.f32 0.0, %v802
    %v804 = vpop.f32.mrf.mxu0
    %v805 = vadd.f32 0.0, %v804
    %806 = vmatprep.mubr.bf16.mxu0 0
    %807 = vmatmul.mubr.bf16.gmra.mxu0 %v730
    %v808 = vpop.f32.mrf.mxu0
    %v809 = vadd.f32 0.0, %v808
    %v810 = vpop.f32.mrf.mxu0
    %v811 = vadd.f32 0.0, %v810
    %v812 = vpop.f32.mrf.mxu0
    %v813 = vpop.f32.mrf.mxu0
    %814 = vdwg.mxu0
    %v818 = vunpack.c.l.b16 %v655
    %v819 = vunpack.c.l.b16 %v656
    %v820 = vunpack.c.l.b16 %v657
    %v821 = vpack.c.b16 %v819, %v818
    %v822 = vpack.c.b16 %v820, %v820
    %v824 = vsel %vm725, %v821, 0
    %v827 = vsel %vm725, %v822, 0
    %829 = vmatprep.subr.mxu0 0.0
    %830 = vmatpush1.msra.mxu0 0.0
    %831 = vmatprep.subr.mxu0 0.0
    %832 = vmatpush1.msra.mxu0 0.0
    %833 = vmatprep.subr.mxu0 0.0
    %834 = vmatpush1.msra.mxu0 0.0
    %835 = vmatprep.subr.mxu0 0.0
    %836 = vmatpush1.msra.mxu0 0.0
    %837 = vmatprep.subr.mxu0 0.0
    %838 = vmatpush1.msra.mxu0 0.0
    %839 = vmatprep.subr.mxu0 0.0
    %840 = vmatpush1.msra.mxu0 0.0
    %841 = vmatprep.subr.mxu0 0.0
    %842 = vmatpush1.msra.mxu0 0.0
    %843 = vmatprep.subr.mxu0 0.0
    %844 = vmatpush1.msra.mxu0 0.0
    %845 = vmatprep.subr.mxu0 0.0
    %846 = vmatpush1.msra.mxu0 0.0
    %847 = vmatprep.subr.mxu0 0.0
    %848 = vmatpush1.msra.mxu0 0.0
    %849 = vmatprep.subr.mxu0 %v464
    %850 = vmatpush1.msra.mxu0 %v462
    %851 = vmatprep.subr.mxu0 %v460
    %852 = vmatpush1.msra.mxu0 %v458
    %853 = vmatprep.subr.mxu0 %v454
    %854 = vmatpush1.msra.mxu0 %v452
    %855 = vmatprep.subr.mxu0 %v450
    %856 = vmatpush1.msra.mxu0 %v448
    %857 = vmatprep.subr.mxu0 %v444
    %858 = vmatpush1.msra.mxu0 %v442
    %859 = vmatprep.subr.mxu0 %v440
    %860 = vmatpush1.msra.mxu0 %v438
    %861 = vmatprep.subr.mxu0 0.0
    %862 = vmatpush2.msra.mxu0 0.0
    %863 = vmatprep.subr.mxu0 0.0
    %864 = vmatpush2.msra.mxu0 0.0
    %865 = vmatprep.subr.mxu0 0.0
    %866 = vmatpush2.msra.mxu0 0.0
    %867 = vmatprep.subr.mxu0 0.0
    %868 = vmatpush2.msra.mxu0 0.0
    %869 = vmatprep.subr.mxu0 0.0
    %870 = vmatpush2.msra.mxu0 0.0
    %871 = vmatprep.subr.mxu0 0.0
    %872 = vmatpush2.msra.mxu0 0.0
    %873 = vmatprep.subr.mxu0 0.0
    %874 = vmatpush2.msra.mxu0 0.0
    %875 = vmatprep.subr.mxu0 0.0
    %876 = vmatpush2.msra.mxu0 0.0
    %877 = vmatprep.subr.mxu0 0.0
    %878 = vmatpush2.msra.mxu0 0.0
    %879 = vmatprep.subr.mxu0 0.0
    %880 = vmatpush2.msra.mxu0 0.0
    %881 = vmatprep.subr.mxu0 0.0
    %882 = vmatpush2.msra.mxu0 0.0
    %883 = vmatprep.subr.mxu0 0.0
    %884 = vmatpush2.msra.mxu0 0.0
    %885 = vmatprep.subr.mxu0 0.0
    %886 = vmatpush2.msra.mxu0 0.0
    %887 = vmatprep.subr.mxu0 0.0
    %888 = vmatpush2.msra.mxu0 0.0
    %889 = vmatprep.subr.mxu0 0.0
    %890 = vmatpush2.msra.mxu0 0.0
    %891 = vmatprep.subr.mxu0 0.0
    %892 = vmatpush2.msra.mxu0 0.0
    %893 = vmatprep.mubr.bf16.mxu0 0
    %894 = vmatmul.mubr.bf16.gmra.mxu0 %v824
    %v895 = vpop.f32.mrf.mxu0
    %v896 = vadd.f32 %v799, %v895
    %v897 = vpop.f32.mrf.mxu0
    %v898 = vadd.f32 %v801, %v897
    %v899 = vpop.f32.mrf.mxu0
    %v900 = vadd.f32 %v803, %v899
    %v901 = vpop.f32.mrf.mxu0
    %v902 = vadd.f32 %v805, %v901
    %903 = vmatprep.mubr.bf16.mxu0 0
    %904 = vmatmul.mubr.bf16.gmra.mxu0 %v827
    %v905 = vpop.f32.mrf.mxu0
    %v906 = vadd.f32 %v809, %v905
    %v907 = vpop.f32.mrf.mxu0
    %v908 = vadd.f32 %v811, %v907
    %v909 = vpop.f32.mrf.mxu0
    %v910 = vpop.f32.mrf.mxu0
    %911 = vdwg.mxu0
    %s912 = scalar_lea.vmem [#allocation11], 24
    %v913 = vld [vmem:[%s912] sm:$0xf]
    %v914 = vld [vmem:[%s912 + $0x4] sm:$0xf]
    %v915 = vld [vmem:[%s912 + $0x8] sm:$0xf]
    %v919 = vunpack.c.l.b16 %v913
    %v920 = vunpack.c.l.b16 %v914
    %v921 = vunpack.c.l.b16 %v915
    %v922 = vpack.c.b16 %v920, %v919
    %v923 = vpack.c.b16 %v921, %v921
    %v925 = vsel %vm725, %v922, 0
    %v928 = vsel %vm725, %v923, 0
    %930 = vmatprep.subr.mxu0 0.0
    %931 = vmatpush1.msra.mxu0 0.0
    %932 = vmatprep.subr.mxu0 0.0
    %933 = vmatpush1.msra.mxu0 0.0
    %934 = vmatprep.subr.mxu0 0.0
    %935 = vmatpush1.msra.mxu0 0.0
    %936 = vmatprep.subr.mxu0 0.0
    %937 = vmatpush1.msra.mxu0 0.0
    %938 = vmatprep.subr.mxu0 0.0
    %939 = vmatpush1.msra.mxu0 0.0
    %940 = vmatprep.subr.mxu0 0.0
    %941 = vmatpush1.msra.mxu0 0.0
    %942 = vmatprep.subr.mxu0 0.0
    %943 = vmatpush1.msra.mxu0 0.0
    %944 = vmatprep.subr.mxu0 0.0
    %945 = vmatpush1.msra.mxu0 0.0
    %946 = vmatprep.subr.mxu0 0.0
    %947 = vmatpush1.msra.mxu0 0.0
    %948 = vmatprep.subr.mxu0 0.0
    %949 = vmatpush1.msra.mxu0 0.0
    %950 = vmatprep.subr.mxu0 %v588
    %951 = vmatpush1.msra.mxu0 %v527
    %952 = vmatprep.subr.mxu0 %v584
    %953 = vmatpush1.msra.mxu0 %v523
    %954 = vmatprep.subr.mxu0 %v578
    %955 = vmatpush1.msra.mxu0 %v517
    %956 = vmatprep.subr.mxu0 %v574
    %957 = vmatpush1.msra.mxu0 %v513
    %958 = vmatprep.subr.mxu0 %v568
    %959 = vmatpush1.msra.mxu0 %v507
    %960 = vmatprep.subr.mxu0 %v564
    %961 = vmatpush1.msra.mxu0 %v503
    %962 = vmatprep.subr.mxu0 0.0
    %963 = vmatpush2.msra.mxu0 0.0
    %964 = vmatprep.subr.mxu0 0.0
    %965 = vmatpush2.msra.mxu0 0.0
    %966 = vmatprep.subr.mxu0 0.0
    %967 = vmatpush2.msra.mxu0 0.0
    %968 = vmatprep.subr.mxu0 0.0
    %969 = vmatpush2.msra.mxu0 0.0
    %970 = vmatprep.subr.mxu0 0.0
    %971 = vmatpush2.msra.mxu0 0.0
    %972 = vmatprep.subr.mxu0 0.0
    %973 = vmatpush2.msra.mxu0 0.0
    %974 = vmatprep.subr.mxu0 0.0
    %975 = vmatpush2.msra.mxu0 0.0
    %976 = vmatprep.subr.mxu0 0.0
    %977 = vmatpush2.msra.mxu0 0.0
    %978 = vmatprep.subr.mxu0 0.0
    %979 = vmatpush2.msra.mxu0 0.0
    %980 = vmatprep.subr.mxu0 0.0
    %981 = vmatpush2.msra.mxu0 0.0
    %982 = vmatprep.subr.mxu0 0.0
    %983 = vmatpush2.msra.mxu0 0.0
    %984 = vmatprep.subr.mxu0 0.0
    %985 = vmatpush2.msra.mxu0 0.0
    %986 = vmatprep.subr.mxu0 0.0
    %987 = vmatpush2.msra.mxu0 0.0
    %988 = vmatprep.subr.mxu0 0.0
    %989 = vmatpush2.msra.mxu0 0.0
    %990 = vmatprep.subr.mxu0 0.0
    %991 = vmatpush2.msra.mxu0 0.0
    %992 = vmatprep.subr.mxu0 0.0
    %993 = vmatpush2.msra.mxu0 0.0
    %994 = vmatprep.mubr.bf16.mxu0 0
    %995 = vmatmul.mubr.bf16.gmra.mxu0 %v925
    %v996 = vpop.f32.mrf.mxu0
    %v997 = vadd.f32 0.0, %v996
    %v998 = vpop.f32.mrf.mxu0
    %v999 = vadd.f32 0.0, %v998
    %v1000 = vpop.f32.mrf.mxu0
    %v1001 = vadd.f32 0.0, %v1000
    %v1002 = vpop.f32.mrf.mxu0
    %v1003 = vadd.f32 0.0, %v1002
    %1004 = vmatprep.mubr.bf16.mxu0 0
    %1005 = vmatmul.mubr.bf16.gmra.mxu0 %v928
    %v1006 = vpop.f32.mrf.mxu0
    %v1007 = vadd.f32 0.0, %v1006
    %v1008 = vpop.f32.mrf.mxu0
    %v1009 = vadd.f32 0.0, %v1008
    %v1010 = vpop.f32.mrf.mxu0
    %v1011 = vpop.f32.mrf.mxu0
    %1012 = vdwg.mxu0
    %v1013 = vadd.f32 %v896, %v997
    %v1014 = vadd.f32 %v898, %v999
    %v1015 = vadd.f32 %v900, %v1001
    %v1016 = vadd.f32 %v902, %v1003
    %v1017 = vadd.f32 %v906, %v1007
    %v1018 = vadd.f32 %v908, %v1009
    %s1019 = scalar_lea.vmem [#allocation11], 36
    %v1020 = vld [vmem:[%s1019] sm:$0xf]
    %v1021 = vld [vmem:[%s1019 + $0x4] sm:$0xf]
    %v1022 = vld [vmem:[%s1019 + $0x8] sm:$0xf]
    %v1026 = vunpack.c.l.b16 %v1020
    %v1027 = vunpack.c.l.b16 %v1021
    %v1028 = vunpack.c.l.b16 %v1022
    %v1029 = vpack.c.b16 %v1027, %v1026
    %v1030 = vpack.c.b16 %v1028, %v1028
    %1043 = vrot.lane.b32.xlu0 %v564, 64
    %v1044 = vpop.permute.xlu0 %1043
    %1045 = vrot.lane.b32.xlu0 %v566, 64
    %v1046 = vpop.permute.xlu0 %1045
    %1047 = vrot.lane.b32.xlu0 %v568, 64
    %v1048 = vpop.permute.xlu0 %1047
    %1049 = vrot.lane.b32.xlu0 %v570, 64
    %v1050 = vpop.permute.xlu0 %1049
    %1051 = vrot.lane.b32.xlu0 %v574, 64
    %v1052 = vpop.permute.xlu0 %1051
    %1053 = vrot.lane.b32.xlu0 %v576, 64
    %v1054 = vpop.permute.xlu0 %1053
    %1055 = vrot.lane.b32.xlu0 %v578, 64
    %v1056 = vpop.permute.xlu0 %1055
    %1057 = vrot.lane.b32.xlu0 %v580, 64
    %v1058 = vpop.permute.xlu0 %1057
    %1059 = vrot.lane.b32.xlu0 %v584, 64
    %v1060 = vpop.permute.xlu0 %1059
    %1061 = vrot.lane.b32.xlu0 %v586, 64
    %v1062 = vpop.permute.xlu0 %1061
    %1063 = vrot.lane.b32.xlu0 %v588, 64
    %v1064 = vpop.permute.xlu0 %1063
    %1065 = vrot.lane.b32.xlu0 %v590, 64
    %v1066 = vpop.permute.xlu0 %1065
    %v1067 = vsel %vm706, %v1044, %v1046
    %v1068 = vsel %vm706, %v1048, %v1050
    %v1069 = vsel %vm706, %v1052, %v1054
    %v1070 = vsel %vm706, %v1056, %v1058
    %v1071 = vsel %vm706, %v1060, %v1062
    %v1072 = vsel %vm706, %v1064, %v1066
    %v1086 = vsel %vm725, %v1029, 0
    %v1089 = vsel %vm725, %v1030, 0
    %1091 = vmatprep.subr.mxu0 0.0
    %1092 = vmatpush1.msra.mxu0 0.0
    %1093 = vmatprep.subr.mxu0 0.0
    %1094 = vmatpush1.msra.mxu0 0.0
    %1095 = vmatprep.subr.mxu0 0.0
    %1096 = vmatpush1.msra.mxu0 0.0
    %1097 = vmatprep.subr.mxu0 0.0
    %1098 = vmatpush1.msra.mxu0 0.0
    %1099 = vmatprep.subr.mxu0 0.0
    %1100 = vmatpush1.msra.mxu0 0.0
    %1101 = vmatprep.subr.mxu0 0.0
    %1102 = vmatpush1.msra.mxu0 0.0
    %1103 = vmatprep.subr.mxu0 0.0
    %1104 = vmatpush1.msra.mxu0 0.0
    %1105 = vmatprep.subr.mxu0 0.0
    %1106 = vmatpush1.msra.mxu0 0.0
    %1107 = vmatprep.subr.mxu0 0.0
    %1108 = vmatpush1.msra.mxu0 0.0
    %1109 = vmatprep.subr.mxu0 0.0
    %1110 = vmatpush1.msra.mxu0 0.0
    %1111 = vmatprep.subr.mxu0 %v1066
    %1112 = vmatpush1.msra.mxu0 %v1072
    %1113 = vmatprep.subr.mxu0 %v1062
    %1114 = vmatpush1.msra.mxu0 %v1071
    %1115 = vmatprep.subr.mxu0 %v1058
    %1116 = vmatpush1.msra.mxu0 %v1070
    %1117 = vmatprep.subr.mxu0 %v1054
    %1118 = vmatpush1.msra.mxu0 %v1069
    %1119 = vmatprep.subr.mxu0 %v1050
    %1120 = vmatpush1.msra.mxu0 %v1068
    %1121 = vmatprep.subr.mxu0 %v1046
    %1122 = vmatpush1.msra.mxu0 %v1067
    %1123 = vmatprep.subr.mxu0 0.0
    %1124 = vmatpush2.msra.mxu0 0.0
    %1125 = vmatprep.subr.mxu0 0.0
    %1126 = vmatpush2.msra.mxu0 0.0
    %1127 = vmatprep.subr.mxu0 0.0
    %1128 = vmatpush2.msra.mxu0 0.0
    %1129 = vmatprep.subr.mxu0 0.0
    %1130 = vmatpush2.msra.mxu0 0.0
    %1131 = vmatprep.subr.mxu0 0.0
    %1132 = vmatpush2.msra.mxu0 0.0
    %1133 = vmatprep.subr.mxu0 0.0
    %1134 = vmatpush2.msra.mxu0 0.0
    %1135 = vmatprep.subr.mxu0 0.0
    %1136 = vmatpush2.msra.mxu0 0.0
    %1137 = vmatprep.subr.mxu0 0.0
    %1138 = vmatpush2.msra.mxu0 0.0
    %1139 = vmatprep.subr.mxu0 0.0
    %1140 = vmatpush2.msra.mxu0 0.0
    %1141 = vmatprep.subr.mxu0 0.0
    %1142 = vmatpush2.msra.mxu0 0.0
    %1143 = vmatprep.subr.mxu0 0.0
    %1144 = vmatpush2.msra.mxu0 0.0
    %1145 = vmatprep.subr.mxu0 0.0
    %1146 = vmatpush2.msra.mxu0 0.0
    %1147 = vmatprep.subr.mxu0 0.0
    %1148 = vmatpush2.msra.mxu0 0.0
    %1149 = vmatprep.subr.mxu0 0.0
    %1150 = vmatpush2.msra.mxu0 0.0
    %1151 = vmatprep.subr.mxu0 0.0
    %1152 = vmatpush2.msra.mxu0 0.0
    %1153 = vmatprep.subr.mxu0 0.0
    %1154 = vmatpush2.msra.mxu0 0.0
    %1155 = vmatprep.mubr.bf16.mxu0 0
    %1156 = vmatmul.mubr.bf16.gmra.mxu0 %v1086
    %v1157 = vpop.f32.mrf.mxu0
    %v1158 = vadd.f32 0.0, %v1157
    %v1159 = vpop.f32.mrf.mxu0
    %v1160 = vadd.f32 0.0, %v1159
    %v1161 = vpop.f32.mrf.mxu0
    %v1162 = vadd.f32 0.0, %v1161
    %v1163 = vpop.f32.mrf.mxu0
    %v1164 = vadd.f32 0.0, %v1163
    %1165 = vmatprep.mubr.bf16.mxu0 0
    %1166 = vmatmul.mubr.bf16.gmra.mxu0 %v1089
    %v1167 = vpop.f32.mrf.mxu0
    %v1168 = vadd.f32 0.0, %v1167
    %v1169 = vpop.f32.mrf.mxu0
    %v1170 = vadd.f32 0.0, %v1169
    %v1171 = vpop.f32.mrf.mxu0
    %v1172 = vpop.f32.mrf.mxu0
    %1173 = vdwg.mxu0
    %v1174 = vadd.f32 %v1013, %v1158
    %v1175 = vadd.f32 %v1014, %v1160
    %v1176 = vadd.f32 %v1015, %v1162
    %v1177 = vadd.f32 %v1016, %v1164
    %v1178 = vadd.f32 %v1017, %v1168
    %v1179 = vadd.f32 %v1018, %v1170
    %s1180 = scalar_lea.vmem [#allocation11], 48
    %v1181 = vld [vmem:[%s1180] sm:$0xf]
    %v1182 = vld [vmem:[%s1180 + $0x4] sm:$0xf]
    %v1183 = vld [vmem:[%s1180 + $0x8] sm:$0xf]
    %v1187 = vunpack.c.l.b16 %v1181
    %v1188 = vunpack.c.l.b16 %v1182
    %v1189 = vunpack.c.l.b16 %v1183
    %v1190 = vpack.c.b16 %v1188, %v1187
    %v1191 = vpack.c.b16 %v1189, %v1189
    %v1193 = vsel %vm725, %v1190, 0
    %v1196 = vsel %vm725, %v1191, 0
    %1198 = vmatprep.subr.mxu0 0.0
    %1199 = vmatpush1.msra.mxu0 0.0
    %1200 = vmatprep.subr.mxu0 0.0
    %1201 = vmatpush1.msra.mxu0 0.0
    %1202 = vmatprep.subr.mxu0 0.0
    %1203 = vmatpush1.msra.mxu0 0.0
    %1204 = vmatprep.subr.mxu0 0.0
    %1205 = vmatpush1.msra.mxu0 0.0
    %1206 = vmatprep.subr.mxu0 0.0
    %1207 = vmatpush1.msra.mxu0 0.0
    %1208 = vmatprep.subr.mxu0 0.0
    %1209 = vmatpush1.msra.mxu0 0.0
    %1210 = vmatprep.subr.mxu0 0.0
    %1211 = vmatpush1.msra.mxu0 0.0
    %1212 = vmatprep.subr.mxu0 0.0
    %1213 = vmatpush1.msra.mxu0 0.0
    %1214 = vmatprep.subr.mxu0 0.0
    %1215 = vmatpush1.msra.mxu0 0.0
    %1216 = vmatprep.subr.mxu0 0.0
    %1217 = vmatpush1.msra.mxu0 0.0
    %1218 = vmatprep.subr.mxu0 %v653
    %1219 = vmatpush1.msra.mxu0 %v651
    %1220 = vmatprep.subr.mxu0 %v649
    %1221 = vmatpush1.msra.mxu0 %v647
    %1222 = vmatprep.subr.mxu0 %v643
    %1223 = vmatpush1.msra.mxu0 %v641
    %1224 = vmatprep.subr.mxu0 %v639
    %1225 = vmatpush1.msra.mxu0 %v637
    %1226 = vmatprep.subr.mxu0 %v633
    %1227 = vmatpush1.msra.mxu0 %v631
    %1228 = vmatprep.subr.mxu0 %v629
    %1229 = vmatpush1.msra.mxu0 %v627
    %1230 = vmatprep.subr.mxu0 0.0
    %1231 = vmatpush2.msra.mxu0 0.0
    %1232 = vmatprep.subr.mxu0 0.0
    %1233 = vmatpush2.msra.mxu0 0.0
    %1234 = vmatprep.subr.mxu0 0.0
    %1235 = vmatpush2.msra.mxu0 0.0
    %1236 = vmatprep.subr.mxu0 0.0
    %1237 = vmatpush2.msra.mxu0 0.0
    %1238 = vmatprep.subr.mxu0 0.0
    %1239 = vmatpush2.msra.mxu0 0.0
    %1240 = vmatprep.subr.mxu0 0.0
    %1241 = vmatpush2.msra.mxu0 0.0
    %1242 = vmatprep.subr.mxu0 0.0
    %1243 = vmatpush2.msra.mxu0 0.0
    %1244 = vmatprep.subr.mxu0 0.0
    %1245 = vmatpush2.msra.mxu0 0.0
    %1246 = vmatprep.subr.mxu0 0.0
    %1247 = vmatpush2.msra.mxu0 0.0
    %1248 = vmatprep.subr.mxu0 0.0
    %1249 = vmatpush2.msra.mxu0 0.0
    %1250 = vmatprep.subr.mxu0 0.0
    %1251 = vmatpush2.msra.mxu0 0.0
    %1252 = vmatprep.subr.mxu0 0.0
    %1253 = vmatpush2.msra.mxu0 0.0
    %1254 = vmatprep.subr.mxu0 0.0
    %1255 = vmatpush2.msra.mxu0 0.0
    %1256 = vmatprep.subr.mxu0 0.0
    %1257 = vmatpush2.msra.mxu0 0.0
    %1258 = vmatprep.subr.mxu0 0.0
    %1259 = vmatpush2.msra.mxu0 0.0
    %1260 = vmatprep.subr.mxu0 0.0
    %1261 = vmatpush2.msra.mxu0 0.0
    %1262 = vmatprep.mubr.bf16.mxu0 0
    %1263 = vmatmul.mubr.bf16.gmra.mxu0 %v1193
    %v1264 = vpop.f32.mrf.mxu0
    %v1265 = vadd.f32 0.0, %v1264
    %v1266 = vpop.f32.mrf.mxu0
    %v1267 = vadd.f32 0.0, %v1266
    %v1268 = vpop.f32.mrf.mxu0
    %v1269 = vadd.f32 0.0, %v1268
    %v1270 = vpop.f32.mrf.mxu0
    %v1271 = vadd.f32 0.0, %v1270
    %1272 = vmatprep.mubr.bf16.mxu0 0
    %1273 = vmatmul.mubr.bf16.gmra.mxu0 %v1196
    %v1274 = vpop.f32.mrf.mxu0
    %v1275 = vadd.f32 0.0, %v1274
    %v1276 = vpop.f32.mrf.mxu0
    %v1277 = vadd.f32 0.0, %v1276
    %v1278 = vpop.f32.mrf.mxu0
    %v1279 = vpop.f32.mrf.mxu0
    %1280 = vdwg.mxu0
    %v1281 = vadd.f32 %v1174, %v1265
    %v1282 = vadd.f32 %v1175, %v1267
    %v1283 = vadd.f32 %v1176, %v1269
    %v1284 = vadd.f32 %v1177, %v1271
    %v1285 = vadd.f32 %v1178, %v1275
    %v1286 = vadd.f32 %v1179, %v1277
    %v1288 = vlaneseq
    %v1289 = vshrl.u32 %v1288, 7
    %v1290 = vsub.s32 0, %v1289
    %v1291 = vrot.slane %v254, %v1290
    %v1292 = vlaneseq
    %v1293 = vshrl.u32 %v1292, 7
    %v1294 = vsub.s32 1, %v1293
    %v1295 = vrot.slane %v254, %v1294
    %v1298 = vadd.f32 %v1281, %v1291
    %v1299 = vadd.f32 %v1282, %v1295
    %v1300 = vadd.f32 %v1283, %v1291
    %v1301 = vadd.f32 %v1284, %v1295
    %v1302 = vadd.f32 %v1285, %v1291
    %v1303 = vadd.f32 %v1286, %v1295
    %v1304 = vmax.f32 %v1298, 0.0
    %v1305 = vmax.f32 %v1299, 0.0
    %v1306 = vmax.f32 %v1300, 0.0
    %v1307 = vmax.f32 %v1301, 0.0
    %v1308 = vmax.f32 %v1302, 0.0
    %v1309 = vmax.f32 %v1303, 0.0
    %v1310 = vadd.f32 %v1304, %v1306
    %v1311 = vadd.f32 %v1310, %v1308
    %v1312 = vrot.slane %v1311, 4
    %v1313 = vadd.f32 %v1311, %v1312
    %v1314 = vrot.slane %v1313, 2
    %v1315 = vadd.f32 %v1313, %v1314
    %v1316 = vrot.slane %v1315, 1
    %v1317 = vadd.f32 %v1315, %v1316
    %v1318 = vsel %vm706, %v1305, 0.0
    %v1319 = vsel %vm706, %v1307, 0.0
    %v1320 = vadd.f32 %v1318, %v1319
    %v1321 = vsel %vm706, %v1309, 0.0
    %v1322 = vadd.f32 %v1320, %v1321
    %v1323 = vrot.slane %v1322, 4
    %v1324 = vadd.f32 %v1322, %v1323
    %v1325 = vrot.slane %v1324, 2
    %v1326 = vadd.f32 %v1324, %v1325
    %v1327 = vrot.slane %v1326, 1
    %v1328 = vadd.f32 %v1326, %v1327
    %v1329 = vrcp.pop 24.0
    %v1330 = vmul.f32 %v1317, %v1329
    %v1331 = vmul.f32 %v1328, %v1329
    %v1332 = vmul.f32 %v1304, %v1304
    %v1333 = vmul.f32 %v1305, %v1305
    %v1334 = vmul.f32 %v1306, %v1306
    %v1335 = vmul.f32 %v1307, %v1307
    %v1336 = vmul.f32 %v1308, %v1308
    %v1337 = vmul.f32 %v1309, %v1309
    %v1338 = vadd.f32 %v1332, %v1334
    %v1339 = vadd.f32 %v1338, %v1336
    %v1340 = vrot.slane %v1339, 4
    %v1341 = vadd.f32 %v1339, %v1340
    %v1342 = vrot.slane %v1341, 2
    %v1343 = vadd.f32 %v1341, %v1342
    %v1344 = vrot.slane %v1343, 1
    %v1345 = vadd.f32 %v1343, %v1344
    %v1346 = vsel %vm706, %v1333, 0.0
    %v1347 = vsel %vm706, %v1335, 0.0
    %v1348 = vadd.f32 %v1346, %v1347
    %v1349 = vsel %vm706, %v1337, 0.0
    %v1350 = vadd.f32 %v1348, %v1349
    %v1351 = vrot.slane %v1350, 4
    %v1352 = vadd.f32 %v1350, %v1351
    %v1353 = vrot.slane %v1352, 2
    %v1354 = vadd.f32 %v1352, %v1353
    %v1355 = vrot.slane %v1354, 1
    %v1356 = vadd.f32 %v1354, %v1355
    %v1357 = vmul.f32 %v1345, %v1329
    %v1358 = vmul.f32 %v1356, %v1329
    %vm1359 = vcmask 1040384
    %v1360 = vsel %vm1359, %v1330, %v1357
    %v1361 = vsel %vm1359, %v1331, %v1358
    %v1363 = vsel %vm706, %v1361, 0
    %1365 = vmatprep.subr.mxu0 %v286
    %1366 = vmatpush1.msra.mxu0 %v285
    %1367 = vmatprep.subr.mxu0 %v284
    %1368 = vmatpush1.msra.mxu0 %v283
    %1369 = vmatprep.subr.mxu0 %v282
    %1370 = vmatpush1.msra.mxu0 %v281
    %1371 = vmatprep.subr.mxu0 %v280
    %1372 = vmatpush1.msra.mxu0 %v279
    %1373 = vmatprep.subr.mxu0 %v278
    %1374 = vmatpush1.msra.mxu0 %v277
    %1375 = vmatprep.subr.mxu0 %v276
    %1376 = vmatpush1.msra.mxu0 %v275
    %1377 = vmatprep.subr.mxu0 %v274
    %1378 = vmatpush1.msra.mxu0 %v273
    %1379 = vmatprep.subr.mxu0 %v272
    %1380 = vmatpush1.msra.mxu0 %v271
    %1381 = vmatprep.subr.mxu0 %v270
    %1382 = vmatpush1.msra.mxu0 %v269
    %1383 = vmatprep.subr.mxu0 %v268
    %1384 = vmatpush1.msra.mxu0 %v267
    %1385 = vmatprep.subr.mxu0 %v266
    %1386 = vmatpush1.msra.mxu0 %v265
    %1387 = vmatprep.subr.mxu0 %v264
    %1388 = vmatpush1.msra.mxu0 %v263
    %1389 = vmatprep.subr.mxu0 %v262
    %1390 = vmatpush1.msra.mxu0 %v261
    %1391 = vmatprep.subr.mxu0 %v260
    %1392 = vmatpush1.msra.mxu0 %v259
    %1393 = vmatprep.subr.mxu0 %v258
    %1394 = vmatpush1.msra.mxu0 %v257
    %1395 = vmatprep.subr.mxu0 %v256
    %1396 = vmatpush1.msra.mxu0 %v255
    %1397 = vmatprep.subr.mxu0 0.0
    %1398 = vmatpush2.msra.mxu0 0.0
    %1399 = vmatprep.subr.mxu0 0.0
    %1400 = vmatpush2.msra.mxu0 0.0
    %1401 = vmatprep.subr.mxu0 0.0
    %1402 = vmatpush2.msra.mxu0 0.0
    %1403 = vmatprep.subr.mxu0 0.0
    %1404 = vmatpush2.msra.mxu0 0.0
    %1405 = vmatprep.subr.mxu0 0.0
    %1406 = vmatpush2.msra.mxu0 0.0
    %1407 = vmatprep.subr.mxu0 0.0
    %1408 = vmatpush2.msra.mxu0 0.0
    %1409 = vmatprep.subr.mxu0 0.0
    %1410 = vmatpush2.msra.mxu0 0.0
    %1411 = vmatprep.subr.mxu0 0.0
    %1412 = vmatpush2.msra.mxu0 0.0
    %1413 = vmatprep.subr.mxu0 %v302
    %1414 = vmatpush2.msra.mxu0 %v301
    %1415 = vmatprep.subr.mxu0 %v300
    %1416 = vmatpush2.msra.mxu0 %v299
    %1417 = vmatprep.subr.mxu0 %v298
    %1418 = vmatpush2.msra.mxu0 %v297
    %1419 = vmatprep.subr.mxu0 %v296
    %1420 = vmatpush2.msra.mxu0 %v295
    %1421 = vmatprep.subr.mxu0 %v294
    %1422 = vmatpush2.msra.mxu0 %v293
    %1423 = vmatprep.subr.mxu0 %v292
    %1424 = vmatpush2.msra.mxu0 %v291
    %1425 = vmatprep.subr.mxu0 %v290
    %1426 = vmatpush2.msra.mxu0 %v289
    %1427 = vmatprep.subr.mxu0 %v288
    %1428 = vmatpush2.msra.mxu0 %v287
    %1429 = vmatprep.mubr.f32.mxu0 %v1363
    %1430 = vmatmul.mubr.f32.gmra.mxu0 %v1360
    %v1431 = vpop.f32.mrf.mxu0
    %v1432 = vadd.f32 0.0, %v1431
    %v1433 = vpop.f32.mrf.mxu0
    %v1434 = vadd.f32 0.0, %v1433
    %1435 = vdwg.mxu0
    %v1436 = vmul.f32 %v1432, %v1432
    %v1437 = vmul.f32 %v1434, %v1434
    %v1440 = vrot.slane %v1436, 7
    %v1441 = vrot.slane %v1437, 7
    %v1444 = vsub.f32 %v1432, %v1440
    %v1445 = vsub.f32 %v1434, %v1441
    %v1446 = vadd.f32 %v1444, 1e-05
    %v1447 = vadd.f32 %v1445, 1e-05
    %v1448 = vrsqrt.pop %v1446
    %v1449 = vrsqrt.pop %v1447
    %v1450 = vlaneseq
    %v1451 = vshrl.u32 %v1450, 7
    %v1452 = vsub.s32 0, %v1451
    %v1453 = vrot.slane %v1432, %v1452
    %v1454 = vlaneseq
    %v1455 = vshrl.u32 %v1454, 7
    %v1456 = vsub.s32 0, %v1455
    %v1457 = vrot.slane %v1434, %v1456
    %v1458 = vsub.f32 %v1304, %v1453
    %v1459 = vsub.f32 %v1305, %v1457
    %v1460 = vsub.f32 %v1306, %v1453
    %v1461 = vsub.f32 %v1307, %v1457
    %v1462 = vsub.f32 %v1308, %v1453
    %v1463 = vsub.f32 %v1309, %v1457
    %v1465 = vlaneseq
    %v1466 = vshrl.u32 %v1465, 7
    %v1467 = vsub.s32 0, %v1466
    %v1468 = vrot.slane %v303, %v1467
    %v1469 = vlaneseq
    %v1470 = vshrl.u32 %v1469, 7
    %v1471 = vsub.s32 1, %v1470
    %v1472 = vrot.slane %v303, %v1471
    %v1475 = vmul.f32 %v1448, %v1468
    %v1476 = vmul.f32 %v1449, %v1472
    %v1477 = vlaneseq
    %v1478 = vshrl.u32 %v1477, 7
    %v1479 = vsub.s32 1, %v1478
    %v1480 = vrot.slane %v1475, %v1479
    %v1481 = vlaneseq
    %v1482 = vshrl.u32 %v1481, 7
    %v1483 = vsub.s32 1, %v1482
    %v1484 = vrot.slane %v1476, %v1483
    %v1485 = vmul.f32 %v1458, %v1480
    %v1486 = vmul.f32 %v1459, %v1484
    %v1487 = vmul.f32 %v1460, %v1480
    %v1488 = vmul.f32 %v1461, %v1484
    %v1489 = vmul.f32 %v1462, %v1480
    %v1490 = vmul.f32 %v1463, %v1484
    %v1492 = vlaneseq
    %v1493 = vshrl.u32 %v1492, 7
    %v1494 = vsub.s32 0, %v1493
    %v1495 = vrot.slane %v304, %v1494
    %v1496 = vlaneseq
    %v1497 = vshrl.u32 %v1496, 7
    %v1498 = vsub.s32 1, %v1497
    %v1499 = vrot.slane %v304, %v1498
    %v1502 = vadd.f32 %v1485, %v1495
    %v1503 = vadd.f32 %v1486, %v1499
    %v1504 = vadd.f32 %v1487, %v1495
    %v1505 = vadd.f32 %v1488, %v1499
    %v1506 = vadd.f32 %v1489, %v1495
    %v1507 = vadd.f32 %v1490, %v1499
    %s1508 = smul.u32 4, 24
    %s1509 = smul.u32 %s1508, 8
    %s1510 = sshll.u32 %s1509, 4
    %1511 = dma.done [#allocation7], %s1510
    %s1512 = smul.u32 8, 24
    %s1513 = smul.u32 %s1512, 2
    %s1514 = sshll.u32 %s1513, 4
    %1515 = dma.done %s188, %s1514
    %v1516 = vld [vmem:[#allocation2] sm:$0xff]
    %v1517 = vld [vmem:[#allocation2 + $0x8] sm:$0xff]
    %v1518 = vld [vmem:[#allocation2 + $0x10] sm:$0xff]
    %v1519 = vld [vmem:[#allocation2 + $0x18] sm:$0xff]
    %v1520 = vld [vmem:[#allocation2 + $0x20] sm:$0xff]
    %v1521 = vld [vmem:[#allocation2 + $0x28] sm:$0xff]
    %v1522 = vld [vmem:[#allocation2 + $0x30] sm:$0xff]
    %v1523 = vld [vmem:[#allocation2 + $0x38] sm:$0xff]
    %v1524 = vld [vmem:[#allocation2 + $0x40] sm:$0xff]
    %v1525 = vld [vmem:[#allocation2 + $0x48] sm:$0xff]
    %v1526 = vld [vmem:[#allocation2 + $0x50] sm:$0xff]
    %v1527 = vld [vmem:[#allocation2 + $0x58] sm:$0xff]
    %v1528 = vld [vmem:[#allocation2 + $0x60] sm:$0xff]
    %v1529 = vld [vmem:[#allocation2 + $0x68] sm:$0xff]
    %v1530 = vld [vmem:[#allocation2 + $0x70] sm:$0xff]
    %v1531 = vld [vmem:[#allocation2 + $0x78] sm:$0xff]
    %v1532 = vld [vmem:[#allocation2 + $0x80] sm:$0xff]
    %v1533 = vld [vmem:[#allocation2 + $0x88] sm:$0xff]
    %v1534 = vld [vmem:[#allocation2 + $0x90] sm:$0xff]
    %v1535 = vld [vmem:[#allocation2 + $0x98] sm:$0xff]
    %v1536 = vld [vmem:[#allocation2 + $0xa0] sm:$0xff]
    %v1537 = vld [vmem:[#allocation2 + $0xa8] sm:$0xff]
    %v1538 = vld [vmem:[#allocation2 + $0xb0] sm:$0xff]
    %v1539 = vld [vmem:[#allocation2 + $0xb8] sm:$0xff]
    %v1540 = vld [vmem:[#allocation2 + $0xc0] sm:$0xff]
    %v1541 = vld [vmem:[#allocation2 + $0xc8] sm:$0xff]
    %v1542 = vld [vmem:[#allocation2 + $0xd0] sm:$0xff]
    %v1543 = vld [vmem:[#allocation2 + $0xd8] sm:$0xff]
    %v1544 = vld [vmem:[#allocation2 + $0xe0] sm:$0xff]
    %v1545 = vld [vmem:[#allocation2 + $0xe8] sm:$0xff]
    %v1546 = vld [vmem:[#allocation2 + $0xf0] sm:$0xff]
    %v1547 = vld [vmem:[#allocation2 + $0xf8] sm:$0xff]
    %v1548 = vld [vmem:[#allocation2 + $0x100] sm:$0xff]
    %v1549 = vld [vmem:[#allocation2 + $0x108] sm:$0xff]
    %v1550 = vld [vmem:[#allocation2 + $0x110] sm:$0xff]
    %v1551 = vld [vmem:[#allocation2 + $0x118] sm:$0xff]
    %v1552 = vld [vmem:[#allocation2 + $0x120] sm:$0xff]
    %v1553 = vld [vmem:[#allocation2 + $0x128] sm:$0xff]
    %v1554 = vld [vmem:[#allocation2 + $0x130] sm:$0xff]
    %v1555 = vld [vmem:[#allocation2 + $0x138] sm:$0xff]
    %v1556 = vld [vmem:[#allocation2 + $0x140] sm:$0xff]
    %v1557 = vld [vmem:[#allocation2 + $0x148] sm:$0xff]
    %v1558 = vld [vmem:[#allocation2 + $0x150] sm:$0xff]
    %v1559 = vld [vmem:[#allocation2 + $0x158] sm:$0xff]
    %v1560 = vld [vmem:[#allocation2 + $0x160] sm:$0xff]
    %v1561 = vld [vmem:[#allocation2 + $0x168] sm:$0xff]
    %v1562 = vld [vmem:[#allocation2 + $0x170] sm:$0xff]
    %v1563 = vld [vmem:[#allocation2 + $0x178] sm:$0xff]
    %v1564 = vld [vmem:[#allocation2 + $0x180] sm:$0xff]
    %v1565 = vld [vmem:[#allocation2 + $0x188] sm:$0xff]
    %v1566 = vld [vmem:[#allocation2 + $0x190] sm:$0xff]
    %v1567 = vld [vmem:[#allocation2 + $0x198] sm:$0xff]
    %v1568 = vld [vmem:[#allocation2 + $0x1a0] sm:$0xff]
    %v1569 = vld [vmem:[#allocation2 + $0x1a8] sm:$0xff]
    %v1570 = vld [vmem:[#allocation2 + $0x1b0] sm:$0xff]
    %v1571 = vld [vmem:[#allocation2 + $0x1b8] sm:$0xff]
    %v1572 = vld [vmem:[#allocation2 + $0x1c0] sm:$0xff]
    %v1573 = vld [vmem:[#allocation2 + $0x1c8] sm:$0xff]
    %v1574 = vld [vmem:[#allocation2 + $0x1d0] sm:$0xff]
    %v1575 = vld [vmem:[#allocation2 + $0x1d8] sm:$0xff]
    %v1576 = vld [vmem:[#allocation2 + $0x1e0] sm:$0xff]
    %v1577 = vld [vmem:[#allocation2 + $0x1e8] sm:$0xff]
    %v1578 = vld [vmem:[#allocation2 + $0x1f0] sm:$0xff]
    %v1579 = vld [vmem:[#allocation2 + $0x1f8] sm:$0xff]
    %v1580 = vld [vmem:[#allocation2 + $0x200] sm:$0xff]
    %v1581 = vld [vmem:[#allocation2 + $0x208] sm:$0xff]
    %v1582 = vld [vmem:[#allocation2 + $0x210] sm:$0xff]
    %v1583 = vld [vmem:[#allocation2 + $0x218] sm:$0xff]
    %v1584 = vld [vmem:[#allocation2 + $0x220] sm:$0xff]
    %v1585 = vld [vmem:[#allocation2 + $0x228] sm:$0xff]
    %v1586 = vld [vmem:[#allocation2 + $0x230] sm:$0xff]
    %v1587 = vld [vmem:[#allocation2 + $0x238] sm:$0xff]
    %v1588 = vld [vmem:[#allocation2 + $0x240] sm:$0xff]
    %v1589 = vld [vmem:[#allocation2 + $0x248] sm:$0xff]
    %v1590 = vld [vmem:[#allocation2 + $0x250] sm:$0xff]
    %v1591 = vld [vmem:[#allocation2 + $0x258] sm:$0xff]
    %v1592 = vld [vmem:[#allocation2 + $0x260] sm:$0xff]
    %v1593 = vld [vmem:[#allocation2 + $0x268] sm:$0xff]
    %v1594 = vld [vmem:[#allocation2 + $0x270] sm:$0xff]
    %v1595 = vld [vmem:[#allocation2 + $0x278] sm:$0xff]
    %v1596 = vld [vmem:[#allocation2 + $0x280] sm:$0xff]
    %v1597 = vld [vmem:[#allocation2 + $0x288] sm:$0xff]
    %v1598 = vld [vmem:[#allocation2 + $0x290] sm:$0xff]
    %v1599 = vld [vmem:[#allocation2 + $0x298] sm:$0xff]
    %v1600 = vld [vmem:[#allocation2 + $0x2a0] sm:$0xff]
    %v1601 = vld [vmem:[#allocation2 + $0x2a8] sm:$0xff]
    %v1602 = vld [vmem:[#allocation2 + $0x2b0] sm:$0xff]
    %v1603 = vld [vmem:[#allocation2 + $0x2b8] sm:$0xff]
    %v1604 = vld [vmem:[#allocation2 + $0x2c0] sm:$0xff]
    %v1605 = vld [vmem:[#allocation2 + $0x2c8] sm:$0xff]
    %v1606 = vld [vmem:[#allocation2 + $0x2d0] sm:$0xff]
    %v1607 = vld [vmem:[#allocation2 + $0x2d8] sm:$0xff]
    %v1608 = vld [vmem:[#allocation2 + $0x2e0] sm:$0xff]
    %v1609 = vld [vmem:[#allocation2 + $0x2e8] sm:$0xff]
    %v1610 = vld [vmem:[#allocation2 + $0x2f0] sm:$0xff]
    %v1611 = vld [vmem:[#allocation2 + $0x2f8] sm:$0xff]
    %v1612 = vld [vmem:[%s8] sm:$0x3]
    %v1613 = vld [vmem:[#allocation3] sm:$0xff]
    %v1614 = vld [vmem:[#allocation3 + $0x8] sm:$0xff]
    %v1615 = vld [vmem:[#allocation3 + $0x10] sm:$0xff]
    %v1616 = vld [vmem:[#allocation3 + $0x18] sm:$0xff]
    %v1617 = vld [vmem:[#allocation3 + $0x20] sm:$0xff]
    %v1618 = vld [vmem:[#allocation3 + $0x28] sm:$0xff]
    %v1619 = vld [vmem:[#allocation3 + $0x30] sm:$0xff]
    %v1620 = vld [vmem:[#allocation3 + $0x38] sm:$0xff]
    %v1621 = vld [vmem:[#allocation3 + $0x40] sm:$0xff]
    %v1622 = vld [vmem:[#allocation3 + $0x48] sm:$0xff]
    %v1623 = vld [vmem:[#allocation3 + $0x50] sm:$0xff]
    %v1624 = vld [vmem:[#allocation3 + $0x58] sm:$0xff]
    %v1625 = vld [vmem:[#allocation3 + $0x60] sm:$0xff]
    %v1626 = vld [vmem:[#allocation3 + $0x68] sm:$0xff]
    %v1627 = vld [vmem:[#allocation3 + $0x70] sm:$0xff]
    %v1628 = vld [vmem:[#allocation3 + $0x78] sm:$0xff]
    %v1629 = vld [vmem:[#allocation3 + $0x80] sm:$0xff]
    %v1630 = vld [vmem:[#allocation3 + $0x88] sm:$0xff]
    %v1631 = vld [vmem:[#allocation3 + $0x90] sm:$0xff]
    %v1632 = vld [vmem:[#allocation3 + $0x98] sm:$0xff]
    %v1633 = vld [vmem:[#allocation3 + $0xa0] sm:$0xff]
    %v1634 = vld [vmem:[#allocation3 + $0xa8] sm:$0xff]
    %v1635 = vld [vmem:[#allocation3 + $0xb0] sm:$0xff]
    %v1636 = vld [vmem:[#allocation3 + $0xb8] sm:$0xff]
    %v1637 = vld [vmem:[#allocation3 + $0xc0] sm:$0xff]
    %v1638 = vld [vmem:[#allocation3 + $0xc8] sm:$0xff]
    %v1639 = vld [vmem:[#allocation3 + $0xd0] sm:$0xff]
    %v1640 = vld [vmem:[#allocation3 + $0xd8] sm:$0xff]
    %v1641 = vld [vmem:[#allocation3 + $0xe0] sm:$0xff]
    %v1642 = vld [vmem:[#allocation3 + $0xe8] sm:$0xff]
    %v1643 = vld [vmem:[#allocation3 + $0xf0] sm:$0xff]
    %v1644 = vld [vmem:[#allocation3 + $0xf8] sm:$0xff]
    %v1645 = vld [vmem:[#allocation3 + $0x100] sm:$0xff]
    %v1646 = vld [vmem:[#allocation3 + $0x108] sm:$0xff]
    %v1647 = vld [vmem:[#allocation3 + $0x110] sm:$0xff]
    %v1648 = vld [vmem:[#allocation3 + $0x118] sm:$0xff]
    %v1649 = vld [vmem:[#allocation3 + $0x120] sm:$0xff]
    %v1650 = vld [vmem:[#allocation3 + $0x128] sm:$0xff]
    %v1651 = vld [vmem:[#allocation3 + $0x130] sm:$0xff]
    %v1652 = vld [vmem:[#allocation3 + $0x138] sm:$0xff]
    %v1653 = vld [vmem:[#allocation3 + $0x140] sm:$0xff]
    %v1654 = vld [vmem:[#allocation3 + $0x148] sm:$0xff]
    %v1655 = vld [vmem:[#allocation3 + $0x150] sm:$0xff]
    %v1656 = vld [vmem:[#allocation3 + $0x158] sm:$0xff]
    %v1657 = vld [vmem:[#allocation3 + $0x160] sm:$0xff]
    %v1658 = vld [vmem:[#allocation3 + $0x168] sm:$0xff]
    %v1659 = vld [vmem:[#allocation3 + $0x170] sm:$0xff]
    %v1660 = vld [vmem:[#allocation3 + $0x178] sm:$0xff]
    %v1661 = vld [vmem:[%s9] sm:$0x3]
    %v1662 = vld [vmem:[#allocation19] sm:$0x3]
    %v1663 = vpack.c.bf16 %v1504, %v1502
    %v1664 = vpack.c.bf16 %v1505, %v1503
    %v1665 = vpack.c.bf16 %v1506, %v1506
    %v1666 = vpack.c.bf16 %v1507, %v1507
    %v1763 = vunpack.c.l.b16 %v1516
    %v1764 = vunpack.c.h.b16 %v1516
    %v1765 = vunpack.c.l.b16 %v1517
    %v1766 = vunpack.c.h.b16 %v1517
    %v1767 = vunpack.c.l.b16 %v1518
    %v1768 = vunpack.c.h.b16 %v1518
    %v1769 = vunpack.c.l.b16 %v1519
    %v1770 = vunpack.c.h.b16 %v1519
    %v1771 = vunpack.c.l.b16 %v1520
    %v1772 = vunpack.c.h.b16 %v1520
    %v1773 = vunpack.c.l.b16 %v1521
    %v1774 = vunpack.c.h.b16 %v1521
    %v1775 = vunpack.c.l.b16 %v1522
    %v1776 = vunpack.c.h.b16 %v1522
    %v1777 = vunpack.c.l.b16 %v1523
    %v1778 = vunpack.c.h.b16 %v1523
    %v1779 = vunpack.c.l.b16 %v1524
    %v1780 = vunpack.c.h.b16 %v1524
    %v1781 = vunpack.c.l.b16 %v1525
    %v1782 = vunpack.c.h.b16 %v1525
    %v1783 = vunpack.c.l.b16 %v1526
    %v1784 = vunpack.c.h.b16 %v1526
    %v1785 = vunpack.c.l.b16 %v1527
    %v1786 = vunpack.c.h.b16 %v1527
    %v1787 = vunpack.c.l.b16 %v1528
    %v1788 = vunpack.c.h.b16 %v1528
    %v1789 = vunpack.c.l.b16 %v1529
    %v1790 = vunpack.c.h.b16 %v1529
    %v1791 = vunpack.c.l.b16 %v1530
    %v1792 = vunpack.c.h.b16 %v1530
    %v1793 = vunpack.c.l.b16 %v1531
    %v1794 = vunpack.c.h.b16 %v1531
    %v1795 = vunpack.c.l.b16 %v1532
    %v1796 = vunpack.c.h.b16 %v1532
    %v1797 = vunpack.c.l.b16 %v1533
    %v1798 = vunpack.c.h.b16 %v1533
    %v1799 = vunpack.c.l.b16 %v1534
    %v1800 = vunpack.c.h.b16 %v1534
    %v1801 = vunpack.c.l.b16 %v1535
    %v1802 = vunpack.c.h.b16 %v1535
    %v1803 = vunpack.c.l.b16 %v1536
    %v1804 = vunpack.c.h.b16 %v1536
    %v1805 = vunpack.c.l.b16 %v1537
    %v1806 = vunpack.c.h.b16 %v1537
    %v1807 = vunpack.c.l.b16 %v1538
    %v1808 = vunpack.c.h.b16 %v1538
    %v1809 = vunpack.c.l.b16 %v1539
    %v1810 = vunpack.c.h.b16 %v1539
    %v1811 = vunpack.c.l.b16 %v1540
    %v1812 = vunpack.c.h.b16 %v1540
    %v1813 = vunpack.c.l.b16 %v1541
    %v1814 = vunpack.c.h.b16 %v1541
    %v1815 = vunpack.c.l.b16 %v1542
    %v1816 = vunpack.c.h.b16 %v1542
    %v1817 = vunpack.c.l.b16 %v1543
    %v1818 = vunpack.c.h.b16 %v1543
    %v1819 = vunpack.c.l.b16 %v1544
    %v1820 = vunpack.c.h.b16 %v1544
    %v1821 = vunpack.c.l.b16 %v1545
    %v1822 = vunpack.c.h.b16 %v1545
    %v1823 = vunpack.c.l.b16 %v1546
    %v1824 = vunpack.c.h.b16 %v1546
    %v1825 = vunpack.c.l.b16 %v1547
    %v1826 = vunpack.c.h.b16 %v1547
    %v1827 = vunpack.c.l.b16 %v1548
    %v1828 = vunpack.c.h.b16 %v1548
    %v1829 = vunpack.c.l.b16 %v1549
    %v1830 = vunpack.c.h.b16 %v1549
    %v1831 = vunpack.c.l.b16 %v1550
    %v1832 = vunpack.c.h.b16 %v1550
    %v1833 = vunpack.c.l.b16 %v1551
    %v1834 = vunpack.c.h.b16 %v1551
    %v1835 = vunpack.c.l.b16 %v1552
    %v1836 = vunpack.c.h.b16 %v1552
    %v1837 = vunpack.c.l.b16 %v1553
    %v1838 = vunpack.c.h.b16 %v1553
    %v1839 = vunpack.c.l.b16 %v1554
    %v1840 = vunpack.c.h.b16 %v1554
    %v1841 = vunpack.c.l.b16 %v1555
    %v1842 = vunpack.c.h.b16 %v1555
    %v1843 = vunpack.c.l.b16 %v1556
    %v1844 = vunpack.c.h.b16 %v1556
    %v1845 = vunpack.c.l.b16 %v1557
    %v1846 = vunpack.c.h.b16 %v1557
    %v1847 = vunpack.c.l.b16 %v1558
    %v1848 = vunpack.c.h.b16 %v1558
    %v1849 = vunpack.c.l.b16 %v1559
    %v1850 = vunpack.c.h.b16 %v1559
    %v1851 = vunpack.c.l.b16 %v1560
    %v1852 = vunpack.c.h.b16 %v1560
    %v1853 = vunpack.c.l.b16 %v1561
    %v1854 = vunpack.c.h.b16 %v1561
    %v1855 = vunpack.c.l.b16 %v1562
    %v1856 = vunpack.c.h.b16 %v1562
    %v1857 = vunpack.c.l.b16 %v1563
    %v1858 = vunpack.c.h.b16 %v1563
    %v1859 = vunpack.c.l.b16 %v1564
    %v1860 = vunpack.c.h.b16 %v1564
    %v1861 = vunpack.c.l.b16 %v1565
    %v1862 = vunpack.c.h.b16 %v1565
    %v1863 = vunpack.c.l.b16 %v1566
    %v1864 = vunpack.c.h.b16 %v1566
    %v1865 = vunpack.c.l.b16 %v1567
    %v1866 = vunpack.c.h.b16 %v1567
    %v1867 = vunpack.c.l.b16 %v1568
    %v1868 = vunpack.c.h.b16 %v1568
    %v1869 = vunpack.c.l.b16 %v1569
    %v1870 = vunpack.c.h.b16 %v1569
    %v1871 = vunpack.c.l.b16 %v1570
    %v1872 = vunpack.c.h.b16 %v1570
    %v1873 = vunpack.c.l.b16 %v1571
    %v1874 = vunpack.c.h.b16 %v1571
    %v1875 = vunpack.c.l.b16 %v1572
    %v1876 = vunpack.c.h.b16 %v1572
    %v1877 = vunpack.c.l.b16 %v1573
    %v1878 = vunpack.c.h.b16 %v1573
    %v1879 = vunpack.c.l.b16 %v1574
    %v1880 = vunpack.c.h.b16 %v1574
    %v1881 = vunpack.c.l.b16 %v1575
    %v1882 = vunpack.c.h.b16 %v1575
    %v1883 = vunpack.c.l.b16 %v1576
    %v1884 = vunpack.c.h.b16 %v1576
    %v1885 = vunpack.c.l.b16 %v1577
    %v1886 = vunpack.c.h.b16 %v1577
    %v1887 = vunpack.c.l.b16 %v1578
    %v1888 = vunpack.c.h.b16 %v1578
    %v1889 = vunpack.c.l.b16 %v1579
    %v1890 = vunpack.c.h.b16 %v1579
    %v1891 = vunpack.c.l.b16 %v1580
    %v1892 = vunpack.c.h.b16 %v1580
    %v1893 = vunpack.c.l.b16 %v1581
    %v1894 = vunpack.c.h.b16 %v1581
    %v1895 = vunpack.c.l.b16 %v1582
    %v1896 = vunpack.c.h.b16 %v1582
    %v1897 = vunpack.c.l.b16 %v1583
    %v1898 = vunpack.c.h.b16 %v1583
    %v1899 = vunpack.c.l.b16 %v1584
    %v1900 = vunpack.c.h.b16 %v1584
    %v1901 = vunpack.c.l.b16 %v1585
    %v1902 = vunpack.c.h.b16 %v1585
    %v1903 = vunpack.c.l.b16 %v1586
    %v1904 = vunpack.c.h.b16 %v1586
    %v1905 = vunpack.c.l.b16 %v1587
    %v1906 = vunpack.c.h.b16 %v1587
    %v1907 = vunpack.c.l.b16 %v1588
    %v1908 = vunpack.c.h.b16 %v1588
    %v1909 = vunpack.c.l.b16 %v1589
    %v1910 = vunpack.c.h.b16 %v1589
    %v1911 = vunpack.c.l.b16 %v1590
    %v1912 = vunpack.c.h.b16 %v1590
    %v1913 = vunpack.c.l.b16 %v1591
    %v1914 = vunpack.c.h.b16 %v1591
    %v1915 = vunpack.c.l.b16 %v1592
    %v1916 = vunpack.c.h.b16 %v1592
    %v1917 = vunpack.c.l.b16 %v1593
    %v1918 = vunpack.c.h.b16 %v1593
    %v1919 = vunpack.c.l.b16 %v1594
    %v1920 = vunpack.c.h.b16 %v1594
    %v1921 = vunpack.c.l.b16 %v1595
    %v1922 = vunpack.c.h.b16 %v1595
    %v1923 = vunpack.c.l.b16 %v1596
    %v1924 = vunpack.c.h.b16 %v1596
    %v1925 = vunpack.c.l.b16 %v1597
    %v1926 = vunpack.c.h.b16 %v1597
    %v1927 = vunpack.c.l.b16 %v1598
    %v1928 = vunpack.c.h.b16 %v1598
    %v1929 = vunpack.c.l.b16 %v1599
    %v1930 = vunpack.c.h.b16 %v1599
    %v1931 = vunpack.c.l.b16 %v1600
    %v1932 = vunpack.c.h.b16 %v1600
    %v1933 = vunpack.c.l.b16 %v1601
    %v1934 = vunpack.c.h.b16 %v1601
    %v1935 = vunpack.c.l.b16 %v1602
    %v1936 = vunpack.c.h.b16 %v1602
    %v1937 = vunpack.c.l.b16 %v1603
    %v1938 = vunpack.c.h.b16 %v1603
    %v1939 = vunpack.c.l.b16 %v1604
    %v1940 = vunpack.c.h.b16 %v1604
    %v1941 = vunpack.c.l.b16 %v1605
    %v1942 = vunpack.c.h.b16 %v1605
    %v1943 = vunpack.c.l.b16 %v1606
    %v1944 = vunpack.c.h.b16 %v1606
    %v1945 = vunpack.c.l.b16 %v1607
    %v1946 = vunpack.c.h.b16 %v1607
    %v1947 = vunpack.c.l.b16 %v1608
    %v1948 = vunpack.c.h.b16 %v1608
    %v1949 = vunpack.c.l.b16 %v1609
    %v1950 = vunpack.c.h.b16 %v1609
    %v1951 = vunpack.c.l.b16 %v1610
    %v1952 = vunpack.c.h.b16 %v1610
    %v1953 = vunpack.c.l.b16 %v1611
    %v1954 = vunpack.c.h.b16 %v1611
    %v1955 = vpack.c.b16 %v1771, %v1763
    %v1956 = vpack.c.b16 %v1772, %v1764
    %v1957 = vpack.c.b16 %v1773, %v1765
    %v1958 = vpack.c.b16 %v1774, %v1766
    %v1959 = vpack.c.b16 %v1775, %v1767
    %v1960 = vpack.c.b16 %v1776, %v1768
    %v1961 = vpack.c.b16 %v1777, %v1769
    %v1962 = vpack.c.b16 %v1778, %v1770
    %v1963 = vpack.c.b16 %v1787, %v1779
    %v1964 = vpack.c.b16 %v1788, %v1780
    %v1965 = vpack.c.b16 %v1789, %v1781
    %v1966 = vpack.c.b16 %v1790, %v1782
    %v1967 = vpack.c.b16 %v1791, %v1783
    %v1968 = vpack.c.b16 %v1792, %v1784
    %v1969 = vpack.c.b16 %v1793, %v1785
    %v1970 = vpack.c.b16 %v1794, %v1786
    %v1971 = vpack.c.b16 %v1803, %v1795
    %v1972 = vpack.c.b16 %v1804, %v1796
    %v1973 = vpack.c.b16 %v1805, %v1797
    %v1974 = vpack.c.b16 %v1806, %v1798
    %v1975 = vpack.c.b16 %v1807, %v1799
    %v1976 = vpack.c.b16 %v1808, %v1800
    %v1977 = vpack.c.b16 %v1809, %v1801
    %v1978 = vpack.c.b16 %v1810, %v1802
    %v1979 = vpack.c.b16 %v1819, %v1811
    %v1980 = vpack.c.b16 %v1820, %v1812
    %v1981 = vpack.c.b16 %v1821, %v1813
    %v1982 = vpack.c.b16 %v1822, %v1814
    %v1983 = vpack.c.b16 %v1823, %v1815
    %v1984 = vpack.c.b16 %v1824, %v1816
    %v1985 = vpack.c.b16 %v1825, %v1817
    %v1986 = vpack.c.b16 %v1826, %v1818
    %v1987 = vpack.c.b16 %v1835, %v1827
    %v1988 = vpack.c.b16 %v1836, %v1828
    %v1989 = vpack.c.b16 %v1837, %v1829
    %v1990 = vpack.c.b16 %v1838, %v1830
    %v1991 = vpack.c.b16 %v1839, %v1831
    %v1992 = vpack.c.b16 %v1840, %v1832
    %v1993 = vpack.c.b16 %v1841, %v1833
    %v1994 = vpack.c.b16 %v1842, %v1834
    %v1995 = vpack.c.b16 %v1851, %v1843
    %v1996 = vpack.c.b16 %v1852, %v1844
    %v1997 = vpack.c.b16 %v1853, %v1845
    %v1998 = vpack.c.b16 %v1854, %v1846
    %v1999 = vpack.c.b16 %v1855, %v1847
    %v2000 = vpack.c.b16 %v1856, %v1848
    %v2001 = vpack.c.b16 %v1857, %v1849
    %v2002 = vpack.c.b16 %v1858, %v1850
    %v2003 = vpack.c.b16 %v1867, %v1859
    %v2004 = vpack.c.b16 %v1868, %v1860
    %v2005 = vpack.c.b16 %v1869, %v1861
    %v2006 = vpack.c.b16 %v1870, %v1862
    %v2007 = vpack.c.b16 %v1871, %v1863
    %v2008 = vpack.c.b16 %v1872, %v1864
    %v2009 = vpack.c.b16 %v1873, %v1865
    %v2010 = vpack.c.b16 %v1874, %v1866
    %v2011 = vpack.c.b16 %v1883, %v1875
    %v2012 = vpack.c.b16 %v1884, %v1876
    %v2013 = vpack.c.b16 %v1885, %v1877
    %v2014 = vpack.c.b16 %v1886, %v1878
    %v2015 = vpack.c.b16 %v1887, %v1879
    %v2016 = vpack.c.b16 %v1888, %v1880
    %v2017 = vpack.c.b16 %v1889, %v1881
    %v2018 = vpack.c.b16 %v1890, %v1882
    %v2019 = vpack.c.b16 %v1899, %v1891
    %v2020 = vpack.c.b16 %v1900, %v1892
    %v2021 = vpack.c.b16 %v1901, %v1893
    %v2022 = vpack.c.b16 %v1902, %v1894
    %v2023 = vpack.c.b16 %v1903, %v1895
    %v2024 = vpack.c.b16 %v1904, %v1896
    %v2025 = vpack.c.b16 %v1905, %v1897
    %v2026 = vpack.c.b16 %v1906, %v1898
    %v2027 = vpack.c.b16 %v1915, %v1907
    %v2028 = vpack.c.b16 %v1916, %v1908
    %v2029 = vpack.c.b16 %v1917, %v1909
    %v2030 = vpack.c.b16 %v1918, %v1910
    %v2031 = vpack.c.b16 %v1919, %v1911
    %v2032 = vpack.c.b16 %v1920, %v1912
    %v2033 = vpack.c.b16 %v1921, %v1913
    %v2034 = vpack.c.b16 %v1922, %v1914
    %v2035 = vpack.c.b16 %v1931, %v1923
    %v2036 = vpack.c.b16 %v1932, %v1924
    %v2037 = vpack.c.b16 %v1933, %v1925
    %v2038 = vpack.c.b16 %v1934, %v1926
    %v2039 = vpack.c.b16 %v1935, %v1927
    %v2040 = vpack.c.b16 %v1936, %v1928
    %v2041 = vpack.c.b16 %v1937, %v1929
    %v2042 = vpack.c.b16 %v1938, %v1930
    %v2043 = vpack.c.b16 %v1947, %v1939
    %v2044 = vpack.c.b16 %v1948, %v1940
    %v2045 = vpack.c.b16 %v1949, %v1941
    %v2046 = vpack.c.b16 %v1950, %v1942
    %v2047 = vpack.c.b16 %v1951, %v1943
    %v2048 = vpack.c.b16 %v1952, %v1944
    %v2049 = vpack.c.b16 %v1953, %v1945
    %v2050 = vpack.c.b16 %v1954, %v1946
    %v2148 = vsel %vm706, %v1664, 0
    %v2151 = vsel %vm706, %v1666, 0
    %2153 = vmatprep.subr.bf16.mxu0 %v2012
    %2154 = vmatpush1.bf16.msra.mxu0 %v2011
    %2155 = vmatprep.subr.bf16.mxu0 %v2004
    %2156 = vmatpush1.bf16.msra.mxu0 %v2003
    %2157 = vmatprep.subr.bf16.mxu0 %v1996
    %2158 = vmatpush1.bf16.msra.mxu0 %v1995
    %2159 = vmatprep.subr.bf16.mxu0 %v1988
    %2160 = vmatpush1.bf16.msra.mxu0 %v1987
    %2161 = vmatprep.subr.bf16.mxu0 %v1980
    %2162 = vmatpush1.bf16.msra.mxu0 %v1979
    %2163 = vmatprep.subr.bf16.mxu0 %v1972
    %2164 = vmatpush1.bf16.msra.mxu0 %v1971
    %2165 = vmatprep.subr.bf16.mxu0 %v1964
    %2166 = vmatpush1.bf16.msra.mxu0 %v1963
    %2167 = vmatprep.subr.bf16.mxu0 %v1956
    %2168 = vmatpush1.bf16.msra.mxu0 %v1955
    %2169 = vmatprep.subr.bf16.mxu0 0
    %2170 = vmatpush2.bf16.msra.mxu0 0
    %2171 = vmatprep.subr.bf16.mxu0 0
    %2172 = vmatpush2.bf16.msra.mxu0 0
    %2173 = vmatprep.subr.bf16.mxu0 0
    %2174 = vmatpush2.bf16.msra.mxu0 0
    %2175 = vmatprep.subr.bf16.mxu0 0
    %2176 = vmatpush2.bf16.msra.mxu0 0
    %2177 = vmatprep.subr.bf16.mxu0 %v2044
    %2178 = vmatpush2.bf16.msra.mxu0 %v2043
    %2179 = vmatprep.subr.bf16.mxu0 %v2036
    %2180 = vmatpush2.bf16.msra.mxu0 %v2035
    %2181 = vmatprep.subr.bf16.mxu0 %v2028
    %2182 = vmatpush2.bf16.msra.mxu0 %v2027
    %2183 = vmatprep.subr.bf16.mxu0 %v2020
    %2184 = vmatpush2.bf16.msra.mxu0 %v2019
    %2185 = vmatprep.mubr.bf16.mxu0 %v2148
    %2186 = vmatmul.mubr.bf16.gmra.mxu0 %v1663
    %v2187 = vpop.f32.mrf.mxu0
    %v2188 = vadd.f32 0.0, %v2187
    %v2189 = vpop.f32.mrf.mxu0
    %v2190 = vadd.f32 0.0, %v2189
    %v2191 = vpop.f32.mrf.mxu0
    %v2192 = vadd.f32 0.0, %v2191
    %v2193 = vpop.f32.mrf.mxu0
    %v2194 = vadd.f32 0.0, %v2193
    %2195 = vmatprep.mubr.bf16.mxu0 %v2151
    %2196 = vmatmul.mubr.bf16.gmra.mxu0 %v1665
    %v2197 = vpop.f32.mrf.mxu0
    %v2198 = vadd.f32 0.0, %v2197
    %v2199 = vpop.f32.mrf.mxu0
    %v2200 = vadd.f32 0.0, %v2199
    %v2201 = vpop.f32.mrf.mxu0
    %v2202 = vpop.f32.mrf.mxu0
    %2203 = vdwg.mxu0
    %2204 = vmatprep.subr.bf16.mxu0 %v2014
    %2205 = vmatpush1.bf16.msra.mxu0 %v2013
    %2206 = vmatprep.subr.bf16.mxu0 %v2006
    %2207 = vmatpush1.bf16.msra.mxu0 %v2005
    %2208 = vmatprep.subr.bf16.mxu0 %v1998
    %2209 = vmatpush1.bf16.msra.mxu0 %v1997
    %2210 = vmatprep.subr.bf16.mxu0 %v1990
    %2211 = vmatpush1.bf16.msra.mxu0 %v1989
    %2212 = vmatprep.subr.bf16.mxu0 %v1982
    %2213 = vmatpush1.bf16.msra.mxu0 %v1981
    %2214 = vmatprep.subr.bf16.mxu0 %v1974
    %2215 = vmatpush1.bf16.msra.mxu0 %v1973
    %2216 = vmatprep.subr.bf16.mxu0 %v1966
    %2217 = vmatpush1.bf16.msra.mxu0 %v1965
    %2218 = vmatprep.subr.bf16.mxu0 %v1958
    %2219 = vmatpush1.bf16.msra.mxu0 %v1957
    %2220 = vmatprep.subr.bf16.mxu0 0
    %2221 = vmatpush2.bf16.msra.mxu0 0
    %2222 = vmatprep.subr.bf16.mxu0 0
    %2223 = vmatpush2.bf16.msra.mxu0 0
    %2224 = vmatprep.subr.bf16.mxu0 0
    %2225 = vmatpush2.bf16.msra.mxu0 0
    %2226 = vmatprep.subr.bf16.mxu0 0
    %2227 = vmatpush2.bf16.msra.mxu0 0
    %2228 = vmatprep.subr.bf16.mxu0 %v2046
    %2229 = vmatpush2.bf16.msra.mxu0 %v2045
    %2230 = vmatprep.subr.bf16.mxu0 %v2038
    %2231 = vmatpush2.bf16.msra.mxu0 %v2037
    %2232 = vmatprep.subr.bf16.mxu0 %v2030
    %2233 = vmatpush2.bf16.msra.mxu0 %v2029
    %2234 = vmatprep.subr.bf16.mxu0 %v2022
    %2235 = vmatpush2.bf16.msra.mxu0 %v2021
    %2236 = vmatprep.mubr.bf16.mxu0 %v2148
    %2237 = vmatmul.mubr.bf16.gmra.mxu0 %v1663
    %v2238 = vpop.f32.mrf.mxu0
    %v2239 = vadd.f32 0.0, %v2238
    %v2240 = vpop.f32.mrf.mxu0
    %v2241 = vadd.f32 0.0, %v2240
    %v2242 = vpop.f32.mrf.mxu0
    %v2243 = vadd.f32 0.0, %v2242
    %v2244 = vpop.f32.mrf.mxu0
    %v2245 = vadd.f32 0.0, %v2244
    %2246 = vmatprep.mubr.bf16.mxu0 %v2151
    %2247 = vmatmul.mubr.bf16.gmra.mxu0 %v1665
    %v2248 = vpop.f32.mrf.mxu0
    %v2249 = vadd.f32 0.0, %v2248
    %v2250 = vpop.f32.mrf.mxu0
    %v2251 = vadd.f32 0.0, %v2250
    %v2252 = vpop.f32.mrf.mxu0
    %v2253 = vpop.f32.mrf.mxu0
    %2254 = vdwg.mxu0
    %2255 = vmatprep.subr.bf16.mxu0 %v2016
    %2256 = vmatpush1.bf16.msra.mxu0 %v2015
    %2257 = vmatprep.subr.bf16.mxu0 %v2008
    %2258 = vmatpush1.bf16.msra.mxu0 %v2007
    %2259 = vmatprep.subr.bf16.mxu0 %v2000
    %2260 = vmatpush1.bf16.msra.mxu0 %v1999
    %2261 = vmatprep.subr.bf16.mxu0 %v1992
    %2262 = vmatpush1.bf16.msra.mxu0 %v1991
    %2263 = vmatprep.subr.bf16.mxu0 %v1984
    %2264 = vmatpush1.bf16.msra.mxu0 %v1983
    %2265 = vmatprep.subr.bf16.mxu0 %v1976
    %2266 = vmatpush1.bf16.msra.mxu0 %v1975
    %2267 = vmatprep.subr.bf16.mxu0 %v1968
    %2268 = vmatpush1.bf16.msra.mxu0 %v1967
    %2269 = vmatprep.subr.bf16.mxu0 %v1960
    %2270 = vmatpush1.bf16.msra.mxu0 %v1959
    %2271 = vmatprep.subr.bf16.mxu0 0
    %2272 = vmatpush2.bf16.msra.mxu0 0
    %2273 = vmatprep.subr.bf16.mxu0 0
    %2274 = vmatpush2.bf16.msra.mxu0 0
    %2275 = vmatprep.subr.bf16.mxu0 0
    %2276 = vmatpush2.bf16.msra.mxu0 0
    %2277 = vmatprep.subr.bf16.mxu0 0
    %2278 = vmatpush2.bf16.msra.mxu0 0
    %2279 = vmatprep.subr.bf16.mxu0 %v2048
    %2280 = vmatpush2.bf16.msra.mxu0 %v2047
    %2281 = vmatprep.subr.bf16.mxu0 %v2040
    %2282 = vmatpush2.bf16.msra.mxu0 %v2039
    %2283 = vmatprep.subr.bf16.mxu0 %v2032
    %2284 = vmatpush2.bf16.msra.mxu0 %v2031
    %2285 = vmatprep.subr.bf16.mxu0 %v2024
    %2286 = vmatpush2.bf16.msra.mxu0 %v2023
    %2287 = vmatprep.mubr.bf16.mxu0 %v2148
    %2288 = vmatmul.mubr.bf16.gmra.mxu0 %v1663
    %v2289 = vpop.f32.mrf.mxu0
    %v2290 = vadd.f32 0.0, %v2289
    %v2291 = vpop.f32.mrf.mxu0
    %v2292 = vadd.f32 0.0, %v2291
    %v2293 = vpop.f32.mrf.mxu0
    %v2294 = vadd.f32 0.0, %v2293
    %v2295 = vpop.f32.mrf.mxu0
    %v2296 = vadd.f32 0.0, %v2295
    %2297 = vmatprep.mubr.bf16.mxu0 %v2151
    %2298 = vmatmul.mubr.bf16.gmra.mxu0 %v1665
    %v2299 = vpop.f32.mrf.mxu0
    %v2300 = vadd.f32 0.0, %v2299
    %v2301 = vpop.f32.mrf.mxu0
    %v2302 = vadd.f32 0.0, %v2301
    %v2303 = vpop.f32.mrf.mxu0
    %v2304 = vpop.f32.mrf.mxu0
    %2305 = vdwg.mxu0
    %2306 = vmatprep.subr.bf16.mxu0 %v2018
    %2307 = vmatpush1.bf16.msra.mxu0 %v2017
    %2308 = vmatprep.subr.bf16.mxu0 %v2010
    %2309 = vmatpush1.bf16.msra.mxu0 %v2009
    %2310 = vmatprep.subr.bf16.mxu0 %v2002
    %2311 = vmatpush1.bf16.msra.mxu0 %v2001
    %2312 = vmatprep.subr.bf16.mxu0 %v1994
    %2313 = vmatpush1.bf16.msra.mxu0 %v1993
    %2314 = vmatprep.subr.bf16.mxu0 %v1986
    %2315 = vmatpush1.bf16.msra.mxu0 %v1985
    %2316 = vmatprep.subr.bf16.mxu0 %v1978
    %2317 = vmatpush1.bf16.msra.mxu0 %v1977
    %2318 = vmatprep.subr.bf16.mxu0 %v1970
    %2319 = vmatpush1.bf16.msra.mxu0 %v1969
    %2320 = vmatprep.subr.bf16.mxu0 %v1962
    %2321 = vmatpush1.bf16.msra.mxu0 %v1961
    %2322 = vmatprep.subr.bf16.mxu0 0
    %2323 = vmatpush2.bf16.msra.mxu0 0
    %2324 = vmatprep.subr.bf16.mxu0 0
    %2325 = vmatpush2.bf16.msra.mxu0 0
    %2326 = vmatprep.subr.bf16.mxu0 0
    %2327 = vmatpush2.bf16.msra.mxu0 0
    %2328 = vmatprep.subr.bf16.mxu0 0
    %2329 = vmatpush2.bf16.msra.mxu0 0
    %2330 = vmatprep.subr.bf16.mxu0 %v2050
    %2331 = vmatpush2.bf16.msra.mxu0 %v2049
    %2332 = vmatprep.subr.bf16.mxu0 %v2042
    %2333 = vmatpush2.bf16.msra.mxu0 %v2041
    %2334 = vmatprep.subr.bf16.mxu0 %v2034
    %2335 = vmatpush2.bf16.msra.mxu0 %v2033
    %2336 = vmatprep.subr.bf16.mxu0 %v2026
    %2337 = vmatpush2.bf16.msra.mxu0 %v2025
    %2338 = vmatprep.mubr.bf16.mxu0 %v2148
    %2339 = vmatmul.mubr.bf16.gmra.mxu0 %v1663
    %v2340 = vpop.f32.mrf.mxu0
    %v2341 = vadd.f32 0.0, %v2340
    %v2342 = vpop.f32.mrf.mxu0
    %v2343 = vadd.f32 0.0, %v2342
    %v2344 = vpop.f32.mrf.mxu0
    %v2345 = vadd.f32 0.0, %v2344
    %v2346 = vpop.f32.mrf.mxu0
    %v2347 = vadd.f32 0.0, %v2346
    %2348 = vmatprep.mubr.bf16.mxu0 %v2151
    %2349 = vmatmul.mubr.bf16.gmra.mxu0 %v1665
    %v2350 = vpop.f32.mrf.mxu0
    %v2351 = vadd.f32 0.0, %v2350
    %v2352 = vpop.f32.mrf.mxu0
    %v2353 = vadd.f32 0.0, %v2352
    %v2354 = vpop.f32.mrf.mxu0
    %v2355 = vpop.f32.mrf.mxu0
    %2356 = vdwg.mxu0
    %v2357 = vld [vmem:[#allocation17] sm:$0xf]
    %v2358 = vld [vmem:[#allocation17 + $0x4] sm:$0x3]
    %s2359 = scalar_lea.vmem [#allocation17], 8
    %v2360 = vld [vmem:[%s2359] sm:$0xf]
    %v2361 = vld [vmem:[%s2359 + $0x4] sm:$0x3]
    %v2364 = vunpack.c.l.b16 %v2360
    %v2365 = vunpack.c.l.b16 %v2361
    %v2366 = vpack.c.b16 %v2365, %v2364
    %2373 = vrot.lane.b32.xlu0 %v2190, 64
    %v2374 = vpop.permute.xlu0 %2373
    %2375 = vrot.lane.b32.xlu0 %v2239, 64
    %v2376 = vpop.permute.xlu0 %2375
    %2377 = vrot.lane.b32.xlu0 %v2194, 64
    %v2378 = vpop.permute.xlu0 %2377
    %2379 = vrot.lane.b32.xlu0 %v2243, 64
    %v2380 = vpop.permute.xlu0 %2379
    %2381 = vrot.lane.b32.xlu0 %v2200, 64
    %v2382 = vpop.permute.xlu0 %2381
    %2383 = vrot.lane.b32.xlu0 %v2249, 64
    %v2384 = vpop.permute.xlu0 %2383
    %v2385 = vsel %vm706, %v2374, %v2376
    %v2386 = vsel %vm706, %v2378, %v2380
    %v2387 = vsel %vm706, %v2382, %v2384
    %v2395 = vsel %vm368, %v2366, 0
    %2397 = vmatprep.subr.mxu0 0.0
    %2398 = vmatpush1.msra.mxu0 0.0
    %2399 = vmatprep.subr.mxu0 0.0
    %2400 = vmatpush1.msra.mxu0 0.0
    %2401 = vmatprep.subr.mxu0 0.0
    %2402 = vmatpush1.msra.mxu0 0.0
    %2403 = vmatprep.subr.mxu0 0.0
    %2404 = vmatpush1.msra.mxu0 0.0
    %2405 = vmatprep.subr.mxu0 0.0
    %2406 = vmatpush1.msra.mxu0 0.0
    %2407 = vmatprep.subr.mxu0 0.0
    %2408 = vmatpush1.msra.mxu0 0.0
    %2409 = vmatprep.subr.mxu0 0.0
    %2410 = vmatpush1.msra.mxu0 0.0
    %2411 = vmatprep.subr.mxu0 0.0
    %2412 = vmatpush1.msra.mxu0 0.0
    %2413 = vmatprep.subr.mxu0 0.0
    %2414 = vmatpush1.msra.mxu0 0.0
    %2415 = vmatprep.subr.mxu0 0.0
    %2416 = vmatpush1.msra.mxu0 0.0
    %2417 = vmatprep.subr.mxu0 0.0
    %2418 = vmatpush1.msra.mxu0 0.0
    %2419 = vmatprep.subr.mxu0 0.0
    %2420 = vmatpush1.msra.mxu0 0.0
    %2421 = vmatprep.subr.mxu0 0.0
    %2422 = vmatpush1.msra.mxu0 0.0
    %2423 = vmatprep.subr.mxu0 %v2384
    %2424 = vmatpush1.msra.mxu0 %v2387
    %2425 = vmatprep.subr.mxu0 %v2380
    %2426 = vmatpush1.msra.mxu0 %v2386
    %2427 = vmatprep.subr.mxu0 %v2376
    %2428 = vmatpush1.msra.mxu0 %v2385
    %2429 = vmatprep.subr.mxu0 0.0
    %2430 = vmatpush2.msra.mxu0 0.0
    %2431 = vmatprep.subr.mxu0 0.0
    %2432 = vmatpush2.msra.mxu0 0.0
    %2433 = vmatprep.subr.mxu0 0.0
    %2434 = vmatpush2.msra.mxu0 0.0
    %2435 = vmatprep.subr.mxu0 0.0
    %2436 = vmatpush2.msra.mxu0 0.0
    %2437 = vmatprep.subr.mxu0 0.0
    %2438 = vmatpush2.msra.mxu0 0.0
    %2439 = vmatprep.subr.mxu0 0.0
    %2440 = vmatpush2.msra.mxu0 0.0
    %2441 = vmatprep.subr.mxu0 0.0
    %2442 = vmatpush2.msra.mxu0 0.0
    %2443 = vmatprep.subr.mxu0 0.0
    %2444 = vmatpush2.msra.mxu0 0.0
    %2445 = vmatprep.subr.mxu0 0.0
    %2446 = vmatpush2.msra.mxu0 0.0
    %2447 = vmatprep.subr.mxu0 0.0
    %2448 = vmatpush2.msra.mxu0 0.0
    %2449 = vmatprep.subr.mxu0 0.0
    %2450 = vmatpush2.msra.mxu0 0.0
    %2451 = vmatprep.subr.mxu0 0.0
    %2452 = vmatpush2.msra.mxu0 0.0
    %2453 = vmatprep.subr.mxu0 0.0
    %2454 = vmatpush2.msra.mxu0 0.0
    %2455 = vmatprep.subr.mxu0 0.0
    %2456 = vmatpush2.msra.mxu0 0.0
    %2457 = vmatprep.subr.mxu0 0.0
    %2458 = vmatpush2.msra.mxu0 0.0
    %2459 = vmatprep.subr.mxu0 0.0
    %2460 = vmatpush2.msra.mxu0 0.0
    %2461 = vmatprep.mubr.bf16.mxu0 0
    %2462 = vmatmul.mubr.bf16.gmra.mxu0 %v2395
    %v2463 = vpop.f32.mrf.mxu0
    %v2464 = vadd.f32 0.0, %v2463
    %v2465 = vpop.f32.mrf.mxu0
    %v2466 = vadd.f32 0.0, %v2465
    %v2467 = vpop.f32.mrf.mxu0
    %v2468 = vadd.f32 0.0, %v2467
    %v2469 = vpop.f32.mrf.mxu0
    %v2470 = vadd.f32 0.0, %v2469
    %2471 = vdwg.mxu0
    %v2474 = vunpack.c.l.b16 %v2357
    %v2475 = vunpack.c.l.b16 %v2358
    %v2476 = vpack.c.b16 %v2475, %v2474
    %v2478 = vsel %vm368, %v2476, 0
    %2480 = vmatprep.subr.mxu0 0.0
    %2481 = vmatpush1.msra.mxu0 0.0
    %2482 = vmatprep.subr.mxu0 0.0
    %2483 = vmatpush1.msra.mxu0 0.0
    %2484 = vmatprep.subr.mxu0 0.0
    %2485 = vmatpush1.msra.mxu0 0.0
    %2486 = vmatprep.subr.mxu0 0.0
    %2487 = vmatpush1.msra.mxu0 0.0
    %2488 = vmatprep.subr.mxu0 0.0
    %2489 = vmatpush1.msra.mxu0 0.0
    %2490 = vmatprep.subr.mxu0 0.0
    %2491 = vmatpush1.msra.mxu0 0.0
    %2492 = vmatprep.subr.mxu0 0.0
    %2493 = vmatpush1.msra.mxu0 0.0
    %2494 = vmatprep.subr.mxu0 0.0
    %2495 = vmatpush1.msra.mxu0 0.0
    %2496 = vmatprep.subr.mxu0 0.0
    %2497 = vmatpush1.msra.mxu0 0.0
    %2498 = vmatprep.subr.mxu0 0.0
    %2499 = vmatpush1.msra.mxu0 0.0
    %2500 = vmatprep.subr.mxu0 0.0
    %2501 = vmatpush1.msra.mxu0 0.0
    %2502 = vmatprep.subr.mxu0 0.0
    %2503 = vmatpush1.msra.mxu0 0.0
    %2504 = vmatprep.subr.mxu0 0.0
    %2505 = vmatpush1.msra.mxu0 0.0
    %2506 = vmatprep.subr.mxu0 %v2200
    %2507 = vmatpush1.msra.mxu0 %v2198
    %2508 = vmatprep.subr.mxu0 %v2194
    %2509 = vmatpush1.msra.mxu0 %v2192
    %2510 = vmatprep.subr.mxu0 %v2190
    %2511 = vmatpush1.msra.mxu0 %v2188
    %2512 = vmatprep.subr.mxu0 0.0
    %2513 = vmatpush2.msra.mxu0 0.0
    %2514 = vmatprep.subr.mxu0 0.0
    %2515 = vmatpush2.msra.mxu0 0.0
    %2516 = vmatprep.subr.mxu0 0.0
    %2517 = vmatpush2.msra.mxu0 0.0
    %2518 = vmatprep.subr.mxu0 0.0
    %2519 = vmatpush2.msra.mxu0 0.0
    %2520 = vmatprep.subr.mxu0 0.0
    %2521 = vmatpush2.msra.mxu0 0.0
    %2522 = vmatprep.subr.mxu0 0.0
    %2523 = vmatpush2.msra.mxu0 0.0
    %2524 = vmatprep.subr.mxu0 0.0
    %2525 = vmatpush2.msra.mxu0 0.0
    %2526 = vmatprep.subr.mxu0 0.0
    %2527 = vmatpush2.msra.mxu0 0.0
    %2528 = vmatprep.subr.mxu0 0.0
    %2529 = vmatpush2.msra.mxu0 0.0
    %2530 = vmatprep.subr.mxu0 0.0
    %2531 = vmatpush2.msra.mxu0 0.0
    %2532 = vmatprep.subr.mxu0 0.0
    %2533 = vmatpush2.msra.mxu0 0.0
    %2534 = vmatprep.subr.mxu0 0.0
    %2535 = vmatpush2.msra.mxu0 0.0
    %2536 = vmatprep.subr.mxu0 0.0
    %2537 = vmatpush2.msra.mxu0 0.0
    %2538 = vmatprep.subr.mxu0 0.0
    %2539 = vmatpush2.msra.mxu0 0.0
    %2540 = vmatprep.subr.mxu0 0.0
    %2541 = vmatpush2.msra.mxu0 0.0
    %2542 = vmatprep.subr.mxu0 0.0
    %2543 = vmatpush2.msra.mxu0 0.0
    %2544 = vmatprep.mubr.bf16.mxu0 0
    %2545 = vmatmul.mubr.bf16.gmra.mxu0 %v2478
    %v2546 = vpop.f32.mrf.mxu0
    %v2547 = vadd.f32 %v2464, %v2546
    %v2548 = vpop.f32.mrf.mxu0
    %v2549 = vadd.f32 %v2466, %v2548
    %v2550 = vpop.f32.mrf.mxu0
    %v2551 = vadd.f32 %v2468, %v2550
    %v2552 = vpop.f32.mrf.mxu0
    %v2553 = vadd.f32 %v2470, %v2552
    %2554 = vdwg.mxu0
    %s2555 = scalar_lea.vmem [#allocation17], 16
    %v2556 = vld [vmem:[%s2555] sm:$0xf]
    %v2557 = vld [vmem:[%s2555 + $0x4] sm:$0x3]
    %v2560 = vunpack.c.l.b16 %v2556
    %v2561 = vunpack.c.l.b16 %v2557
    %v2562 = vpack.c.b16 %v2561, %v2560
    %v2564 = vsel %vm368, %v2562, 0
    %2566 = vmatprep.subr.mxu0 0.0
    %2567 = vmatpush1.msra.mxu0 0.0
    %2568 = vmatprep.subr.mxu0 0.0
    %2569 = vmatpush1.msra.mxu0 0.0
    %2570 = vmatprep.subr.mxu0 0.0
    %2571 = vmatpush1.msra.mxu0 0.0
    %2572 = vmatprep.subr.mxu0 0.0
    %2573 = vmatpush1.msra.mxu0 0.0
    %2574 = vmatprep.subr.mxu0 0.0
    %2575 = vmatpush1.msra.mxu0 0.0
    %2576 = vmatprep.subr.mxu0 0.0
    %2577 = vmatpush1.msra.mxu0 0.0
    %2578 = vmatprep.subr.mxu0 0.0
    %2579 = vmatpush1.msra.mxu0 0.0
    %2580 = vmatprep.subr.mxu0 0.0
    %2581 = vmatpush1.msra.mxu0 0.0
    %2582 = vmatprep.subr.mxu0 0.0
    %2583 = vmatpush1.msra.mxu0 0.0
    %2584 = vmatprep.subr.mxu0 0.0
    %2585 = vmatpush1.msra.mxu0 0.0
    %2586 = vmatprep.subr.mxu0 0.0
    %2587 = vmatpush1.msra.mxu0 0.0
    %2588 = vmatprep.subr.mxu0 0.0
    %2589 = vmatpush1.msra.mxu0 0.0
    %2590 = vmatprep.subr.mxu0 0.0
    %2591 = vmatpush1.msra.mxu0 0.0
    %2592 = vmatprep.subr.mxu0 %v2300
    %2593 = vmatpush1.msra.mxu0 %v2251
    %2594 = vmatprep.subr.mxu0 %v2294
    %2595 = vmatpush1.msra.mxu0 %v2245
    %2596 = vmatprep.subr.mxu0 %v2290
    %2597 = vmatpush1.msra.mxu0 %v2241
    %2598 = vmatprep.subr.mxu0 0.0
    %2599 = vmatpush2.msra.mxu0 0.0
    %2600 = vmatprep.subr.mxu0 0.0
    %2601 = vmatpush2.msra.mxu0 0.0
    %2602 = vmatprep.subr.mxu0 0.0
    %2603 = vmatpush2.msra.mxu0 0.0
    %2604 = vmatprep.subr.mxu0 0.0
    %2605 = vmatpush2.msra.mxu0 0.0
    %2606 = vmatprep.subr.mxu0 0.0
    %2607 = vmatpush2.msra.mxu0 0.0
    %2608 = vmatprep.subr.mxu0 0.0
    %2609 = vmatpush2.msra.mxu0 0.0
    %2610 = vmatprep.subr.mxu0 0.0
    %2611 = vmatpush2.msra.mxu0 0.0
    %2612 = vmatprep.subr.mxu0 0.0
    %2613 = vmatpush2.msra.mxu0 0.0
    %2614 = vmatprep.subr.mxu0 0.0
    %2615 = vmatpush2.msra.mxu0 0.0
    %2616 = vmatprep.subr.mxu0 0.0
    %2617 = vmatpush2.msra.mxu0 0.0
    %2618 = vmatprep.subr.mxu0 0.0
    %2619 = vmatpush2.msra.mxu0 0.0
    %2620 = vmatprep.subr.mxu0 0.0
    %2621 = vmatpush2.msra.mxu0 0.0
    %2622 = vmatprep.subr.mxu0 0.0
    %2623 = vmatpush2.msra.mxu0 0.0
    %2624 = vmatprep.subr.mxu0 0.0
    %2625 = vmatpush2.msra.mxu0 0.0
    %2626 = vmatprep.subr.mxu0 0.0
    %2627 = vmatpush2.msra.mxu0 0.0
    %2628 = vmatprep.subr.mxu0 0.0
    %2629 = vmatpush2.msra.mxu0 0.0
    %2630 = vmatprep.mubr.bf16.mxu0 0
    %2631 = vmatmul.mubr.bf16.gmra.mxu0 %v2564
    %v2632 = vpop.f32.mrf.mxu0
    %v2633 = vadd.f32 0.0, %v2632
    %v2634 = vpop.f32.mrf.mxu0
    %v2635 = vadd.f32 0.0, %v2634
    %v2636 = vpop.f32.mrf.mxu0
    %v2637 = vadd.f32 0.0, %v2636
    %v2638 = vpop.f32.mrf.mxu0
    %v2639 = vadd.f32 0.0, %v2638
    %2640 = vdwg.mxu0
    %v2641 = vadd.f32 %v2547, %v2633
    %v2642 = vadd.f32 %v2549, %v2635
    %v2643 = vadd.f32 %v2551, %v2637
    %v2644 = vadd.f32 %v2553, %v2639
    %s2645 = scalar_lea.vmem [#allocation17], 24
    %v2646 = vld [vmem:[%s2645] sm:$0xf]
    %v2647 = vld [vmem:[%s2645 + $0x4] sm:$0x3]
    %v2650 = vunpack.c.l.b16 %v2646
    %v2651 = vunpack.c.l.b16 %v2647
    %v2652 = vpack.c.b16 %v2651, %v2650
    %2659 = vrot.lane.b32.xlu0 %v2290, 64
    %v2660 = vpop.permute.xlu0 %2659
    %2661 = vrot.lane.b32.xlu0 %v2292, 64
    %v2662 = vpop.permute.xlu0 %2661
    %2663 = vrot.lane.b32.xlu0 %v2294, 64
    %v2664 = vpop.permute.xlu0 %2663
    %2665 = vrot.lane.b32.xlu0 %v2296, 64
    %v2666 = vpop.permute.xlu0 %2665
    %2667 = vrot.lane.b32.xlu0 %v2300, 64
    %v2668 = vpop.permute.xlu0 %2667
    %2669 = vrot.lane.b32.xlu0 %v2302, 64
    %v2670 = vpop.permute.xlu0 %2669
    %v2671 = vsel %vm706, %v2660, %v2662
    %v2672 = vsel %vm706, %v2664, %v2666
    %v2673 = vsel %vm706, %v2668, %v2670
    %v2681 = vsel %vm368, %v2652, 0
    %2683 = vmatprep.subr.mxu0 0.0
    %2684 = vmatpush1.msra.mxu0 0.0
    %2685 = vmatprep.subr.mxu0 0.0
    %2686 = vmatpush1.msra.mxu0 0.0
    %2687 = vmatprep.subr.mxu0 0.0
    %2688 = vmatpush1.msra.mxu0 0.0
    %2689 = vmatprep.subr.mxu0 0.0
    %2690 = vmatpush1.msra.mxu0 0.0
    %2691 = vmatprep.subr.mxu0 0.0
    %2692 = vmatpush1.msra.mxu0 0.0
    %2693 = vmatprep.subr.mxu0 0.0
    %2694 = vmatpush1.msra.mxu0 0.0
    %2695 = vmatprep.subr.mxu0 0.0
    %2696 = vmatpush1.msra.mxu0 0.0
    %2697 = vmatprep.subr.mxu0 0.0
    %2698 = vmatpush1.msra.mxu0 0.0
    %2699 = vmatprep.subr.mxu0 0.0
    %2700 = vmatpush1.msra.mxu0 0.0
    %2701 = vmatprep.subr.mxu0 0.0
    %2702 = vmatpush1.msra.mxu0 0.0
    %2703 = vmatprep.subr.mxu0 0.0
    %2704 = vmatpush1.msra.mxu0 0.0
    %2705 = vmatprep.subr.mxu0 0.0
    %2706 = vmatpush1.msra.mxu0 0.0
    %2707 = vmatprep.subr.mxu0 0.0
    %2708 = vmatpush1.msra.mxu0 0.0
    %2709 = vmatprep.subr.mxu0 %v2670
    %2710 = vmatpush1.msra.mxu0 %v2673
    %2711 = vmatprep.subr.mxu0 %v2666
    %2712 = vmatpush1.msra.mxu0 %v2672
    %2713 = vmatprep.subr.mxu0 %v2662
    %2714 = vmatpush1.msra.mxu0 %v2671
    %2715 = vmatprep.subr.mxu0 0.0
    %2716 = vmatpush2.msra.mxu0 0.0
    %2717 = vmatprep.subr.mxu0 0.0
    %2718 = vmatpush2.msra.mxu0 0.0
    %2719 = vmatprep.subr.mxu0 0.0
    %2720 = vmatpush2.msra.mxu0 0.0
    %2721 = vmatprep.subr.mxu0 0.0
    %2722 = vmatpush2.msra.mxu0 0.0
    %2723 = vmatprep.subr.mxu0 0.0
    %2724 = vmatpush2.msra.mxu0 0.0
    %2725 = vmatprep.subr.mxu0 0.0
    %2726 = vmatpush2.msra.mxu0 0.0
    %2727 = vmatprep.subr.mxu0 0.0
    %2728 = vmatpush2.msra.mxu0 0.0
    %2729 = vmatprep.subr.mxu0 0.0
    %2730 = vmatpush2.msra.mxu0 0.0
    %2731 = vmatprep.subr.mxu0 0.0
    %2732 = vmatpush2.msra.mxu0 0.0
    %2733 = vmatprep.subr.mxu0 0.0
    %2734 = vmatpush2.msra.mxu0 0.0
    %2735 = vmatprep.subr.mxu0 0.0
    %2736 = vmatpush2.msra.mxu0 0.0
    %2737 = vmatprep.subr.mxu0 0.0
    %2738 = vmatpush2.msra.mxu0 0.0
    %2739 = vmatprep.subr.mxu0 0.0
    %2740 = vmatpush2.msra.mxu0 0.0
    %2741 = vmatprep.subr.mxu0 0.0
    %2742 = vmatpush2.msra.mxu0 0.0
    %2743 = vmatprep.subr.mxu0 0.0
    %2744 = vmatpush2.msra.mxu0 0.0
    %2745 = vmatprep.subr.mxu0 0.0
    %2746 = vmatpush2.msra.mxu0 0.0
    %2747 = vmatprep.mubr.bf16.mxu0 0
    %2748 = vmatmul.mubr.bf16.gmra.mxu0 %v2681
    %v2749 = vpop.f32.mrf.mxu0
    %v2750 = vadd.f32 0.0, %v2749
    %v2751 = vpop.f32.mrf.mxu0
    %v2752 = vadd.f32 0.0, %v2751
    %v2753 = vpop.f32.mrf.mxu0
    %v2754 = vadd.f32 0.0, %v2753
    %v2755 = vpop.f32.mrf.mxu0
    %v2756 = vadd.f32 0.0, %v2755
    %2757 = vdwg.mxu0
    %v2758 = vadd.f32 %v2641, %v2750
    %v2759 = vadd.f32 %v2642, %v2752
    %v2760 = vadd.f32 %v2643, %v2754
    %v2761 = vadd.f32 %v2644, %v2756
    %s2762 = scalar_lea.vmem [#allocation17], 32
    %v2763 = vld [vmem:[%s2762] sm:$0xf]
    %v2764 = vld [vmem:[%s2762 + $0x4] sm:$0x3]
    %v2767 = vunpack.c.l.b16 %v2763
    %v2768 = vunpack.c.l.b16 %v2764
    %v2769 = vpack.c.b16 %v2768, %v2767
    %v2771 = vsel %vm368, %v2769, 0
    %2773 = vmatprep.subr.mxu0 0.0
    %2774 = vmatpush1.msra.mxu0 0.0
    %2775 = vmatprep.subr.mxu0 0.0
    %2776 = vmatpush1.msra.mxu0 0.0
    %2777 = vmatprep.subr.mxu0 0.0
    %2778 = vmatpush1.msra.mxu0 0.0
    %2779 = vmatprep.subr.mxu0 0.0
    %2780 = vmatpush1.msra.mxu0 0.0
    %2781 = vmatprep.subr.mxu0 0.0
    %2782 = vmatpush1.msra.mxu0 0.0
    %2783 = vmatprep.subr.mxu0 0.0
    %2784 = vmatpush1.msra.mxu0 0.0
    %2785 = vmatprep.subr.mxu0 0.0
    %2786 = vmatpush1.msra.mxu0 0.0
    %2787 = vmatprep.subr.mxu0 0.0
    %2788 = vmatpush1.msra.mxu0 0.0
    %2789 = vmatprep.subr.mxu0 0.0
    %2790 = vmatpush1.msra.mxu0 0.0
    %2791 = vmatprep.subr.mxu0 0.0
    %2792 = vmatpush1.msra.mxu0 0.0
    %2793 = vmatprep.subr.mxu0 0.0
    %2794 = vmatpush1.msra.mxu0 0.0
    %2795 = vmatprep.subr.mxu0 0.0
    %2796 = vmatpush1.msra.mxu0 0.0
    %2797 = vmatprep.subr.mxu0 0.0
    %2798 = vmatpush1.msra.mxu0 0.0
    %2799 = vmatprep.subr.mxu0 %v2353
    %2800 = vmatpush1.msra.mxu0 %v2351
    %2801 = vmatprep.subr.mxu0 %v2347
    %2802 = vmatpush1.msra.mxu0 %v2345
    %2803 = vmatprep.subr.mxu0 %v2343
    %2804 = vmatpush1.msra.mxu0 %v2341
    %2805 = vmatprep.subr.mxu0 0.0
    %2806 = vmatpush2.msra.mxu0 0.0
    %2807 = vmatprep.subr.mxu0 0.0
    %2808 = vmatpush2.msra.mxu0 0.0
    %2809 = vmatprep.subr.mxu0 0.0
    %2810 = vmatpush2.msra.mxu0 0.0
    %2811 = vmatprep.subr.mxu0 0.0
    %2812 = vmatpush2.msra.mxu0 0.0
    %2813 = vmatprep.subr.mxu0 0.0
    %2814 = vmatpush2.msra.mxu0 0.0
    %2815 = vmatprep.subr.mxu0 0.0
    %2816 = vmatpush2.msra.mxu0 0.0
    %2817 = vmatprep.subr.mxu0 0.0
    %2818 = vmatpush2.msra.mxu0 0.0
    %2819 = vmatprep.subr.mxu0 0.0
    %2820 = vmatpush2.msra.mxu0 0.0
    %2821 = vmatprep.subr.mxu0 0.0
    %2822 = vmatpush2.msra.mxu0 0.0
    %2823 = vmatprep.subr.mxu0 0.0
    %2824 = vmatpush2.msra.mxu0 0.0
    %2825 = vmatprep.subr.mxu0 0.0
    %2826 = vmatpush2.msra.mxu0 0.0
    %2827 = vmatprep.subr.mxu0 0.0
    %2828 = vmatpush2.msra.mxu0 0.0
    %2829 = vmatprep.subr.mxu0 0.0
    %2830 = vmatpush2.msra.mxu0 0.0
    %2831 = vmatprep.subr.mxu0 0.0
    %2832 = vmatpush2.msra.mxu0 0.0
    %2833 = vmatprep.subr.mxu0 0.0
    %2834 = vmatpush2.msra.mxu0 0.0
    %2835 = vmatprep.subr.mxu0 0.0
    %2836 = vmatpush2.msra.mxu0 0.0
    %2837 = vmatprep.mubr.bf16.mxu0 0
    %2838 = vmatmul.mubr.bf16.gmra.mxu0 %v2771
    %v2839 = vpop.f32.mrf.mxu0
    %v2840 = vadd.f32 0.0, %v2839
    %v2841 = vpop.f32.mrf.mxu0
    %v2842 = vadd.f32 0.0, %v2841
    %v2843 = vpop.f32.mrf.mxu0
    %v2844 = vadd.f32 0.0, %v2843
    %v2845 = vpop.f32.mrf.mxu0
    %v2846 = vadd.f32 0.0, %v2845
    %2847 = vdwg.mxu0
    %v2848 = vadd.f32 %v2758, %v2840
    %v2849 = vadd.f32 %v2759, %v2842
    %v2850 = vadd.f32 %v2760, %v2844
    %v2851 = vadd.f32 %v2761, %v2846
    %v2853 = vlaneseq
    %v2854 = vshrl.u32 %v2853, 7
    %v2855 = vsub.s32 0, %v2854
    %v2856 = vrot.slane %v1612, %v2855
    %v2857 = vlaneseq
    %v2858 = vshrl.u32 %v2857, 7
    %v2859 = vsub.s32 1, %v2858
    %v2860 = vrot.slane %v1612, %v2859
    %v2863 = vadd.f32 %v2848, %v2856
    %v2864 = vadd.f32 %v2849, %v2860
    %v2865 = vadd.f32 %v2850, %v2856
    %v2866 = vadd.f32 %v2851, %v2860
    %v2867 = vmax.f32 %v2863, 0.0
    %v2868 = vmax.f32 %v2864, 0.0
    %v2869 = vmax.f32 %v2865, 0.0
    %v2870 = vmax.f32 %v2866, 0.0
    %v2871 = vsel %vm378, %v2869, 0.0
    %v2872 = vadd.f32 %v2867, %v2871
    %v2873 = vrot.slane %v2872, 4
    %v2874 = vadd.f32 %v2872, %v2873
    %v2875 = vrot.slane %v2874, 2
    %v2876 = vadd.f32 %v2874, %v2875
    %v2877 = vrot.slane %v2876, 1
    %v2878 = vadd.f32 %v2876, %v2877
    %v2879 = vsel %vm706, %v2868, 0.0
    %vm2880 = vcmask 519168
    %v2881 = vsel %vm2880, %v2870, 0.0
    %v2882 = vadd.f32 %v2879, %v2881
    %v2883 = vrot.slane %v2882, 4
    %v2884 = vadd.f32 %v2882, %v2883
    %v2885 = vrot.slane %v2884, 2
    %v2886 = vadd.f32 %v2884, %v2885
    %v2887 = vrot.slane %v2886, 1
    %v2888 = vadd.f32 %v2886, %v2887
    %v2889 = vrcp.pop 12.0
    %v2890 = vmul.f32 %v2878, %v2889
    %v2891 = vmul.f32 %v2888, %v2889
    %v2892 = vmul.f32 %v2867, %v2867
    %v2893 = vmul.f32 %v2868, %v2868
    %v2894 = vmul.f32 %v2869, %v2869
    %v2895 = vmul.f32 %v2870, %v2870
    %v2896 = vsel %vm378, %v2894, 0.0
    %v2897 = vadd.f32 %v2892, %v2896
    %v2898 = vrot.slane %v2897, 4
    %v2899 = vadd.f32 %v2897, %v2898
    %v2900 = vrot.slane %v2899, 2
    %v2901 = vadd.f32 %v2899, %v2900
    %v2902 = vrot.slane %v2901, 1
    %v2903 = vadd.f32 %v2901, %v2902
    %v2904 = vsel %vm706, %v2893, 0.0
    %v2905 = vsel %vm2880, %v2895, 0.0
    %v2906 = vadd.f32 %v2904, %v2905
    %v2907 = vrot.slane %v2906, 4
    %v2908 = vadd.f32 %v2906, %v2907
    %v2909 = vrot.slane %v2908, 2
    %v2910 = vadd.f32 %v2908, %v2909
    %v2911 = vrot.slane %v2910, 1
    %v2912 = vadd.f32 %v2910, %v2911
    %v2913 = vmul.f32 %v2903, %v2889
    %v2914 = vmul.f32 %v2912, %v2889
    %v2915 = vsel %vm1359, %v2890, %v2913
    %v2916 = vsel %vm1359, %v2891, %v2914
    %v2918 = vsel %vm706, %v2916, 0
    %2920 = vmatprep.subr.mxu0 %v1644
    %2921 = vmatpush1.msra.mxu0 %v1643
    %2922 = vmatprep.subr.mxu0 %v1642
    %2923 = vmatpush1.msra.mxu0 %v1641
    %2924 = vmatprep.subr.mxu0 %v1640
    %2925 = vmatpush1.msra.mxu0 %v1639
    %2926 = vmatprep.subr.mxu0 %v1638
    %2927 = vmatpush1.msra.mxu0 %v1637
    %2928 = vmatprep.subr.mxu0 %v1636
    %2929 = vmatpush1.msra.mxu0 %v1635
    %2930 = vmatprep.subr.mxu0 %v1634
    %2931 = vmatpush1.msra.mxu0 %v1633
    %2932 = vmatprep.subr.mxu0 %v1632
    %2933 = vmatpush1.msra.mxu0 %v1631
    %2934 = vmatprep.subr.mxu0 %v1630
    %2935 = vmatpush1.msra.mxu0 %v1629
    %2936 = vmatprep.subr.mxu0 %v1628
    %2937 = vmatpush1.msra.mxu0 %v1627
    %2938 = vmatprep.subr.mxu0 %v1626
    %2939 = vmatpush1.msra.mxu0 %v1625
    %2940 = vmatprep.subr.mxu0 %v1624
    %2941 = vmatpush1.msra.mxu0 %v1623
    %2942 = vmatprep.subr.mxu0 %v1622
    %2943 = vmatpush1.msra.mxu0 %v1621
    %2944 = vmatprep.subr.mxu0 %v1620
    %2945 = vmatpush1.msra.mxu0 %v1619
    %2946 = vmatprep.subr.mxu0 %v1618
    %2947 = vmatpush1.msra.mxu0 %v1617
    %2948 = vmatprep.subr.mxu0 %v1616
    %2949 = vmatpush1.msra.mxu0 %v1615
    %2950 = vmatprep.subr.mxu0 %v1614
    %2951 = vmatpush1.msra.mxu0 %v1613
    %2952 = vmatprep.subr.mxu0 0.0
    %2953 = vmatpush2.msra.mxu0 0.0
    %2954 = vmatprep.subr.mxu0 0.0
    %2955 = vmatpush2.msra.mxu0 0.0
    %2956 = vmatprep.subr.mxu0 0.0
    %2957 = vmatpush2.msra.mxu0 0.0
    %2958 = vmatprep.subr.mxu0 0.0
    %2959 = vmatpush2.msra.mxu0 0.0
    %2960 = vmatprep.subr.mxu0 0.0
    %2961 = vmatpush2.msra.mxu0 0.0
    %2962 = vmatprep.subr.mxu0 0.0
    %2963 = vmatpush2.msra.mxu0 0.0
    %2964 = vmatprep.subr.mxu0 0.0
    %2965 = vmatpush2.msra.mxu0 0.0
    %2966 = vmatprep.subr.mxu0 0.0
    %2967 = vmatpush2.msra.mxu0 0.0
    %2968 = vmatprep.subr.mxu0 %v1660
    %2969 = vmatpush2.msra.mxu0 %v1659
    %2970 = vmatprep.subr.mxu0 %v1658
    %2971 = vmatpush2.msra.mxu0 %v1657
    %2972 = vmatprep.subr.mxu0 %v1656
    %2973 = vmatpush2.msra.mxu0 %v1655
    %2974 = vmatprep.subr.mxu0 %v1654
    %2975 = vmatpush2.msra.mxu0 %v1653
    %2976 = vmatprep.subr.mxu0 %v1652
    %2977 = vmatpush2.msra.mxu0 %v1651
    %2978 = vmatprep.subr.mxu0 %v1650
    %2979 = vmatpush2.msra.mxu0 %v1649
    %2980 = vmatprep.subr.mxu0 %v1648
    %2981 = vmatpush2.msra.mxu0 %v1647
    %2982 = vmatprep.subr.mxu0 %v1646
    %2983 = vmatpush2.msra.mxu0 %v1645
    %2984 = vmatprep.mubr.f32.mxu0 %v2918
    %2985 = vmatmul.mubr.f32.gmra.mxu0 %v2915
    %v2986 = vpop.f32.mrf.mxu0
    %v2987 = vadd.f32 0.0, %v2986
    %v2988 = vpop.f32.mrf.mxu0
    %v2989 = vadd.f32 0.0, %v2988
    %2990 = vdwg.mxu0
    %v2991 = vmul.f32 %v2987, %v2987
    %v2992 = vmul.f32 %v2989, %v2989
    %v2995 = vrot.slane %v2991, 7
    %v2996 = vrot.slane %v2992, 7
    %v2999 = vsub.f32 %v2987, %v2995
    %v3000 = vsub.f32 %v2989, %v2996
    %v3001 = vadd.f32 %v2999, 1e-05
    %v3002 = vadd.f32 %v3000, 1e-05
    %v3003 = vrsqrt.pop %v3001
    %v3004 = vrsqrt.pop %v3002
    %v3005 = vlaneseq
    %v3006 = vshrl.u32 %v3005, 7
    %v3007 = vsub.s32 0, %v3006
    %v3008 = vrot.slane %v2987, %v3007
    %v3009 = vlaneseq
    %v3010 = vshrl.u32 %v3009, 7
    %v3011 = vsub.s32 0, %v3010
    %v3012 = vrot.slane %v2989, %v3011
    %v3013 = vsub.f32 %v2867, %v3008
    %v3014 = vsub.f32 %v2868, %v3012
    %v3015 = vsub.f32 %v2869, %v3008
    %v3016 = vsub.f32 %v2870, %v3012
    %v3018 = vlaneseq
    %v3019 = vshrl.u32 %v3018, 7
    %v3020 = vsub.s32 0, %v3019
    %v3021 = vrot.slane %v1661, %v3020
    %v3022 = vlaneseq
    %v3023 = vshrl.u32 %v3022, 7
    %v3024 = vsub.s32 1, %v3023
    %v3025 = vrot.slane %v1661, %v3024
    %v3028 = vmul.f32 %v3003, %v3021
    %v3029 = vmul.f32 %v3004, %v3025
    %v3030 = vlaneseq
    %v3031 = vshrl.u32 %v3030, 7
    %v3032 = vsub.s32 1, %v3031
    %v3033 = vrot.slane %v3028, %v3032
    %v3034 = vlaneseq
    %v3035 = vshrl.u32 %v3034, 7
    %v3036 = vsub.s32 1, %v3035
    %v3037 = vrot.slane %v3029, %v3036
    %v3038 = vmul.f32 %v3013, %v3033
    %v3039 = vmul.f32 %v3014, %v3037
    %v3040 = vmul.f32 %v3015, %v3033
    %v3041 = vmul.f32 %v3016, %v3037
    %v3043 = vlaneseq
    %v3044 = vshrl.u32 %v3043, 7
    %v3045 = vsub.s32 0, %v3044
    %v3046 = vrot.slane %v1662, %v3045
    %v3047 = vlaneseq
    %v3048 = vshrl.u32 %v3047, 7
    %v3049 = vsub.s32 1, %v3048
    %v3050 = vrot.slane %v1662, %v3049
    %v3053 = vadd.f32 %v3038, %v3046
    %v3054 = vadd.f32 %v3039, %v3050
    %v3055 = vadd.f32 %v3040, %v3046
    %v3056 = vadd.f32 %v3041, %v3050
    %s3057 = smul.u32 %s1508, 5
    %s3058 = sshll.u32 %s3057, 4
    %3059 = dma.done %s200, %s3058
    %s3060 = sshll.u32 %s1513, 4
    %3061 = dma.done %s212, %s3060
    %v3062 = vld [vmem:[#allocation4] sm:$0xff]
    %v3063 = vld [vmem:[#allocation4 + $0x8] sm:$0xff]
    %v3064 = vld [vmem:[#allocation4 + $0x10] sm:$0xf]
    %v3065 = vld [vmem:[#allocation4 + $0x14] sm:$0xff]
    %v3066 = vld [vmem:[#allocation4 + $0x1c] sm:$0xff]
    %v3067 = vld [vmem:[#allocation4 + $0x24] sm:$0xf]
    %v3068 = vld [vmem:[#allocation4 + $0x28] sm:$0xff]
    %v3069 = vld [vmem:[#allocation4 + $0x30] sm:$0xff]
    %v3070 = vld [vmem:[#allocation4 + $0x38] sm:$0xf]
    %v3071 = vld [vmem:[#allocation4 + $0x3c] sm:$0xff]
    %v3072 = vld [vmem:[#allocation4 + $0x44] sm:$0xff]
    %v3073 = vld [vmem:[#allocation4 + $0x4c] sm:$0xf]
    %v3074 = vld [vmem:[#allocation4 + $0x50] sm:$0xff]
    %v3075 = vld [vmem:[#allocation4 + $0x58] sm:$0xff]
    %v3076 = vld [vmem:[#allocation4 + $0x60] sm:$0xf]
    %v3077 = vld [vmem:[#allocation4 + $0x64] sm:$0xff]
    %v3078 = vld [vmem:[#allocation4 + $0x6c] sm:$0xff]
    %v3079 = vld [vmem:[#allocation4 + $0x74] sm:$0xf]
    %v3080 = vld [vmem:[#allocation4 + $0x78] sm:$0xff]
    %v3081 = vld [vmem:[#allocation4 + $0x80] sm:$0xff]
    %v3082 = vld [vmem:[#allocation4 + $0x88] sm:$0xf]
    %v3083 = vld [vmem:[#allocation4 + $0x8c] sm:$0xff]
    %v3084 = vld [vmem:[#allocation4 + $0x94] sm:$0xff]
    %v3085 = vld [vmem:[#allocation4 + $0x9c] sm:$0xf]
    %v3086 = vld [vmem:[#allocation4 + $0xa0] sm:$0xff]
    %v3087 = vld [vmem:[#allocation4 + $0xa8] sm:$0xff]
    %v3088 = vld [vmem:[#allocation4 + $0xb0] sm:$0xf]
    %v3089 = vld [vmem:[#allocation4 + $0xb4] sm:$0xff]
    %v3090 = vld [vmem:[#allocation4 + $0xbc] sm:$0xff]
    %v3091 = vld [vmem:[#allocation4 + $0xc4] sm:$0xf]
    %v3092 = vld [vmem:[#allocation4 + $0xc8] sm:$0xff]
    %v3093 = vld [vmem:[#allocation4 + $0xd0] sm:$0xff]
    %v3094 = vld [vmem:[#allocation4 + $0xd8] sm:$0xf]
    %v3095 = vld [vmem:[#allocation4 + $0xdc] sm:$0xff]
    %v3096 = vld [vmem:[#allocation4 + $0xe4] sm:$0xff]
    %v3097 = vld [vmem:[#allocation4 + $0xec] sm:$0xf]
    %v3098 = vld [vmem:[#allocation4 + $0xf0] sm:$0xff]
    %v3099 = vld [vmem:[#allocation4 + $0xf8] sm:$0xff]
    %v3100 = vld [vmem:[#allocation4 + $0x100] sm:$0xf]
    %v3101 = vld [vmem:[#allocation4 + $0x104] sm:$0xff]
    %v3102 = vld [vmem:[#allocation4 + $0x10c] sm:$0xff]
    %v3103 = vld [vmem:[#allocation4 + $0x114] sm:$0xf]
    %v3104 = vld [vmem:[#allocation4 + $0x118] sm:$0xff]
    %v3105 = vld [vmem:[#allocation4 + $0x120] sm:$0xff]
    %v3106 = vld [vmem:[#allocation4 + $0x128] sm:$0xf]
    %v3107 = vld [vmem:[#allocation4 + $0x12c] sm:$0xff]
    %v3108 = vld [vmem:[#allocation4 + $0x134] sm:$0xff]
    %v3109 = vld [vmem:[#allocation4 + $0x13c] sm:$0xf]
    %v3110 = vld [vmem:[#allocation4 + $0x140] sm:$0xff]
    %v3111 = vld [vmem:[#allocation4 + $0x148] sm:$0xff]
    %v3112 = vld [vmem:[#allocation4 + $0x150] sm:$0xf]
    %v3113 = vld [vmem:[#allocation4 + $0x154] sm:$0xff]
    %v3114 = vld [vmem:[#allocation4 + $0x15c] sm:$0xff]
    %v3115 = vld [vmem:[#allocation4 + $0x164] sm:$0xf]
    %v3116 = vld [vmem:[#allocation4 + $0x168] sm:$0xff]
    %v3117 = vld [vmem:[#allocation4 + $0x170] sm:$0xff]
    %v3118 = vld [vmem:[#allocation4 + $0x178] sm:$0xf]
    %v3119 = vld [vmem:[#allocation4 + $0x17c] sm:$0xff]
    %v3120 = vld [vmem:[#allocation4 + $0x184] sm:$0xff]
    %v3121 = vld [vmem:[#allocation4 + $0x18c] sm:$0xf]
    %v3122 = vld [vmem:[#allocation4 + $0x190] sm:$0xff]
    %v3123 = vld [vmem:[#allocation4 + $0x198] sm:$0xff]
    %v3124 = vld [vmem:[#allocation4 + $0x1a0] sm:$0xf]
    %v3125 = vld [vmem:[#allocation4 + $0x1a4] sm:$0xff]
    %v3126 = vld [vmem:[#allocation4 + $0x1ac] sm:$0xff]
    %v3127 = vld [vmem:[#allocation4 + $0x1b4] sm:$0xf]
    %v3128 = vld [vmem:[#allocation4 + $0x1b8] sm:$0xff]
    %v3129 = vld [vmem:[#allocation4 + $0x1c0] sm:$0xff]
    %v3130 = vld [vmem:[#allocation4 + $0x1c8] sm:$0xf]
    %v3131 = vld [vmem:[#allocation4 + $0x1cc] sm:$0xff]
    %v3132 = vld [vmem:[#allocation4 + $0x1d4] sm:$0xff]
    %v3133 = vld [vmem:[#allocation4 + $0x1dc] sm:$0xf]
    %v3134 = vld [vmem:[#allocation20] sm:$0x3]
    %v3135 = vld [vmem:[#allocation5] sm:$0xff]
    %v3136 = vld [vmem:[#allocation5 + $0x8] sm:$0xff]
    %v3137 = vld [vmem:[#allocation5 + $0x10] sm:$0xff]
    %v3138 = vld [vmem:[#allocation5 + $0x18] sm:$0xff]
    %v3139 = vld [vmem:[#allocation5 + $0x20] sm:$0xff]
    %v3140 = vld [vmem:[#allocation5 + $0x28] sm:$0xff]
    %v3141 = vld [vmem:[#allocation5 + $0x30] sm:$0xff]
    %v3142 = vld [vmem:[#allocation5 + $0x38] sm:$0xff]
    %v3143 = vld [vmem:[#allocation5 + $0x40] sm:$0xff]
    %v3144 = vld [vmem:[#allocation5 + $0x48] sm:$0xff]
    %v3145 = vld [vmem:[#allocation5 + $0x50] sm:$0xff]
    %v3146 = vld [vmem:[#allocation5 + $0x58] sm:$0xff]
    %v3147 = vld [vmem:[#allocation5 + $0x60] sm:$0xff]
    %v3148 = vld [vmem:[#allocation5 + $0x68] sm:$0xff]
    %v3149 = vld [vmem:[#allocation5 + $0x70] sm:$0xff]
    %v3150 = vld [vmem:[#allocation5 + $0x78] sm:$0xff]
    %v3151 = vld [vmem:[#allocation5 + $0x80] sm:$0xff]
    %v3152 = vld [vmem:[#allocation5 + $0x88] sm:$0xff]
    %v3153 = vld [vmem:[#allocation5 + $0x90] sm:$0xff]
    %v3154 = vld [vmem:[#allocation5 + $0x98] sm:$0xff]
    %v3155 = vld [vmem:[#allocation5 + $0xa0] sm:$0xff]
    %v3156 = vld [vmem:[#allocation5 + $0xa8] sm:$0xff]
    %v3157 = vld [vmem:[#allocation5 + $0xb0] sm:$0xff]
    %v3158 = vld [vmem:[#allocation5 + $0xb8] sm:$0xff]
    %v3159 = vld [vmem:[#allocation5 + $0xc0] sm:$0xff]
    %v3160 = vld [vmem:[#allocation5 + $0xc8] sm:$0xff]
    %v3161 = vld [vmem:[#allocation5 + $0xd0] sm:$0xff]
    %v3162 = vld [vmem:[#allocation5 + $0xd8] sm:$0xff]
    %v3163 = vld [vmem:[#allocation5 + $0xe0] sm:$0xff]
    %v3164 = vld [vmem:[#allocation5 + $0xe8] sm:$0xff]
    %v3165 = vld [vmem:[#allocation5 + $0xf0] sm:$0xff]
    %v3166 = vld [vmem:[#allocation5 + $0xf8] sm:$0xff]
    %v3167 = vld [vmem:[#allocation5 + $0x100] sm:$0xff]
    %v3168 = vld [vmem:[#allocation5 + $0x108] sm:$0xff]
    %v3169 = vld [vmem:[#allocation5 + $0x110] sm:$0xff]
    %v3170 = vld [vmem:[#allocation5 + $0x118] sm:$0xff]
    %v3171 = vld [vmem:[#allocation5 + $0x120] sm:$0xff]
    %v3172 = vld [vmem:[#allocation5 + $0x128] sm:$0xff]
    %v3173 = vld [vmem:[#allocation5 + $0x130] sm:$0xff]
    %v3174 = vld [vmem:[#allocation5 + $0x138] sm:$0xff]
    %v3175 = vld [vmem:[#allocation5 + $0x140] sm:$0xff]
    %v3176 = vld [vmem:[#allocation5 + $0x148] sm:$0xff]
    %v3177 = vld [vmem:[#allocation5 + $0x150] sm:$0xff]
    %v3178 = vld [vmem:[#allocation5 + $0x158] sm:$0xff]
    %v3179 = vld [vmem:[#allocation5 + $0x160] sm:$0xff]
    %v3180 = vld [vmem:[#allocation5 + $0x168] sm:$0xff]
    %v3181 = vld [vmem:[#allocation5 + $0x170] sm:$0xff]
    %v3182 = vld [vmem:[#allocation5 + $0x178] sm:$0xff]
    %v3183 = vld [vmem:[%s13] sm:$0x3]
    %v3184 = vld [vmem:[#allocation22] sm:$0x3]
    %v3185 = vpack.c.bf16 %v3055, %v3053
    %v3186 = vpack.c.bf16 %v3056, %v3054
    %v3259 = vunpack.c.l.b16 %v3062
    %v3260 = vunpack.c.h.b16 %v3062
    %v3261 = vunpack.c.l.b16 %v3063
    %v3262 = vunpack.c.h.b16 %v3063
    %v3263 = vunpack.c.l.b16 %v3064
    %v3264 = vunpack.c.l.b16 %v3065
    %v3265 = vunpack.c.h.b16 %v3065
    %v3266 = vunpack.c.l.b16 %v3066
    %v3267 = vunpack.c.h.b16 %v3066
    %v3268 = vunpack.c.l.b16 %v3067
    %v3269 = vunpack.c.l.b16 %v3068
    %v3270 = vunpack.c.h.b16 %v3068
    %v3271 = vunpack.c.l.b16 %v3069
    %v3272 = vunpack.c.h.b16 %v3069
    %v3273 = vunpack.c.l.b16 %v3070
    %v3274 = vunpack.c.l.b16 %v3071
    %v3275 = vunpack.c.h.b16 %v3071
    %v3276 = vunpack.c.l.b16 %v3072
    %v3277 = vunpack.c.h.b16 %v3072
    %v3278 = vunpack.c.l.b16 %v3073
    %v3279 = vunpack.c.l.b16 %v3074
    %v3280 = vunpack.c.h.b16 %v3074
    %v3281 = vunpack.c.l.b16 %v3075
    %v3282 = vunpack.c.h.b16 %v3075
    %v3283 = vunpack.c.l.b16 %v3076
    %v3284 = vunpack.c.l.b16 %v3077
    %v3285 = vunpack.c.h.b16 %v3077
    %v3286 = vunpack.c.l.b16 %v3078
    %v3287 = vunpack.c.h.b16 %v3078
    %v3288 = vunpack.c.l.b16 %v3079
    %v3289 = vunpack.c.l.b16 %v3080
    %v3290 = vunpack.c.h.b16 %v3080
    %v3291 = vunpack.c.l.b16 %v3081
    %v3292 = vunpack.c.h.b16 %v3081
    %v3293 = vunpack.c.l.b16 %v3082
    %v3294 = vunpack.c.l.b16 %v3083
    %v3295 = vunpack.c.h.b16 %v3083
    %v3296 = vunpack.c.l.b16 %v3084
    %v3297 = vunpack.c.h.b16 %v3084
    %v3298 = vunpack.c.l.b16 %v3085
    %v3299 = vunpack.c.l.b16 %v3086
    %v3300 = vunpack.c.h.b16 %v3086
    %v3301 = vunpack.c.l.b16 %v3087
    %v3302 = vunpack.c.h.b16 %v3087
    %v3303 = vunpack.c.l.b16 %v3088
    %v3304 = vunpack.c.l.b16 %v3089
    %v3305 = vunpack.c.h.b16 %v3089
    %v3306 = vunpack.c.l.b16 %v3090
    %v3307 = vunpack.c.h.b16 %v3090
    %v3308 = vunpack.c.l.b16 %v3091
    %v3309 = vunpack.c.l.b16 %v3092
    %v3310 = vunpack.c.h.b16 %v3092
    %v3311 = vunpack.c.l.b16 %v3093
    %v3312 = vunpack.c.h.b16 %v3093
    %v3313 = vunpack.c.l.b16 %v3094
    %v3314 = vunpack.c.l.b16 %v3095
    %v3315 = vunpack.c.h.b16 %v3095
    %v3316 = vunpack.c.l.b16 %v3096
    %v3317 = vunpack.c.h.b16 %v3096
    %v3318 = vunpack.c.l.b16 %v3097
    %v3319 = vunpack.c.l.b16 %v3098
    %v3320 = vunpack.c.h.b16 %v3098
    %v3321 = vunpack.c.l.b16 %v3099
    %v3322 = vunpack.c.h.b16 %v3099
    %v3323 = vunpack.c.l.b16 %v3100
    %v3324 = vunpack.c.l.b16 %v3101
    %v3325 = vunpack.c.h.b16 %v3101
    %v3326 = vunpack.c.l.b16 %v3102
    %v3327 = vunpack.c.h.b16 %v3102
    %v3328 = vunpack.c.l.b16 %v3103
    %v3329 = vunpack.c.l.b16 %v3104
    %v3330 = vunpack.c.h.b16 %v3104
    %v3331 = vunpack.c.l.b16 %v3105
    %v3332 = vunpack.c.h.b16 %v3105
    %v3333 = vunpack.c.l.b16 %v3106
    %v3334 = vunpack.c.l.b16 %v3107
    %v3335 = vunpack.c.h.b16 %v3107
    %v3336 = vunpack.c.l.b16 %v3108
    %v3337 = vunpack.c.h.b16 %v3108
    %v3338 = vunpack.c.l.b16 %v3109
    %v3339 = vunpack.c.l.b16 %v3110
    %v3340 = vunpack.c.h.b16 %v3110
    %v3341 = vunpack.c.l.b16 %v3111
    %v3342 = vunpack.c.h.b16 %v3111
    %v3343 = vunpack.c.l.b16 %v3112
    %v3344 = vunpack.c.l.b16 %v3113
    %v3345 = vunpack.c.h.b16 %v3113
    %v3346 = vunpack.c.l.b16 %v3114
    %v3347 = vunpack.c.h.b16 %v3114
    %v3348 = vunpack.c.l.b16 %v3115
    %v3349 = vunpack.c.l.b16 %v3116
    %v3350 = vunpack.c.h.b16 %v3116
    %v3351 = vunpack.c.l.b16 %v3117
    %v3352 = vunpack.c.h.b16 %v3117
    %v3353 = vunpack.c.l.b16 %v3118
    %v3354 = vunpack.c.l.b16 %v3119
    %v3355 = vunpack.c.h.b16 %v3119
    %v3356 = vunpack.c.l.b16 %v3120
    %v3357 = vunpack.c.h.b16 %v3120
    %v3358 = vunpack.c.l.b16 %v3121
    %v3359 = vunpack.c.l.b16 %v3122
    %v3360 = vunpack.c.h.b16 %v3122
    %v3361 = vunpack.c.l.b16 %v3123
    %v3362 = vunpack.c.h.b16 %v3123
    %v3363 = vunpack.c.l.b16 %v3124
    %v3364 = vunpack.c.l.b16 %v3125
    %v3365 = vunpack.c.h.b16 %v3125
    %v3366 = vunpack.c.l.b16 %v3126
    %v3367 = vunpack.c.h.b16 %v3126
    %v3368 = vunpack.c.l.b16 %v3127
    %v3369 = vunpack.c.l.b16 %v3128
    %v3370 = vunpack.c.h.b16 %v3128
    %v3371 = vunpack.c.l.b16 %v3129
    %v3372 = vunpack.c.h.b16 %v3129
    %v3373 = vunpack.c.l.b16 %v3130
    %v3374 = vunpack.c.l.b16 %v3131
    %v3375 = vunpack.c.h.b16 %v3131
    %v3376 = vunpack.c.l.b16 %v3132
    %v3377 = vunpack.c.h.b16 %v3132
    %v3378 = vunpack.c.l.b16 %v3133
    %v3379 = vpack.c.b16 %v3264, %v3259
    %v3380 = vpack.c.b16 %v3265, %v3260
    %v3381 = vpack.c.b16 %v3266, %v3261
    %v3382 = vpack.c.b16 %v3267, %v3262
    %v3383 = vpack.c.b16 %v3268, %v3263
    %v3384 = vpack.c.b16 %v3274, %v3269
    %v3385 = vpack.c.b16 %v3275, %v3270
    %v3386 = vpack.c.b16 %v3276, %v3271
    %v3387 = vpack.c.b16 %v3277, %v3272
    %v3388 = vpack.c.b16 %v3278, %v3273
    %v3389 = vpack.c.b16 %v3284, %v3279
    %v3390 = vpack.c.b16 %v3285, %v3280
    %v3391 = vpack.c.b16 %v3286, %v3281
    %v3392 = vpack.c.b16 %v3287, %v3282
    %v3393 = vpack.c.b16 %v3288, %v3283
    %v3394 = vpack.c.b16 %v3294, %v3289
    %v3395 = vpack.c.b16 %v3295, %v3290
    %v3396 = vpack.c.b16 %v3296, %v3291
    %v3397 = vpack.c.b16 %v3297, %v3292
    %v3398 = vpack.c.b16 %v3298, %v3293
    %v3399 = vpack.c.b16 %v3304, %v3299
    %v3400 = vpack.c.b16 %v3305, %v3300
    %v3401 = vpack.c.b16 %v3306, %v3301
    %v3402 = vpack.c.b16 %v3307, %v3302
    %v3403 = vpack.c.b16 %v3308, %v3303
    %v3404 = vpack.c.b16 %v3314, %v3309
    %v3405 = vpack.c.b16 %v3315, %v3310
    %v3406 = vpack.c.b16 %v3316, %v3311
    %v3407 = vpack.c.b16 %v3317, %v3312
    %v3408 = vpack.c.b16 %v3318, %v3313
    %v3409 = vpack.c.b16 %v3324, %v3319
    %v3410 = vpack.c.b16 %v3325, %v3320
    %v3411 = vpack.c.b16 %v3326, %v3321
    %v3412 = vpack.c.b16 %v3327, %v3322
    %v3413 = vpack.c.b16 %v3328, %v3323
    %v3414 = vpack.c.b16 %v3334, %v3329
    %v3415 = vpack.c.b16 %v3335, %v3330
    %v3416 = vpack.c.b16 %v3336, %v3331
    %v3417 = vpack.c.b16 %v3337, %v3332
    %v3418 = vpack.c.b16 %v3338, %v3333
    %v3419 = vpack.c.b16 %v3344, %v3339
    %v3420 = vpack.c.b16 %v3345, %v3340
    %v3421 = vpack.c.b16 %v3346, %v3341
    %v3422 = vpack.c.b16 %v3347, %v3342
    %v3423 = vpack.c.b16 %v3348, %v3343
    %v3424 = vpack.c.b16 %v3354, %v3349
    %v3425 = vpack.c.b16 %v3355, %v3350
    %v3426 = vpack.c.b16 %v3356, %v3351
    %v3427 = vpack.c.b16 %v3357, %v3352
    %v3428 = vpack.c.b16 %v3358, %v3353
    %v3429 = vpack.c.b16 %v3364, %v3359
    %v3430 = vpack.c.b16 %v3365, %v3360
    %v3431 = vpack.c.b16 %v3366, %v3361
    %v3432 = vpack.c.b16 %v3367, %v3362
    %v3433 = vpack.c.b16 %v3368, %v3363
    %v3434 = vpack.c.b16 %v3374, %v3369
    %v3435 = vpack.c.b16 %v3375, %v3370
    %v3436 = vpack.c.b16 %v3376, %v3371
    %v3437 = vpack.c.b16 %v3377, %v3372
    %v3438 = vpack.c.b16 %v3378, %v3373
    %v3500 = vsel %vm706, %v3186, 0
    %3502 = vmatprep.subr.bf16.mxu0 %v3415
    %3503 = vmatpush1.bf16.msra.mxu0 %v3414
    %3504 = vmatprep.subr.bf16.mxu0 %v3410
    %3505 = vmatpush1.bf16.msra.mxu0 %v3409
    %3506 = vmatprep.subr.bf16.mxu0 %v3405
    %3507 = vmatpush1.bf16.msra.mxu0 %v3404
    %3508 = vmatprep.subr.bf16.mxu0 %v3400
    %3509 = vmatpush1.bf16.msra.mxu0 %v3399
    %3510 = vmatprep.subr.bf16.mxu0 %v3395
    %3511 = vmatpush1.bf16.msra.mxu0 %v3394
    %3512 = vmatprep.subr.bf16.mxu0 %v3390
    %3513 = vmatpush1.bf16.msra.mxu0 %v3389
    %3514 = vmatprep.subr.bf16.mxu0 %v3385
    %3515 = vmatpush1.bf16.msra.mxu0 %v3384
    %3516 = vmatprep.subr.bf16.mxu0 %v3380
    %3517 = vmatpush1.bf16.msra.mxu0 %v3379
    %3518 = vmatprep.subr.bf16.mxu0 0
    %3519 = vmatpush2.bf16.msra.mxu0 0
    %3520 = vmatprep.subr.bf16.mxu0 0
    %3521 = vmatpush2.bf16.msra.mxu0 0
    %3522 = vmatprep.subr.bf16.mxu0 0
    %3523 = vmatpush2.bf16.msra.mxu0 0
    %3524 = vmatprep.subr.bf16.mxu0 0
    %3525 = vmatpush2.bf16.msra.mxu0 0
    %3526 = vmatprep.subr.bf16.mxu0 %v3435
    %3527 = vmatpush2.bf16.msra.mxu0 %v3434
    %3528 = vmatprep.subr.bf16.mxu0 %v3430
    %3529 = vmatpush2.bf16.msra.mxu0 %v3429
    %3530 = vmatprep.subr.bf16.mxu0 %v3425
    %3531 = vmatpush2.bf16.msra.mxu0 %v3424
    %3532 = vmatprep.subr.bf16.mxu0 %v3420
    %3533 = vmatpush2.bf16.msra.mxu0 %v3419
    %3534 = vmatprep.mubr.bf16.mxu0 %v3500
    %3535 = vmatmul.mubr.bf16.gmra.mxu0 %v3185
    %v3536 = vpop.f32.mrf.mxu0
    %v3537 = vadd.f32 0.0, %v3536
    %v3538 = vpop.f32.mrf.mxu0
    %v3539 = vadd.f32 0.0, %v3538
    %v3540 = vpop.f32.mrf.mxu0
    %v3541 = vadd.f32 0.0, %v3540
    %v3542 = vpop.f32.mrf.mxu0
    %v3543 = vadd.f32 0.0, %v3542
    %3544 = vdwg.mxu0
    %3545 = vmatprep.subr.bf16.mxu0 %v3417
    %3546 = vmatpush1.bf16.msra.mxu0 %v3416
    %3547 = vmatprep.subr.bf16.mxu0 %v3412
    %3548 = vmatpush1.bf16.msra.mxu0 %v3411
    %3549 = vmatprep.subr.bf16.mxu0 %v3407
    %3550 = vmatpush1.bf16.msra.mxu0 %v3406
    %3551 = vmatprep.subr.bf16.mxu0 %v3402
    %3552 = vmatpush1.bf16.msra.mxu0 %v3401
    %3553 = vmatprep.subr.bf16.mxu0 %v3397
    %3554 = vmatpush1.bf16.msra.mxu0 %v3396
    %3555 = vmatprep.subr.bf16.mxu0 %v3392
    %3556 = vmatpush1.bf16.msra.mxu0 %v3391
    %3557 = vmatprep.subr.bf16.mxu0 %v3387
    %3558 = vmatpush1.bf16.msra.mxu0 %v3386
    %3559 = vmatprep.subr.bf16.mxu0 %v3382
    %3560 = vmatpush1.bf16.msra.mxu0 %v3381
    %3561 = vmatprep.subr.bf16.mxu0 0
    %3562 = vmatpush2.bf16.msra.mxu0 0
    %3563 = vmatprep.subr.bf16.mxu0 0
    %3564 = vmatpush2.bf16.msra.mxu0 0
    %3565 = vmatprep.subr.bf16.mxu0 0
    %3566 = vmatpush2.bf16.msra.mxu0 0
    %3567 = vmatprep.subr.bf16.mxu0 0
    %3568 = vmatpush2.bf16.msra.mxu0 0
    %3569 = vmatprep.subr.bf16.mxu0 %v3437
    %3570 = vmatpush2.bf16.msra.mxu0 %v3436
    %3571 = vmatprep.subr.bf16.mxu0 %v3432
    %3572 = vmatpush2.bf16.msra.mxu0 %v3431
    %3573 = vmatprep.subr.bf16.mxu0 %v3427
    %3574 = vmatpush2.bf16.msra.mxu0 %v3426
    %3575 = vmatprep.subr.bf16.mxu0 %v3422
    %3576 = vmatpush2.bf16.msra.mxu0 %v3421
    %3577 = vmatprep.mubr.bf16.mxu0 %v3500
    %3578 = vmatmul.mubr.bf16.gmra.mxu0 %v3185
    %v3579 = vpop.f32.mrf.mxu0
    %v3580 = vadd.f32 0.0, %v3579
    %v3581 = vpop.f32.mrf.mxu0
    %v3582 = vadd.f32 0.0, %v3581
    %v3583 = vpop.f32.mrf.mxu0
    %v3584 = vadd.f32 0.0, %v3583
    %v3585 = vpop.f32.mrf.mxu0
    %v3586 = vadd.f32 0.0, %v3585
    %3587 = vdwg.mxu0
    %3588 = vmatprep.subr.bf16.mxu0 0
    %3589 = vmatpush1.bf16.msra.mxu0 %v3418
    %3590 = vmatprep.subr.bf16.mxu0 0
    %3591 = vmatpush1.bf16.msra.mxu0 %v3413
    %3592 = vmatprep.subr.bf16.mxu0 0
    %3593 = vmatpush1.bf16.msra.mxu0 %v3408
    %3594 = vmatprep.subr.bf16.mxu0 0
    %3595 = vmatpush1.bf16.msra.mxu0 %v3403
    %3596 = vmatprep.subr.bf16.mxu0 0
    %3597 = vmatpush1.bf16.msra.mxu0 %v3398
    %3598 = vmatprep.subr.bf16.mxu0 0
    %3599 = vmatpush1.bf16.msra.mxu0 %v3393
    %3600 = vmatprep.subr.bf16.mxu0 0
    %3601 = vmatpush1.bf16.msra.mxu0 %v3388
    %3602 = vmatprep.subr.bf16.mxu0 0
    %3603 = vmatpush1.bf16.msra.mxu0 %v3383
    %3604 = vmatprep.subr.bf16.mxu0 0
    %3605 = vmatpush2.bf16.msra.mxu0 0
    %3606 = vmatprep.subr.bf16.mxu0 0
    %3607 = vmatpush2.bf16.msra.mxu0 0
    %3608 = vmatprep.subr.bf16.mxu0 0
    %3609 = vmatpush2.bf16.msra.mxu0 0
    %3610 = vmatprep.subr.bf16.mxu0 0
    %3611 = vmatpush2.bf16.msra.mxu0 0
    %3612 = vmatprep.subr.bf16.mxu0 0
    %3613 = vmatpush2.bf16.msra.mxu0 %v3438
    %3614 = vmatprep.subr.bf16.mxu0 0
    %3615 = vmatpush2.bf16.msra.mxu0 %v3433
    %3616 = vmatprep.subr.bf16.mxu0 0
    %3617 = vmatpush2.bf16.msra.mxu0 %v3428
    %3618 = vmatprep.subr.bf16.mxu0 0
    %3619 = vmatpush2.bf16.msra.mxu0 %v3423
    %3620 = vmatprep.mubr.bf16.mxu0 %v3500
    %3621 = vmatmul.mubr.bf16.gmra.mxu0 %v3185
    %v3622 = vpop.f32.mrf.mxu0
    %v3623 = vadd.f32 0.0, %v3622
    %v3624 = vpop.f32.mrf.mxu0
    %v3625 = vpop.f32.mrf.mxu0
    %v3626 = vadd.f32 0.0, %v3625
    %v3627 = vpop.f32.mrf.mxu0
    %3628 = vdwg.mxu0
    %v3629 = vld [vmem:[%s11] sm:$0xf]
    %v3630 = vld [vmem:[%s11 + $0x4] sm:$0x3]
    %s3631 = scalar_lea.vmem %s11, 8
    %v3632 = vld [vmem:[%s3631] sm:$0xf]
    %v3633 = vld [vmem:[%s3631 + $0x4] sm:$0x3]
    %v3636 = vunpack.c.l.b16 %v3632
    %v3637 = vunpack.c.l.b16 %v3633
    %v3638 = vpack.c.b16 %v3637, %v3636
    %3643 = vrot.lane.b32.xlu0 %v3539, 64
    %v3644 = vpop.permute.xlu0 %3643
    %3645 = vrot.lane.b32.xlu0 %v3580, 64
    %v3646 = vpop.permute.xlu0 %3645
    %3647 = vrot.lane.b32.xlu0 %v3543, 64
    %v3648 = vpop.permute.xlu0 %3647
    %3649 = vrot.lane.b32.xlu0 %v3584, 64
    %v3650 = vpop.permute.xlu0 %3649
    %v3651 = vsel %vm706, %v3644, %v3646
    %v3652 = vsel %vm706, %v3648, %v3650
    %vm3655 = vcmask 97280
    %v3657 = vsel %vm3655, %v3638, 0
    %v3659 = vsel %vm378, %v3652, 0
    %v3661 = vsel %vm378, %v3650, 0
    %3663 = vmatprep.subr.mxu0 0.0
    %3664 = vmatpush1.msra.mxu0 0.0
    %3665 = vmatprep.subr.mxu0 0.0
    %3666 = vmatpush1.msra.mxu0 0.0
    %3667 = vmatprep.subr.mxu0 0.0
    %3668 = vmatpush1.msra.mxu0 0.0
    %3669 = vmatprep.subr.mxu0 0.0
    %3670 = vmatpush1.msra.mxu0 0.0
    %3671 = vmatprep.subr.mxu0 0.0
    %3672 = vmatpush1.msra.mxu0 0.0
    %3673 = vmatprep.subr.mxu0 0.0
    %3674 = vmatpush1.msra.mxu0 0.0
    %3675 = vmatprep.subr.mxu0 0.0
    %3676 = vmatpush1.msra.mxu0 0.0
    %3677 = vmatprep.subr.mxu0 0.0
    %3678 = vmatpush1.msra.mxu0 0.0
    %3679 = vmatprep.subr.mxu0 0.0
    %3680 = vmatpush1.msra.mxu0 0.0
    %3681 = vmatprep.subr.mxu0 0.0
    %3682 = vmatpush1.msra.mxu0 0.0
    %3683 = vmatprep.subr.mxu0 0.0
    %3684 = vmatpush1.msra.mxu0 0.0
    %3685 = vmatprep.subr.mxu0 0.0
    %3686 = vmatpush1.msra.mxu0 0.0
    %3687 = vmatprep.subr.mxu0 0.0
    %3688 = vmatpush1.msra.mxu0 0.0
    %3689 = vmatprep.subr.mxu0 0.0
    %3690 = vmatpush1.msra.mxu0 0.0
    %3691 = vmatprep.subr.mxu0 %v3661
    %3692 = vmatpush1.msra.mxu0 %v3659
    %3693 = vmatprep.subr.mxu0 %v3646
    %3694 = vmatpush1.msra.mxu0 %v3651
    %3695 = vmatprep.subr.mxu0 0.0
    %3696 = vmatpush2.msra.mxu0 0.0
    %3697 = vmatprep.subr.mxu0 0.0
    %3698 = vmatpush2.msra.mxu0 0.0
    %3699 = vmatprep.subr.mxu0 0.0
    %3700 = vmatpush2.msra.mxu0 0.0
    %3701 = vmatprep.subr.mxu0 0.0
    %3702 = vmatpush2.msra.mxu0 0.0
    %3703 = vmatprep.subr.mxu0 0.0
    %3704 = vmatpush2.msra.mxu0 0.0
    %3705 = vmatprep.subr.mxu0 0.0
    %3706 = vmatpush2.msra.mxu0 0.0
    %3707 = vmatprep.subr.mxu0 0.0
    %3708 = vmatpush2.msra.mxu0 0.0
    %3709 = vmatprep.subr.mxu0 0.0
    %3710 = vmatpush2.msra.mxu0 0.0
    %3711 = vmatprep.subr.mxu0 0.0
    %3712 = vmatpush2.msra.mxu0 0.0
    %3713 = vmatprep.subr.mxu0 0.0
    %3714 = vmatpush2.msra.mxu0 0.0
    %3715 = vmatprep.subr.mxu0 0.0
    %3716 = vmatpush2.msra.mxu0 0.0
    %3717 = vmatprep.subr.mxu0 0.0
    %3718 = vmatpush2.msra.mxu0 0.0
    %3719 = vmatprep.subr.mxu0 0.0
    %3720 = vmatpush2.msra.mxu0 0.0
    %3721 = vmatprep.subr.mxu0 0.0
    %3722 = vmatpush2.msra.mxu0 0.0
    %3723 = vmatprep.subr.mxu0 0.0
    %3724 = vmatpush2.msra.mxu0 0.0
    %3725 = vmatprep.subr.mxu0 0.0
    %3726 = vmatpush2.msra.mxu0 0.0
    %3727 = vmatprep.mubr.bf16.mxu0 0
    %3728 = vmatmul.mubr.bf16.gmra.mxu0 %v3657
    %v3729 = vpop.f32.mrf.mxu0
    %v3730 = vadd.f32 0.0, %v3729
    %v3731 = vpop.f32.mrf.mxu0
    %v3732 = vadd.f32 0.0, %v3731
    %v3733 = vpop.f32.mrf.mxu0
    %v3734 = vadd.f32 0.0, %v3733
    %v3735 = vpop.f32.mrf.mxu0
    %v3736 = vadd.f32 0.0, %v3735
    %3737 = vdwg.mxu0
    %v3740 = vunpack.c.l.b16 %v3629
    %v3741 = vunpack.c.l.b16 %v3630
    %v3742 = vpack.c.b16 %v3741, %v3740
    %v3744 = vsel %vm3655, %v3742, 0
    %v3747 = vsel %vm378, %v3541, 0
    %v3749 = vsel %vm378, %v3543, 0
    %3751 = vmatprep.subr.mxu0 0.0
    %3752 = vmatpush1.msra.mxu0 0.0
    %3753 = vmatprep.subr.mxu0 0.0
    %3754 = vmatpush1.msra.mxu0 0.0
    %3755 = vmatprep.subr.mxu0 0.0
    %3756 = vmatpush1.msra.mxu0 0.0
    %3757 = vmatprep.subr.mxu0 0.0
    %3758 = vmatpush1.msra.mxu0 0.0
    %3759 = vmatprep.subr.mxu0 0.0
    %3760 = vmatpush1.msra.mxu0 0.0
    %3761 = vmatprep.subr.mxu0 0.0
    %3762 = vmatpush1.msra.mxu0 0.0
    %3763 = vmatprep.subr.mxu0 0.0
    %3764 = vmatpush1.msra.mxu0 0.0
    %3765 = vmatprep.subr.mxu0 0.0
    %3766 = vmatpush1.msra.mxu0 0.0
    %3767 = vmatprep.subr.mxu0 0.0
    %3768 = vmatpush1.msra.mxu0 0.0
    %3769 = vmatprep.subr.mxu0 0.0
    %3770 = vmatpush1.msra.mxu0 0.0
    %3771 = vmatprep.subr.mxu0 0.0
    %3772 = vmatpush1.msra.mxu0 0.0
    %3773 = vmatprep.subr.mxu0 0.0
    %3774 = vmatpush1.msra.mxu0 0.0
    %3775 = vmatprep.subr.mxu0 0.0
    %3776 = vmatpush1.msra.mxu0 0.0
    %3777 = vmatprep.subr.mxu0 0.0
    %3778 = vmatpush1.msra.mxu0 0.0
    %3779 = vmatprep.subr.mxu0 %v3749
    %3780 = vmatpush1.msra.mxu0 %v3747
    %3781 = vmatprep.subr.mxu0 %v3539
    %3782 = vmatpush1.msra.mxu0 %v3537
    %3783 = vmatprep.subr.mxu0 0.0
    %3784 = vmatpush2.msra.mxu0 0.0
    %3785 = vmatprep.subr.mxu0 0.0
    %3786 = vmatpush2.msra.mxu0 0.0
    %3787 = vmatprep.subr.mxu0 0.0
    %3788 = vmatpush2.msra.mxu0 0.0
    %3789 = vmatprep.subr.mxu0 0.0
    %3790 = vmatpush2.msra.mxu0 0.0
    %3791 = vmatprep.subr.mxu0 0.0
    %3792 = vmatpush2.msra.mxu0 0.0
    %3793 = vmatprep.subr.mxu0 0.0
    %3794 = vmatpush2.msra.mxu0 0.0
    %3795 = vmatprep.subr.mxu0 0.0
    %3796 = vmatpush2.msra.mxu0 0.0
    %3797 = vmatprep.subr.mxu0 0.0
    %3798 = vmatpush2.msra.mxu0 0.0
    %3799 = vmatprep.subr.mxu0 0.0
    %3800 = vmatpush2.msra.mxu0 0.0
    %3801 = vmatprep.subr.mxu0 0.0
    %3802 = vmatpush2.msra.mxu0 0.0
    %3803 = vmatprep.subr.mxu0 0.0
    %3804 = vmatpush2.msra.mxu0 0.0
    %3805 = vmatprep.subr.mxu0 0.0
    %3806 = vmatpush2.msra.mxu0 0.0
    %3807 = vmatprep.subr.mxu0 0.0
    %3808 = vmatpush2.msra.mxu0 0.0
    %3809 = vmatprep.subr.mxu0 0.0
    %3810 = vmatpush2.msra.mxu0 0.0
    %3811 = vmatprep.subr.mxu0 0.0
    %3812 = vmatpush2.msra.mxu0 0.0
    %3813 = vmatprep.subr.mxu0 0.0
    %3814 = vmatpush2.msra.mxu0 0.0
    %3815 = vmatprep.mubr.bf16.mxu0 0
    %3816 = vmatmul.mubr.bf16.gmra.mxu0 %v3744
    %v3817 = vpop.f32.mrf.mxu0
    %v3818 = vadd.f32 %v3730, %v3817
    %v3819 = vpop.f32.mrf.mxu0
    %v3820 = vadd.f32 %v3732, %v3819
    %v3821 = vpop.f32.mrf.mxu0
    %v3822 = vadd.f32 %v3734, %v3821
    %v3823 = vpop.f32.mrf.mxu0
    %v3824 = vadd.f32 %v3736, %v3823
    %3825 = vdwg.mxu0
    %s3826 = scalar_lea.vmem %s11, 16
    %v3827 = vld [vmem:[%s3826] sm:$0xf]
    %v3828 = vld [vmem:[%s3826 + $0x4] sm:$0x3]
    %v3831 = vunpack.c.l.b16 %v3827
    %v3832 = vunpack.c.l.b16 %v3828
    %v3833 = vpack.c.b16 %v3832, %v3831
    %v3835 = vsel %vm3655, %v3833, 0
    %v3838 = vsel %vm378, %v3586, 0
    %v3841 = vsel %vm378, %v3626, 0
    %3843 = vmatprep.subr.mxu0 0.0
    %3844 = vmatpush1.msra.mxu0 0.0
    %3845 = vmatprep.subr.mxu0 0.0
    %3846 = vmatpush1.msra.mxu0 0.0
    %3847 = vmatprep.subr.mxu0 0.0
    %3848 = vmatpush1.msra.mxu0 0.0
    %3849 = vmatprep.subr.mxu0 0.0
    %3850 = vmatpush1.msra.mxu0 0.0
    %3851 = vmatprep.subr.mxu0 0.0
    %3852 = vmatpush1.msra.mxu0 0.0
    %3853 = vmatprep.subr.mxu0 0.0
    %3854 = vmatpush1.msra.mxu0 0.0
    %3855 = vmatprep.subr.mxu0 0.0
    %3856 = vmatpush1.msra.mxu0 0.0
    %3857 = vmatprep.subr.mxu0 0.0
    %3858 = vmatpush1.msra.mxu0 0.0
    %3859 = vmatprep.subr.mxu0 0.0
    %3860 = vmatpush1.msra.mxu0 0.0
    %3861 = vmatprep.subr.mxu0 0.0
    %3862 = vmatpush1.msra.mxu0 0.0
    %3863 = vmatprep.subr.mxu0 0.0
    %3864 = vmatpush1.msra.mxu0 0.0
    %3865 = vmatprep.subr.mxu0 0.0
    %3866 = vmatpush1.msra.mxu0 0.0
    %3867 = vmatprep.subr.mxu0 0.0
    %3868 = vmatpush1.msra.mxu0 0.0
    %3869 = vmatprep.subr.mxu0 0.0
    %3870 = vmatpush1.msra.mxu0 0.0
    %3871 = vmatprep.subr.mxu0 %v3841
    %3872 = vmatpush1.msra.mxu0 %v3838
    %3873 = vmatprep.subr.mxu0 %v3623
    %3874 = vmatpush1.msra.mxu0 %v3582
    %3875 = vmatprep.subr.mxu0 0.0
    %3876 = vmatpush2.msra.mxu0 0.0
    %3877 = vmatprep.subr.mxu0 0.0
    %3878 = vmatpush2.msra.mxu0 0.0
    %3879 = vmatprep.subr.mxu0 0.0
    %3880 = vmatpush2.msra.mxu0 0.0
    %3881 = vmatprep.subr.mxu0 0.0
    %3882 = vmatpush2.msra.mxu0 0.0
    %3883 = vmatprep.subr.mxu0 0.0
    %3884 = vmatpush2.msra.mxu0 0.0
    %3885 = vmatprep.subr.mxu0 0.0
    %3886 = vmatpush2.msra.mxu0 0.0
    %3887 = vmatprep.subr.mxu0 0.0
    %3888 = vmatpush2.msra.mxu0 0.0
    %3889 = vmatprep.subr.mxu0 0.0
    %3890 = vmatpush2.msra.mxu0 0.0
    %3891 = vmatprep.subr.mxu0 0.0
    %3892 = vmatpush2.msra.mxu0 0.0
    %3893 = vmatprep.subr.mxu0 0.0
    %3894 = vmatpush2.msra.mxu0 0.0
    %3895 = vmatprep.subr.mxu0 0.0
    %3896 = vmatpush2.msra.mxu0 0.0
    %3897 = vmatprep.subr.mxu0 0.0
    %3898 = vmatpush2.msra.mxu0 0.0
    %3899 = vmatprep.subr.mxu0 0.0
    %3900 = vmatpush2.msra.mxu0 0.0
    %3901 = vmatprep.subr.mxu0 0.0
    %3902 = vmatpush2.msra.mxu0 0.0
    %3903 = vmatprep.subr.mxu0 0.0
    %3904 = vmatpush2.msra.mxu0 0.0
    %3905 = vmatprep.subr.mxu0 0.0
    %3906 = vmatpush2.msra.mxu0 0.0
    %3907 = vmatprep.mubr.bf16.mxu0 0
    %3908 = vmatmul.mubr.bf16.gmra.mxu0 %v3835
    %v3909 = vpop.f32.mrf.mxu0
    %v3910 = vadd.f32 0.0, %v3909
    %v3911 = vpop.f32.mrf.mxu0
    %v3912 = vadd.f32 0.0, %v3911
    %v3913 = vpop.f32.mrf.mxu0
    %v3914 = vadd.f32 0.0, %v3913
    %v3915 = vpop.f32.mrf.mxu0
    %v3916 = vadd.f32 0.0, %v3915
    %3917 = vdwg.mxu0
    %v3918 = vadd.f32 %v3818, %v3910
    %v3919 = vadd.f32 %v3820, %v3912
    %v3920 = vadd.f32 %v3822, %v3914
    %v3921 = vadd.f32 %v3824, %v3916
    %v3923 = vlaneseq
    %v3924 = vshrl.u32 %v3923, 7
    %v3925 = vsub.s32 0, %v3924
    %v3926 = vrot.slane %v3134, %v3925
    %v3927 = vlaneseq
    %v3928 = vshrl.u32 %v3927, 7
    %v3929 = vsub.s32 1, %v3928
    %v3930 = vrot.slane %v3134, %v3929
    %v3933 = vadd.f32 %v3918, %v3926
    %v3934 = vadd.f32 %v3919, %v3930
    %v3935 = vadd.f32 %v3920, %v3926
    %v3936 = vadd.f32 %v3921, %v3930
    %v3937 = vmax.f32 %v3933, 0.0
    %v3938 = vmax.f32 %v3934, 0.0
    %v3939 = vmax.f32 %v3935, 0.0
    %v3940 = vmax.f32 %v3936, 0.0
    %v3941 = vsel %vm378, %v3939, 0.0
    %v3942 = vadd.f32 %v3937, %v3941
    %v3943 = vrot.slane %v3942, 4
    %v3944 = vadd.f32 %v3942, %v3943
    %v3945 = vrot.slane %v3944, 2
    %v3946 = vadd.f32 %v3944, %v3945
    %v3947 = vrot.slane %v3946, 1
    %v3948 = vadd.f32 %v3946, %v3947
    %v3949 = vsel %vm706, %v3938, 0.0
    %v3950 = vsel %vm2880, %v3940, 0.0
    %v3951 = vadd.f32 %v3949, %v3950
    %v3952 = vrot.slane %v3951, 4
    %v3953 = vadd.f32 %v3951, %v3952
    %v3954 = vrot.slane %v3953, 2
    %v3955 = vadd.f32 %v3953, %v3954
    %v3956 = vrot.slane %v3955, 1
    %v3957 = vadd.f32 %v3955, %v3956
    %v3958 = vmul.f32 %v3948, %v2889
    %v3959 = vmul.f32 %v3957, %v2889
    %v3960 = vmul.f32 %v3937, %v3937
    %v3961 = vmul.f32 %v3938, %v3938
    %v3962 = vmul.f32 %v3939, %v3939
    %v3963 = vmul.f32 %v3940, %v3940
    %v3964 = vsel %vm378, %v3962, 0.0
    %v3965 = vadd.f32 %v3960, %v3964
    %v3966 = vrot.slane %v3965, 4
    %v3967 = vadd.f32 %v3965, %v3966
    %v3968 = vrot.slane %v3967, 2
    %v3969 = vadd.f32 %v3967, %v3968
    %v3970 = vrot.slane %v3969, 1
    %v3971 = vadd.f32 %v3969, %v3970
    %v3972 = vsel %vm706, %v3961, 0.0
    %v3973 = vsel %vm2880, %v3963, 0.0
    %v3974 = vadd.f32 %v3972, %v3973
    %v3975 = vrot.slane %v3974, 4
    %v3976 = vadd.f32 %v3974, %v3975
    %v3977 = vrot.slane %v3976, 2
    %v3978 = vadd.f32 %v3976, %v3977
    %v3979 = vrot.slane %v3978, 1
    %v3980 = vadd.f32 %v3978, %v3979
    %v3981 = vmul.f32 %v3971, %v2889
    %v3982 = vmul.f32 %v3980, %v2889
    %v3983 = vsel %vm1359, %v3958, %v3981
    %v3984 = vsel %vm1359, %v3959, %v3982
    %v3986 = vsel %vm706, %v3984, 0
    %3988 = vmatprep.subr.mxu0 %v3166
    %3989 = vmatpush1.msra.mxu0 %v3165
    %3990 = vmatprep.subr.mxu0 %v3164
    %3991 = vmatpush1.msra.mxu0 %v3163
    %3992 = vmatprep.subr.mxu0 %v3162
    %3993 = vmatpush1.msra.mxu0 %v3161
    %3994 = vmatprep.subr.mxu0 %v3160
    %3995 = vmatpush1.msra.mxu0 %v3159
    %3996 = vmatprep.subr.mxu0 %v3158
    %3997 = vmatpush1.msra.mxu0 %v3157
    %3998 = vmatprep.subr.mxu0 %v3156
    %3999 = vmatpush1.msra.mxu0 %v3155
    %4000 = vmatprep.subr.mxu0 %v3154
    %4001 = vmatpush1.msra.mxu0 %v3153
    %4002 = vmatprep.subr.mxu0 %v3152
    %4003 = vmatpush1.msra.mxu0 %v3151
    %4004 = vmatprep.subr.mxu0 %v3150
    %4005 = vmatpush1.msra.mxu0 %v3149
    %4006 = vmatprep.subr.mxu0 %v3148
    %4007 = vmatpush1.msra.mxu0 %v3147
    %4008 = vmatprep.subr.mxu0 %v3146
    %4009 = vmatpush1.msra.mxu0 %v3145
    %4010 = vmatprep.subr.mxu0 %v3144
    %4011 = vmatpush1.msra.mxu0 %v3143
    %4012 = vmatprep.subr.mxu0 %v3142
    %4013 = vmatpush1.msra.mxu0 %v3141
    %4014 = vmatprep.subr.mxu0 %v3140
    %4015 = vmatpush1.msra.mxu0 %v3139
    %4016 = vmatprep.subr.mxu0 %v3138
    %4017 = vmatpush1.msra.mxu0 %v3137
    %4018 = vmatprep.subr.mxu0 %v3136
    %4019 = vmatpush1.msra.mxu0 %v3135
    %4020 = vmatprep.subr.mxu0 0.0
    %4021 = vmatpush2.msra.mxu0 0.0
    %4022 = vmatprep.subr.mxu0 0.0
    %4023 = vmatpush2.msra.mxu0 0.0
    %4024 = vmatprep.subr.mxu0 0.0
    %4025 = vmatpush2.msra.mxu0 0.0
    %4026 = vmatprep.subr.mxu0 0.0
    %4027 = vmatpush2.msra.mxu0 0.0
    %4028 = vmatprep.subr.mxu0 0.0
    %4029 = vmatpush2.msra.mxu0 0.0
    %4030 = vmatprep.subr.mxu0 0.0
    %4031 = vmatpush2.msra.mxu0 0.0
    %4032 = vmatprep.subr.mxu0 0.0
    %4033 = vmatpush2.msra.mxu0 0.0
    %4034 = vmatprep.subr.mxu0 0.0
    %4035 = vmatpush2.msra.mxu0 0.0
    %4036 = vmatprep.subr.mxu0 %v3182
    %4037 = vmatpush2.msra.mxu0 %v3181
    %4038 = vmatprep.subr.mxu0 %v3180
    %4039 = vmatpush2.msra.mxu0 %v3179
    %4040 = vmatprep.subr.mxu0 %v3178
    %4041 = vmatpush2.msra.mxu0 %v3177
    %4042 = vmatprep.subr.mxu0 %v3176
    %4043 = vmatpush2.msra.mxu0 %v3175
    %4044 = vmatprep.subr.mxu0 %v3174
    %4045 = vmatpush2.msra.mxu0 %v3173
    %4046 = vmatprep.subr.mxu0 %v3172
    %4047 = vmatpush2.msra.mxu0 %v3171
    %4048 = vmatprep.subr.mxu0 %v3170
    %4049 = vmatpush2.msra.mxu0 %v3169
    %4050 = vmatprep.subr.mxu0 %v3168
    %4051 = vmatpush2.msra.mxu0 %v3167
    %4052 = vmatprep.mubr.f32.mxu0 %v3986
    %4053 = vmatmul.mubr.f32.gmra.mxu0 %v3983
    %v4054 = vpop.f32.mrf.mxu0
    %v4055 = vadd.f32 0.0, %v4054
    %v4056 = vpop.f32.mrf.mxu0
    %v4057 = vadd.f32 0.0, %v4056
    %4058 = vdwg.mxu0
    %v4059 = vmul.f32 %v4055, %v4055
    %v4060 = vmul.f32 %v4057, %v4057
    %v4063 = vrot.slane %v4059, 7
    %v4064 = vrot.slane %v4060, 7
    %v4067 = vsub.f32 %v4055, %v4063
    %v4068 = vsub.f32 %v4057, %v4064
    %v4069 = vadd.f32 %v4067, 1e-05
    %v4070 = vadd.f32 %v4068, 1e-05
    %v4071 = vrsqrt.pop %v4069
    %v4072 = vrsqrt.pop %v4070
    %v4073 = vlaneseq
    %v4074 = vshrl.u32 %v4073, 7
    %v4075 = vsub.s32 0, %v4074
    %v4076 = vrot.slane %v4055, %v4075
    %v4077 = vlaneseq
    %v4078 = vshrl.u32 %v4077, 7
    %v4079 = vsub.s32 0, %v4078
    %v4080 = vrot.slane %v4057, %v4079
    %v4081 = vsub.f32 %v3937, %v4076
    %v4082 = vsub.f32 %v3938, %v4080
    %v4083 = vsub.f32 %v3939, %v4076
    %v4084 = vsub.f32 %v3940, %v4080
    %v4086 = vlaneseq
    %v4087 = vshrl.u32 %v4086, 7
    %v4088 = vsub.s32 0, %v4087
    %v4089 = vrot.slane %v3183, %v4088
    %v4090 = vlaneseq
    %v4091 = vshrl.u32 %v4090, 7
    %v4092 = vsub.s32 1, %v4091
    %v4093 = vrot.slane %v3183, %v4092
    %v4096 = vmul.f32 %v4071, %v4089
    %v4097 = vmul.f32 %v4072, %v4093
    %v4098 = vlaneseq
    %v4099 = vshrl.u32 %v4098, 7
    %v4100 = vsub.s32 1, %v4099
    %v4101 = vrot.slane %v4096, %v4100
    %v4102 = vlaneseq
    %v4103 = vshrl.u32 %v4102, 7
    %v4104 = vsub.s32 1, %v4103
    %v4105 = vrot.slane %v4097, %v4104
    %v4106 = vmul.f32 %v4081, %v4101
    %v4107 = vmul.f32 %v4082, %v4105
    %v4108 = vmul.f32 %v4083, %v4101
    %v4109 = vmul.f32 %v4084, %v4105
    %v4111 = vlaneseq
    %v4112 = vshrl.u32 %v4111, 7
    %v4113 = vsub.s32 0, %v4112
    %v4114 = vrot.slane %v3184, %v4113
    %v4115 = vlaneseq
    %v4116 = vshrl.u32 %v4115, 7
    %v4117 = vsub.s32 1, %v4116
    %v4118 = vrot.slane %v3184, %v4117
    %v4121 = vadd.f32 %v4106, %v4114
    %v4122 = vadd.f32 %v4107, %v4118
    %v4123 = vadd.f32 %v4108, %v4114
    %v4124 = vadd.f32 %v4109, %v4118
    %s4125 = smul.u32 %s1508, 2
    %s4126 = sshll.u32 %s4125, 4
    %4127 = dma.done %s224, %s4126
    %v4128 = vpack.c.bf16 %v4123, %v4121
    %v4129 = vpack.c.bf16 %v4124, %v4122
    %v4130 = vld [vmem:[#allocation6] sm:$0xff]
    %v4131 = vld [vmem:[#allocation6 + $0x8] sm:$0xff]
    %v4132 = vld [vmem:[#allocation6 + $0x10] sm:$0xff]
    %v4133 = vld [vmem:[#allocation6 + $0x18] sm:$0xff]
    %v4134 = vld [vmem:[#allocation6 + $0x20] sm:$0xff]
    %v4135 = vld [vmem:[#allocation6 + $0x28] sm:$0xff]
    %v4136 = vld [vmem:[#allocation6 + $0x30] sm:$0xff]
    %v4137 = vld [vmem:[#allocation6 + $0x38] sm:$0xff]
    %v4138 = vld [vmem:[#allocation6 + $0x40] sm:$0xff]
    %v4139 = vld [vmem:[#allocation6 + $0x48] sm:$0xff]
    %v4140 = vld [vmem:[#allocation6 + $0x50] sm:$0xff]
    %v4141 = vld [vmem:[#allocation6 + $0x58] sm:$0xff]
    %v4142 = vld [vmem:[#allocation6 + $0x60] sm:$0xff]
    %v4143 = vld [vmem:[#allocation6 + $0x68] sm:$0xff]
    %v4144 = vld [vmem:[#allocation6 + $0x70] sm:$0xff]
    %v4145 = vld [vmem:[#allocation6 + $0x78] sm:$0xff]
    %v4146 = vld [vmem:[#allocation6 + $0x80] sm:$0xff]
    %v4147 = vld [vmem:[#allocation6 + $0x88] sm:$0xff]
    %v4148 = vld [vmem:[#allocation6 + $0x90] sm:$0xff]
    %v4149 = vld [vmem:[#allocation6 + $0x98] sm:$0xff]
    %v4150 = vld [vmem:[#allocation6 + $0xa0] sm:$0xff]
    %v4151 = vld [vmem:[#allocation6 + $0xa8] sm:$0xff]
    %v4152 = vld [vmem:[#allocation6 + $0xb0] sm:$0xff]
    %v4153 = vld [vmem:[#allocation6 + $0xb8] sm:$0xff]
    %v4178 = vunpack.c.l.b16 %v4130
    %v4179 = vunpack.c.h.b16 %v4130
    %v4180 = vunpack.c.l.b16 %v4131
    %v4181 = vunpack.c.h.b16 %v4131
    %v4182 = vunpack.c.l.b16 %v4132
    %v4183 = vunpack.c.h.b16 %v4132
    %v4184 = vunpack.c.l.b16 %v4133
    %v4185 = vunpack.c.h.b16 %v4133
    %v4186 = vunpack.c.l.b16 %v4134
    %v4187 = vunpack.c.h.b16 %v4134
    %v4188 = vunpack.c.l.b16 %v4135
    %v4189 = vunpack.c.h.b16 %v4135
    %v4190 = vunpack.c.l.b16 %v4136
    %v4191 = vunpack.c.h.b16 %v4136
    %v4192 = vunpack.c.l.b16 %v4137
    %v4193 = vunpack.c.h.b16 %v4137
    %v4194 = vunpack.c.l.b16 %v4138
    %v4195 = vunpack.c.h.b16 %v4138
    %v4196 = vunpack.c.l.b16 %v4139
    %v4197 = vunpack.c.h.b16 %v4139
    %v4198 = vunpack.c.l.b16 %v4140
    %v4199 = vunpack.c.h.b16 %v4140
    %v4200 = vunpack.c.l.b16 %v4141
    %v4201 = vunpack.c.h.b16 %v4141
    %v4202 = vunpack.c.l.b16 %v4142
    %v4203 = vunpack.c.h.b16 %v4142
    %v4204 = vunpack.c.l.b16 %v4143
    %v4205 = vunpack.c.h.b16 %v4143
    %v4206 = vunpack.c.l.b16 %v4144
    %v4207 = vunpack.c.h.b16 %v4144
    %v4208 = vunpack.c.l.b16 %v4145
    %v4209 = vunpack.c.h.b16 %v4145
    %v4210 = vunpack.c.l.b16 %v4146
    %v4211 = vunpack.c.h.b16 %v4146
    %v4212 = vunpack.c.l.b16 %v4147
    %v4213 = vunpack.c.h.b16 %v4147
    %v4214 = vunpack.c.l.b16 %v4148
    %v4215 = vunpack.c.h.b16 %v4148
    %v4216 = vunpack.c.l.b16 %v4149
    %v4217 = vunpack.c.h.b16 %v4149
    %v4218 = vunpack.c.l.b16 %v4150
    %v4219 = vunpack.c.h.b16 %v4150
    %v4220 = vunpack.c.l.b16 %v4151
    %v4221 = vunpack.c.h.b16 %v4151
    %v4222 = vunpack.c.l.b16 %v4152
    %v4223 = vunpack.c.h.b16 %v4152
    %v4224 = vunpack.c.l.b16 %v4153
    %v4225 = vunpack.c.h.b16 %v4153
    %v4226 = vpack.c.b16 %v4180, %v4178
    %v4227 = vpack.c.b16 %v4181, %v4179
    %v4228 = vpack.c.b16 %v4184, %v4182
    %v4229 = vpack.c.b16 %v4185, %v4183
    %v4230 = vpack.c.b16 %v4188, %v4186
    %v4231 = vpack.c.b16 %v4189, %v4187
    %v4232 = vpack.c.b16 %v4192, %v4190
    %v4233 = vpack.c.b16 %v4193, %v4191
    %v4234 = vpack.c.b16 %v4196, %v4194
    %v4235 = vpack.c.b16 %v4197, %v4195
    %v4236 = vpack.c.b16 %v4200, %v4198
    %v4237 = vpack.c.b16 %v4201, %v4199
    %v4238 = vpack.c.b16 %v4204, %v4202
    %v4239 = vpack.c.b16 %v4205, %v4203
    %v4240 = vpack.c.b16 %v4208, %v4206
    %v4241 = vpack.c.b16 %v4209, %v4207
    %v4242 = vpack.c.b16 %v4212, %v4210
    %v4243 = vpack.c.b16 %v4213, %v4211
    %v4244 = vpack.c.b16 %v4216, %v4214
    %v4245 = vpack.c.b16 %v4217, %v4215
    %v4246 = vpack.c.b16 %v4220, %v4218
    %v4247 = vpack.c.b16 %v4221, %v4219
    %v4248 = vpack.c.b16 %v4224, %v4222
    %v4249 = vpack.c.b16 %v4225, %v4223
    %v4275 = vsel %vm706, %v4129, 0
    %4277 = vmatprep.subr.bf16.mxu0 %v4241
    %4278 = vmatpush1.bf16.msra.mxu0 %v4240
    %4279 = vmatprep.subr.bf16.mxu0 %v4239
    %4280 = vmatpush1.bf16.msra.mxu0 %v4238
    %4281 = vmatprep.subr.bf16.mxu0 %v4237
    %4282 = vmatpush1.bf16.msra.mxu0 %v4236
    %4283 = vmatprep.subr.bf16.mxu0 %v4235
    %4284 = vmatpush1.bf16.msra.mxu0 %v4234
    %4285 = vmatprep.subr.bf16.mxu0 %v4233
    %4286 = vmatpush1.bf16.msra.mxu0 %v4232
    %4287 = vmatprep.subr.bf16.mxu0 %v4231
    %4288 = vmatpush1.bf16.msra.mxu0 %v4230
    %4289 = vmatprep.subr.bf16.mxu0 %v4229
    %4290 = vmatpush1.bf16.msra.mxu0 %v4228
    %4291 = vmatprep.subr.bf16.mxu0 %v4227
    %4292 = vmatpush1.bf16.msra.mxu0 %v4226
    %4293 = vmatprep.subr.bf16.mxu0 0
    %4294 = vmatpush2.bf16.msra.mxu0 0
    %4295 = vmatprep.subr.bf16.mxu0 0
    %4296 = vmatpush2.bf16.msra.mxu0 0
    %4297 = vmatprep.subr.bf16.mxu0 0
    %4298 = vmatpush2.bf16.msra.mxu0 0
    %4299 = vmatprep.subr.bf16.mxu0 0
    %4300 = vmatpush2.bf16.msra.mxu0 0
    %4301 = vmatprep.subr.bf16.mxu0 %v4249
    %4302 = vmatpush2.bf16.msra.mxu0 %v4248
    %4303 = vmatprep.subr.bf16.mxu0 %v4247
    %4304 = vmatpush2.bf16.msra.mxu0 %v4246
    %4305 = vmatprep.subr.bf16.mxu0 %v4245
    %4306 = vmatpush2.bf16.msra.mxu0 %v4244
    %4307 = vmatprep.subr.bf16.mxu0 %v4243
    %4308 = vmatpush2.bf16.msra.mxu0 %v4242
    %4309 = vmatprep.mubr.bf16.mxu0 %v4275
    %4310 = vmatmul.mubr.bf16.gmra.mxu0 %v4128
    %v4311 = vpop.f32.mrf.mxu0
    %v4312 = vadd.f32 0.0, %v4311
    %v4313 = vpop.f32.mrf.mxu0
    %v4314 = vadd.f32 0.0, %v4313
    %v4315 = vpop.f32.mrf.mxu0
    %v4316 = vadd.f32 0.0, %v4315
    %v4317 = vpop.f32.mrf.mxu0
    %v4318 = vadd.f32 0.0, %v4317
    %4319 = vdwg.mxu0
    %v4320 = vld [vmem:[%s15] sm:$0x1]
    %s4321 = scalar_lea.vmem %s15, 1
    %v4322 = vld [vmem:[%s4321] sm:$0x1]
    %4325 = vrot.lane.b32.xlu0 %v4312, 64
    %v4326 = vpop.permute.xlu0 %4325
    %4327 = vrot.lane.b32.xlu0 %v4316, 64
    %v4328 = vpop.permute.xlu0 %4327
    %v4331 = vsel %vm3655, %v4322, 0
    %v4333 = vsel %vm378, %v4328, 0
    %4335 = vmatprep.subr.mxu0 0.0
    %4336 = vmatpush1.msra.mxu0 0.0
    %4337 = vmatprep.subr.mxu0 0.0
    %4338 = vmatpush1.msra.mxu0 0.0
    %4339 = vmatprep.subr.mxu0 0.0
    %4340 = vmatpush1.msra.mxu0 0.0
    %4341 = vmatprep.subr.mxu0 0.0
    %4342 = vmatpush1.msra.mxu0 0.0
    %4343 = vmatprep.subr.mxu0 0.0
    %4344 = vmatpush1.msra.mxu0 0.0
    %4345 = vmatprep.subr.mxu0 0.0
    %4346 = vmatpush1.msra.mxu0 0.0
    %4347 = vmatprep.subr.mxu0 0.0
    %4348 = vmatpush1.msra.mxu0 0.0
    %4349 = vmatprep.subr.mxu0 0.0
    %4350 = vmatpush1.msra.mxu0 0.0
    %4351 = vmatprep.subr.mxu0 0.0
    %4352 = vmatpush1.msra.mxu0 0.0
    %4353 = vmatprep.subr.mxu0 0.0
    %4354 = vmatpush1.msra.mxu0 0.0
    %4355 = vmatprep.subr.mxu0 0.0
    %4356 = vmatpush1.msra.mxu0 0.0
    %4357 = vmatprep.subr.mxu0 0.0
    %4358 = vmatpush1.msra.mxu0 0.0
    %4359 = vmatprep.subr.mxu0 0.0
    %4360 = vmatpush1.msra.mxu0 0.0
    %4361 = vmatprep.subr.mxu0 0.0
    %4362 = vmatpush1.msra.mxu0 0.0
    %4363 = vmatprep.subr.mxu0 0.0
    %4364 = vmatpush1.msra.mxu0 %v4333
    %4365 = vmatprep.subr.mxu0 0.0
    %4366 = vmatpush1.msra.mxu0 %v4326
    %4367 = vmatprep.subr.mxu0 0.0
    %4368 = vmatpush2.msra.mxu0 0.0
    %4369 = vmatprep.subr.mxu0 0.0
    %4370 = vmatpush2.msra.mxu0 0.0
    %4371 = vmatprep.subr.mxu0 0.0
    %4372 = vmatpush2.msra.mxu0 0.0
    %4373 = vmatprep.subr.mxu0 0.0
    %4374 = vmatpush2.msra.mxu0 0.0
    %4375 = vmatprep.subr.mxu0 0.0
    %4376 = vmatpush2.msra.mxu0 0.0
    %4377 = vmatprep.subr.mxu0 0.0
    %4378 = vmatpush2.msra.mxu0 0.0
    %4379 = vmatprep.subr.mxu0 0.0
    %4380 = vmatpush2.msra.mxu0 0.0
    %4381 = vmatprep.subr.mxu0 0.0
    %4382 = vmatpush2.msra.mxu0 0.0
    %4383 = vmatprep.subr.mxu0 0.0
    %4384 = vmatpush2.msra.mxu0 0.0
    %4385 = vmatprep.subr.mxu0 0.0
    %4386 = vmatpush2.msra.mxu0 0.0
    %4387 = vmatprep.subr.mxu0 0.0
    %4388 = vmatpush2.msra.mxu0 0.0
    %4389 = vmatprep.subr.mxu0 0.0
    %4390 = vmatpush2.msra.mxu0 0.0
    %4391 = vmatprep.subr.mxu0 0.0
    %4392 = vmatpush2.msra.mxu0 0.0
    %4393 = vmatprep.subr.mxu0 0.0
    %4394 = vmatpush2.msra.mxu0 0.0
    %4395 = vmatprep.subr.mxu0 0.0
    %4396 = vmatpush2.msra.mxu0 0.0
    %4397 = vmatprep.subr.mxu0 0.0
    %4398 = vmatpush2.msra.mxu0 0.0
    %4399 = vmatprep.mubr.bf16.mxu0 0
    %4400 = vmatmul.mubr.bf16.gmra.mxu0 %v4331
    %v4401 = vpop.f32.mrf.mxu0
    %v4402 = vadd.f32 0.0, %v4401
    %v4403 = vpop.f32.mrf.mxu0
    %v4404 = vpop.f32.mrf.mxu0
    %v4405 = vpop.f32.mrf.mxu0
    %4406 = vdwg.mxu0
    %v4408 = vsel %vm3655, %v4320, 0
    %v4410 = vsel %vm378, %v4316, 0
    %4412 = vmatprep.subr.mxu0 0.0
    %4413 = vmatpush1.msra.mxu0 0.0
    %4414 = vmatprep.subr.mxu0 0.0
    %4415 = vmatpush1.msra.mxu0 0.0
    %4416 = vmatprep.subr.mxu0 0.0
    %4417 = vmatpush1.msra.mxu0 0.0
    %4418 = vmatprep.subr.mxu0 0.0
    %4419 = vmatpush1.msra.mxu0 0.0
    %4420 = vmatprep.subr.mxu0 0.0
    %4421 = vmatpush1.msra.mxu0 0.0
    %4422 = vmatprep.subr.mxu0 0.0
    %4423 = vmatpush1.msra.mxu0 0.0
    %4424 = vmatprep.subr.mxu0 0.0
    %4425 = vmatpush1.msra.mxu0 0.0
    %4426 = vmatprep.subr.mxu0 0.0
    %4427 = vmatpush1.msra.mxu0 0.0
    %4428 = vmatprep.subr.mxu0 0.0
    %4429 = vmatpush1.msra.mxu0 0.0
    %4430 = vmatprep.subr.mxu0 0.0
    %4431 = vmatpush1.msra.mxu0 0.0
    %4432 = vmatprep.subr.mxu0 0.0
    %4433 = vmatpush1.msra.mxu0 0.0
    %4434 = vmatprep.subr.mxu0 0.0
    %4435 = vmatpush1.msra.mxu0 0.0
    %4436 = vmatprep.subr.mxu0 0.0
    %4437 = vmatpush1.msra.mxu0 0.0
    %4438 = vmatprep.subr.mxu0 0.0
    %4439 = vmatpush1.msra.mxu0 0.0
    %4440 = vmatprep.subr.mxu0 0.0
    %4441 = vmatpush1.msra.mxu0 %v4410
    %4442 = vmatprep.subr.mxu0 0.0
    %4443 = vmatpush1.msra.mxu0 %v4312
    %4444 = vmatprep.subr.mxu0 0.0
    %4445 = vmatpush2.msra.mxu0 0.0
    %4446 = vmatprep.subr.mxu0 0.0
    %4447 = vmatpush2.msra.mxu0 0.0
    %4448 = vmatprep.subr.mxu0 0.0
    %4449 = vmatpush2.msra.mxu0 0.0
    %4450 = vmatprep.subr.mxu0 0.0
    %4451 = vmatpush2.msra.mxu0 0.0
    %4452 = vmatprep.subr.mxu0 0.0
    %4453 = vmatpush2.msra.mxu0 0.0
    %4454 = vmatprep.subr.mxu0 0.0
    %4455 = vmatpush2.msra.mxu0 0.0
    %4456 = vmatprep.subr.mxu0 0.0
    %4457 = vmatpush2.msra.mxu0 0.0
    %4458 = vmatprep.subr.mxu0 0.0
    %4459 = vmatpush2.msra.mxu0 0.0
    %4460 = vmatprep.subr.mxu0 0.0
    %4461 = vmatpush2.msra.mxu0 0.0
    %4462 = vmatprep.subr.mxu0 0.0
    %4463 = vmatpush2.msra.mxu0 0.0
    %4464 = vmatprep.subr.mxu0 0.0
    %4465 = vmatpush2.msra.mxu0 0.0
    %4466 = vmatprep.subr.mxu0 0.0
    %4467 = vmatpush2.msra.mxu0 0.0
    %4468 = vmatprep.subr.mxu0 0.0
    %4469 = vmatpush2.msra.mxu0 0.0
    %4470 = vmatprep.subr.mxu0 0.0
    %4471 = vmatpush2.msra.mxu0 0.0
    %4472 = vmatprep.subr.mxu0 0.0
    %4473 = vmatpush2.msra.mxu0 0.0
    %4474 = vmatprep.subr.mxu0 0.0
    %4475 = vmatpush2.msra.mxu0 0.0
    %4476 = vmatprep.mubr.bf16.mxu0 0
    %4477 = vmatmul.mubr.bf16.gmra.mxu0 %v4408
    %v4478 = vpop.f32.mrf.mxu0
    %v4479 = vadd.f32 %v4402, %v4478
    %v4480 = vpop.f32.mrf.mxu0
    %v4481 = vpop.f32.mrf.mxu0
    %v4482 = vpop.f32.mrf.mxu0
    %4483 = vdwg.mxu0
    %s4484 = scalar_lea.vmem %s15, 2
    %v4485 = vld [vmem:[%s4484] sm:$0x1]
    %v4487 = vsel %vm3655, %v4485, 0
    %v4490 = vsel %vm378, %v4318, 0
    %4492 = vmatprep.subr.mxu0 0.0
    %4493 = vmatpush1.msra.mxu0 0.0
    %4494 = vmatprep.subr.mxu0 0.0
    %4495 = vmatpush1.msra.mxu0 0.0
    %4496 = vmatprep.subr.mxu0 0.0
    %4497 = vmatpush1.msra.mxu0 0.0
    %4498 = vmatprep.subr.mxu0 0.0
    %4499 = vmatpush1.msra.mxu0 0.0
    %4500 = vmatprep.subr.mxu0 0.0
    %4501 = vmatpush1.msra.mxu0 0.0
    %4502 = vmatprep.subr.mxu0 0.0
    %4503 = vmatpush1.msra.mxu0 0.0
    %4504 = vmatprep.subr.mxu0 0.0
    %4505 = vmatpush1.msra.mxu0 0.0
    %4506 = vmatprep.subr.mxu0 0.0
    %4507 = vmatpush1.msra.mxu0 0.0
    %4508 = vmatprep.subr.mxu0 0.0
    %4509 = vmatpush1.msra.mxu0 0.0
    %4510 = vmatprep.subr.mxu0 0.0
    %4511 = vmatpush1.msra.mxu0 0.0
    %4512 = vmatprep.subr.mxu0 0.0
    %4513 = vmatpush1.msra.mxu0 0.0
    %4514 = vmatprep.subr.mxu0 0.0
    %4515 = vmatpush1.msra.mxu0 0.0
    %4516 = vmatprep.subr.mxu0 0.0
    %4517 = vmatpush1.msra.mxu0 0.0
    %4518 = vmatprep.subr.mxu0 0.0
    %4519 = vmatpush1.msra.mxu0 0.0
    %4520 = vmatprep.subr.mxu0 0.0
    %4521 = vmatpush1.msra.mxu0 %v4490
    %4522 = vmatprep.subr.mxu0 0.0
    %4523 = vmatpush1.msra.mxu0 %v4314
    %4524 = vmatprep.subr.mxu0 0.0
    %4525 = vmatpush2.msra.mxu0 0.0
    %4526 = vmatprep.subr.mxu0 0.0
    %4527 = vmatpush2.msra.mxu0 0.0
    %4528 = vmatprep.subr.mxu0 0.0
    %4529 = vmatpush2.msra.mxu0 0.0
    %4530 = vmatprep.subr.mxu0 0.0
    %4531 = vmatpush2.msra.mxu0 0.0
    %4532 = vmatprep.subr.mxu0 0.0
    %4533 = vmatpush2.msra.mxu0 0.0
    %4534 = vmatprep.subr.mxu0 0.0
    %4535 = vmatpush2.msra.mxu0 0.0
    %4536 = vmatprep.subr.mxu0 0.0
    %4537 = vmatpush2.msra.mxu0 0.0
    %4538 = vmatprep.subr.mxu0 0.0
    %4539 = vmatpush2.msra.mxu0 0.0
    %4540 = vmatprep.subr.mxu0 0.0
    %4541 = vmatpush2.msra.mxu0 0.0
    %4542 = vmatprep.subr.mxu0 0.0
    %4543 = vmatpush2.msra.mxu0 0.0
    %4544 = vmatprep.subr.mxu0 0.0
    %4545 = vmatpush2.msra.mxu0 0.0
    %4546 = vmatprep.subr.mxu0 0.0
    %4547 = vmatpush2.msra.mxu0 0.0
    %4548 = vmatprep.subr.mxu0 0.0
    %4549 = vmatpush2.msra.mxu0 0.0
    %4550 = vmatprep.subr.mxu0 0.0
    %4551 = vmatpush2.msra.mxu0 0.0
    %4552 = vmatprep.subr.mxu0 0.0
    %4553 = vmatpush2.msra.mxu0 0.0
    %4554 = vmatprep.subr.mxu0 0.0
    %4555 = vmatpush2.msra.mxu0 0.0
    %4556 = vmatprep.mubr.bf16.mxu0 0
    %4557 = vmatmul.mubr.bf16.gmra.mxu0 %v4487
    %v4558 = vpop.f32.mrf.mxu0
    %v4559 = vadd.f32 0.0, %v4558
    %v4560 = vpop.f32.mrf.mxu0
    %v4561 = vpop.f32.mrf.mxu0
    %v4562 = vpop.f32.mrf.mxu0
    %4563 = vdwg.mxu0
    %v4564 = vadd.f32 %v4479, %v4559
    %v4565 = vld [vmem:[%s16] sm:$0x1]
    %v4567 = vlaneseq
    %v4568 = vshrl.u32 %v4567, 7
    %v4569 = vsub.s32 0, %v4568
    %v4570 = vrot.slane %v4565, %v4569
    %v4572 = vadd.f32 %v4564, %v4570
    %vm4573 = vcmask 517120
    %4574 = vst.msk [vmem:[#allocation23] sm:$0x3] %vm4573, %v4572
    // Predicated region
    $region126: #{menet5_forward.1} parent=1 // pred_check
      _
    $region127: #{menet5_forward.1} parent=1 // pred_check_branch
      %4576 = sbr.rel (0) target = $region129
    $region128: #{menet5_forward.1} parent=1 // pred_region
      %s4578 = ssub.s32 32, 32
      %4579 = vsyncadd [#allocation10], %s4578
      %s4581 = sshll.u32 [#allocation23], 4
      %s4582 = int_to_ptr.vmem [resolvable:$true] %s4581
      %4584 = dma.vmem_to_hbm [thread:$0]  %s4582, 32, %s22, [#allocation10]
    $region129: #{menet5_forward.1} parent=1 // pred_fallthru
      _
    // Predicated region
    $region130: #{menet5_forward.1} parent=1 // pred_check
      _
    $region131: #{menet5_forward.1} parent=1 // pred_check_branch
      %4586 = sbr.rel (0) target = $region133
    $region132: #{menet5_forward.1} parent=1 // pred_region
      %4587 = dma.done [#allocation10], 32
    $region133: #{menet5_forward.1} parent=1 // pred_fallthru
      _
    %4588 = vsyncpa [#allocation9], 1
    %4589 = vsyncpa [#allocation12], 1
    %4590 = vsyncpa [#allocation15], 1
    %4591 = vsyncpa [#allocation18], 1
    %4592 = vsyncpa [#allocation21], 1
    %4593 = vsyncpa [#allocation10], 1
  %4594 = vsyncmov [#allocation7]
  %s4595 = vpop.sfrf %4594
  %p4596 = scmp.eq.s32.totalorder %s4595, 0
  %p4597 = pneg %p4596
  %4599 = shalt.err (%p4597)
  %s4600 = scalar_lea.sflag [#allocation7], 1
  %4601 = vsyncmov %s4600
  %s4602 = vpop.sfrf %4601
  %p4603 = scmp.eq.s32.totalorder %s4602, 0
  %p4604 = pneg %p4603
  %4606 = shalt.err (%p4604)
  %s4607 = scalar_lea.sflag [#allocation7], 2
  %4608 = vsyncmov %s4607
  %s4609 = vpop.sfrf %4608
  %p4610 = scmp.eq.s32.totalorder %s4609, 0
  %p4611 = pneg %p4610
  %4613 = shalt.err (%p4611)
  %s4614 = scalar_lea.sflag [#allocation7], 3
  %4615 = vsyncmov %s4614
  %s4616 = vpop.sfrf %4615
  %p4617 = scmp.eq.s32.totalorder %s4616, 0
  %p4618 = pneg %p4617
  %4620 = shalt.err (%p4618)
  %s4621 = scalar_lea.sflag [#allocation7], 4
  %4622 = vsyncmov %s4621
  %s4623 = vpop.sfrf %4622
  %p4624 = scmp.eq.s32.totalorder %s4623, 0
  %p4625 = pneg %p4624
  %4627 = shalt.err (%p4625)

</llo_original>
